<compile_context>
chip_gen: v7x
topology: tpu7x:2x2x1
jax: 0.10.0
libtpu: 0.0.40
codegen_flags: <defaults>
</compile_context>

<pallas_src>
import functools

import jax
import jax.numpy as jnp
from jax.experimental import pallas as pl
from jax.experimental.pallas import tpu as pltpu


def _att_bea_kernel(pe_ref, sm_ref, w1_ref, b1_ref, w2_ref, b2_ref,
                    out_ref, xpad_ref, *, H, W, C_pe, C_sm, Cout):
    """One grid step = one batch element, full H x W.

    pe_ref  : (1, C_pe, H, W)   VMEM
    sm_ref  : (1, C_sm, H, W)   VMEM
    w1_ref  : (Cout*Cin*9,)     SMEM   flattened (Cout, Cin, 3, 3)
    b1_ref  : (Cout,)           SMEM
    w2_ref  : (Cout,)           SMEM   flattened (1, Cout, 1, 1)
    b2_ref  : (1,)              SMEM
    out_ref : (1, C_sm, H, W)   VMEM
    xpad_ref: (Cin, H+2, W+2)   VMEM scratch (zero-padded input channels)
    """
    Cin = C_pe + C_sm

    # Stage the concatenated input channels into a zero-padded scratch so that
    # every 3x3 tap is a plain static slice (no boundary masking in the MACs).
    xpad_ref[...] = jnp.zeros((Cin, H + 2, W + 2), jnp.float32)
    xpad_ref[0:C_pe, 1:H + 1, 1:W + 1] = pe_ref[0]
    xpad_ref[C_pe:Cin, 1:H + 1, 1:W + 1] = sm_ref[0]

    # conv3x3 with padding=1: unrolled VPU multiply-accumulate.  Each shifted
    # (H, W) tap is loaded once and reused for all Cout output channels.
    accs = [jnp.zeros((H, W), jnp.float32) for _ in range(Cout)]
    for c in range(Cin):
        for dy in range(3):
            for dx in range(3):
                tap = xpad_ref[c, dy:dy + H, dx:dx + W]
                k = c * 9 + dy * 3 + dx
                for co in range(Cout):
                    accs[co] = accs[co] + w1_ref[co * Cin * 9 + k] * tap

    # bias + ReLU, then the 1x1 conv (single output channel) as a VPU multiply
    # plus an unrolled sum over Cout — an N=1 MXU matmul would waste a pass.
    logits = jnp.zeros((H, W), jnp.float32) + b2_ref[0]
    for co in range(Cout):
        h_co = jnp.maximum(accs[co] + b1_ref[co], 0.0)
        logits = logits + w2_ref[co] * h_co
    att = jax.nn.sigmoid(logits)                         # (H, W) attention map

    # pred_m = sm * attention, broadcast over the C_sm channels.
    out_ref[0] = sm_ref[0] * att[None, :, :]


def att_bea_blk(pred_e, sm, w1, b1, w2, b2):
    """pred_e: (B, C_pe, H, W), sm: (B, C_sm, H, W) -- NCHW, like PyTorch."""
    B, C_pe, H, W = pred_e.shape
    C_sm = sm.shape[1]
    Cout, Cin = w1.shape[0], w1.shape[1]
    assert Cin == C_pe + C_sm

    # Only the tiny weights are reshaped host-side; activations go straight
    # into the kernel in their native NCHW layout.
    w1_flat = w1.reshape(-1).astype(jnp.float32)         # (Cout*Cin*9,)
    b1_flat = b1.reshape(-1).astype(jnp.float32)         # (Cout,)
    w2_flat = w2.reshape(-1).astype(jnp.float32)         # (Cout,)
    b2_flat = b2.reshape(-1).astype(jnp.float32)         # (1,)

    kernel = functools.partial(_att_bea_kernel, H=H, W=W,
                               C_pe=C_pe, C_sm=C_sm, Cout=Cout)

    smem = pl.BlockSpec(memory_space=pltpu.MemorySpace.SMEM)

    # TODO(synk): for very large images (per-batch block exceeding the VMEM
    # budget) add a second grid axis over H-row blocks with a 2-row halo; for
    # typical sizes one batch element per grid step fits comfortably.
    return pl.pallas_call(
        kernel,
        out_shape=jax.ShapeDtypeStruct((B, C_sm, H, W), jnp.float32),
        grid=(B,),
        in_specs=[
            pl.BlockSpec((1, C_pe, H, W), lambda b: (b, 0, 0, 0)),
            pl.BlockSpec((1, C_sm, H, W), lambda b: (b, 0, 0, 0)),
            smem, smem, smem, smem,
        ],
        out_specs=pl.BlockSpec((1, C_sm, H, W), lambda b: (b, 0, 0, 0)),
        scratch_shapes=[pltpu.VMEM((Cin, H + 2, W + 2), jnp.float32)],
        compiler_params=pltpu.CompilerParams(
            dimension_semantics=("parallel",),
            vmem_limit_bytes=32 * 1024 * 1024),
    )(pred_e.astype(jnp.float32), sm.astype(jnp.float32),
      w1_flat, b1_flat, w2_flat, b2_flat)


def _reference(pred_e, sm, w1, b1, w2, b2):
    """Pure-JAX reference mirroring the PyTorch module (for verification)."""
    x = jnp.concatenate([pred_e, sm], axis=1)
    y = jax.lax.conv_general_dilated(
        x, w1, (1, 1), "SAME", dimension_numbers=("NCHW", "OIHW", "NCHW"))
    y = jax.nn.relu(y + b1.reshape(1, -1, 1, 1))
    z = jax.lax.conv_general_dilated(
        y, w2, (1, 1), "SAME", dimension_numbers=("NCHW", "OIHW", "NCHW"))
    att = jax.nn.sigmoid(z + b2.reshape(1, -1, 1, 1))
    return sm * att


if __name__ == "__main__":
    # Small shapes consistent with the module:
    #   pred_e: (B, 1, H, W), sm: (B, 3, H, W) -> in_channels=4, out_channels=8
    B, H, W = 2, 16, 16
    C_pe, C_sm = 1, 3
    in_channels = C_pe + C_sm
    out_channels = 8

    key = jax.random.PRNGKey(0)
    k_pe, k_sm, k_w1, k_b1, k_w2, k_b2 = jax.random.split(key, 6)

    pred_e = jax.random.normal(k_pe, (B, C_pe, H, W), jnp.float32)
    sm = jax.random.normal(k_sm, (B, C_sm, H, W), jnp.float32)

    # Deterministic synthetic parameters (shapes match nn.Conv2d in __init__).
    w1 = 0.1 * jax.random.normal(k_w1, (out_channels, in_channels, 3, 3), jnp.float32)
    b1 = 0.1 * jax.random.normal(k_b1, (out_channels,), jnp.float32)
    w2 = 0.1 * jax.random.normal(k_w2, (1, out_channels, 1, 1), jnp.float32)
    b2 = 0.1 * jax.random.normal(k_b2, (1,), jnp.float32)

    out = att_bea_blk(pred_e, sm, w1, b1, w2, b2)
    out = jax.block_until_ready(out)

    ref = jax.block_until_ready(_reference(pred_e, sm, w1, b1, w2, b2))
    assert out.shape == ref.shape == (B, C_sm, H, W)
    assert jnp.allclose(out, ref, atol=1e-5, rtol=1e-5), (
        float(jnp.max(jnp.abs(out - ref))))

    print("KERNEL_OK")
</pallas_src>

<mosaic_0001>
module attributes {stable_mosaic.version = 11 : i64} {
  func.func @_att_bea_kernel(%arg0: i32, %arg1: memref<1x1x16x16xf32, #tpu.memory_space<vmem>>, %arg2: memref<1x3x16x16xf32, #tpu.memory_space<vmem>>, %arg3: memref<288xf32, #tpu.memory_space<smem>>, %arg4: memref<8xf32, #tpu.memory_space<smem>>, %arg5: memref<8xf32, #tpu.memory_space<smem>>, %arg6: memref<1xf32, #tpu.memory_space<smem>>, %arg7: memref<1x3x16x16xf32, #tpu.memory_space<vmem>>, %arg8: memref<4x18x18xf32, #tpu.memory_space<vmem>>) attributes {dimension_semantics = [#tpu.dimension_semantics<parallel>], iteration_bounds = array<i64: 2>, scalar_prefetch = 0 : i64, scratch_operands = 1 : i64, tpu.core_type = #tpu.core_type<tc>, window_params = [{transform_indices = @transform_0, window_bounds = array<i64: 1, 1, 16, 16>}, {transform_indices = @transform_1, window_bounds = array<i64: 1, 3, 16, 16>}, {transform_indices = @transform_2, window_bounds = array<i64: 288>}, {transform_indices = @transform_3, window_bounds = array<i64: 8>}, {transform_indices = @transform_4, window_bounds = array<i64: 8>}, {transform_indices = @transform_5, window_bounds = array<i64: 1>}, {transform_indices = @transform_6, window_bounds = array<i64: 1, 3, 16, 16>}]} {
    %cst = arith.constant 0.000000e+00 : f32
    %0 = vector.broadcast %cst : f32 to vector<4x18x18xf32>
    %c0 = arith.constant 0 : index
    %c0_0 = arith.constant 0 : index
    %c0_1 = arith.constant 0 : index
    %1 = vector.load %arg8[%c0, %c0_0, %c0_1] : memref<4x18x18xf32, #tpu.memory_space<vmem>>, vector<4x18x18xf32>
    tpu.vector_store %arg8[%c0, %c0_0, %c0_1], %0 {strides = array<i32>} : memref<4x18x18xf32, #tpu.memory_space<vmem>>, vector<4x18x18xf32>,
    %c0_2 = arith.constant 0 : index
    %c0_3 = arith.constant 0 : index
    %c0_4 = arith.constant 0 : index
    %c0_5 = arith.constant 0 : index
    %2 = vector.load %arg1[%c0_2, %c0_3, %c0_4, %c0_5] : memref<1x1x16x16xf32, #tpu.memory_space<vmem>>, vector<1x1x16x16xf32>
    %3 = vector.shape_cast %2 : vector<1x1x16x16xf32> to vector<1x16x16xf32>
    %c0_6 = arith.constant 0 : index
    %c1 = arith.constant 1 : index
    %c1_7 = arith.constant 1 : index
    %4 = vector.load %arg8[%c0_6, %c1, %c1_7] : memref<4x18x18xf32, #tpu.memory_space<vmem>>, vector<1x16x16xf32>
    tpu.vector_store %arg8[%c0_6, %c1, %c1_7], %3 {strides = array<i32>} : memref<4x18x18xf32, #tpu.memory_space<vmem>>, vector<1x16x16xf32>,
    %c0_8 = arith.constant 0 : index
    %c0_9 = arith.constant 0 : index
    %c0_10 = arith.constant 0 : index
    %c0_11 = arith.constant 0 : index
    %5 = vector.load %arg2[%c0_8, %c0_9, %c0_10, %c0_11] : memref<1x3x16x16xf32, #tpu.memory_space<vmem>>, vector<1x3x16x16xf32>
    %6 = vector.shape_cast %5 : vector<1x3x16x16xf32> to vector<3x16x16xf32>
    %c1_12 = arith.constant 1 : index
    %c1_13 = arith.constant 1 : index
    %c1_14 = arith.constant 1 : index
    %7 = vector.load %arg8[%c1_12, %c1_13, %c1_14] : memref<4x18x18xf32, #tpu.memory_space<vmem>>, vector<3x16x16xf32>
    tpu.vector_store %arg8[%c1_12, %c1_13, %c1_14], %6 {strides = array<i32>} : memref<4x18x18xf32, #tpu.memory_space<vmem>>, vector<3x16x16xf32>,
    %cst_15 = arith.constant 0.000000e+00 : f32
    %8 = vector.broadcast %cst_15 : f32 to vector<16x16xf32>
    %cst_16 = arith.constant 0.000000e+00 : f32
    %9 = vector.broadcast %cst_16 : f32 to vector<16x16xf32>
    %cst_17 = arith.constant 0.000000e+00 : f32
    %10 = vector.broadcast %cst_17 : f32 to vector<16x16xf32>
    %cst_18 = arith.constant 0.000000e+00 : f32
    %11 = vector.broadcast %cst_18 : f32 to vector<16x16xf32>
    %cst_19 = arith.constant 0.000000e+00 : f32
    %12 = vector.broadcast %cst_19 : f32 to vector<16x16xf32>
    %cst_20 = arith.constant 0.000000e+00 : f32
    %13 = vector.broadcast %cst_20 : f32 to vector<16x16xf32>
    %cst_21 = arith.constant 0.000000e+00 : f32
    %14 = vector.broadcast %cst_21 : f32 to vector<16x16xf32>
    %cst_22 = arith.constant 0.000000e+00 : f32
    %15 = vector.broadcast %cst_22 : f32 to vector<16x16xf32>
    %c0_23 = arith.constant 0 : index
    %c0_24 = arith.constant 0 : index
    %c0_25 = arith.constant 0 : index
    %16 = vector.load %arg8[%c0_23, %c0_24, %c0_25] : memref<4x18x18xf32, #tpu.memory_space<vmem>>, vector<1x16x16xf32>
    %17 = vector.shape_cast %16 : vector<1x16x16xf32> to vector<16x16xf32>
    %c0_26 = arith.constant 0 : index
    %18 = memref.load %arg3[%c0_26] : memref<288xf32, #tpu.memory_space<smem>>
    %19 = vector.broadcast %18 : f32 to vector<16x16xf32>
    %20 = arith.mulf %19, %17 : vector<16x16xf32>
    %21 = arith.addf %8, %20 : vector<16x16xf32>
    %c36 = arith.constant 36 : index
    %22 = memref.load %arg3[%c36] : memref<288xf32, #tpu.memory_space<smem>>
    %23 = vector.broadcast %22 : f32 to vector<16x16xf32>
    %24 = arith.mulf %23, %17 : vector<16x16xf32>
    %25 = arith.addf %9, %24 : vector<16x16xf32>
    %c72 = arith.constant 72 : index
    %26 = memref.load %arg3[%c72] : memref<288xf32, #tpu.memory_space<smem>>
    %27 = vector.broadcast %26 : f32 to vector<16x16xf32>
    %28 = arith.mulf %27, %17 : vector<16x16xf32>
    %29 = arith.addf %10, %28 : vector<16x16xf32>
    %c108 = arith.constant 108 : index
    %30 = memref.load %arg3[%c108] : memref<288xf32, #tpu.memory_space<smem>>
    %31 = vector.broadcast %30 : f32 to vector<16x16xf32>
    %32 = arith.mulf %31, %17 : vector<16x16xf32>
    %33 = arith.addf %11, %32 : vector<16x16xf32>
    %c144 = arith.constant 144 : index
    %34 = memref.load %arg3[%c144] : memref<288xf32, #tpu.memory_space<smem>>
    %35 = vector.broadcast %34 : f32 to vector<16x16xf32>
    %36 = arith.mulf %35, %17 : vector<16x16xf32>
    %37 = arith.addf %12, %36 : vector<16x16xf32>
    %c180 = arith.constant 180 : index
    %38 = memref.load %arg3[%c180] : memref<288xf32, #tpu.memory_space<smem>>
    %39 = vector.broadcast %38 : f32 to vector<16x16xf32>
    %40 = arith.mulf %39, %17 : vector<16x16xf32>
    %41 = arith.addf %13, %40 : vector<16x16xf32>
    %c216 = arith.constant 216 : index
    %42 = memref.load %arg3[%c216] : memref<288xf32, #tpu.memory_space<smem>>
    %43 = vector.broadcast %42 : f32 to vector<16x16xf32>
    %44 = arith.mulf %43, %17 : vector<16x16xf32>
    %45 = arith.addf %14, %44 : vector<16x16xf32>
    %c252 = arith.constant 252 : index
    %46 = memref.load %arg3[%c252] : memref<288xf32, #tpu.memory_space<smem>>
    %47 = vector.broadcast %46 : f32 to vector<16x16xf32>
    %48 = arith.mulf %47, %17 : vector<16x16xf32>
    %49 = arith.addf %15, %48 : vector<16x16xf32>
    %c0_27 = arith.constant 0 : index
    %c0_28 = arith.constant 0 : index
    %c1_29 = arith.constant 1 : index
    %50 = vector.load %arg8[%c0_27, %c0_28, %c1_29] : memref<4x18x18xf32, #tpu.memory_space<vmem>>, vector<1x16x16xf32>
    %51 = vector.shape_cast %50 : vector<1x16x16xf32> to vector<16x16xf32>
    %c1_30 = arith.constant 1 : index
    %52 = memref.load %arg3[%c1_30] : memref<288xf32, #tpu.memory_space<smem>>
    %53 = vector.broadcast %52 : f32 to vector<16x16xf32>
    %54 = arith.mulf %53, %51 : vector<16x16xf32>
    %55 = arith.addf %21, %54 : vector<16x16xf32>
    %c37 = arith.constant 37 : index
    %56 = memref.load %arg3[%c37] : memref<288xf32, #tpu.memory_space<smem>>
    %57 = vector.broadcast %56 : f32 to vector<16x16xf32>
    %58 = arith.mulf %57, %51 : vector<16x16xf32>
    %59 = arith.addf %25, %58 : vector<16x16xf32>
    %c73 = arith.constant 73 : index
    %60 = memref.load %arg3[%c73] : memref<288xf32, #tpu.memory_space<smem>>
    %61 = vector.broadcast %60 : f32 to vector<16x16xf32>
    %62 = arith.mulf %61, %51 : vector<16x16xf32>
    %63 = arith.addf %29, %62 : vector<16x16xf32>
    %c109 = arith.constant 109 : index
    %64 = memref.load %arg3[%c109] : memref<288xf32, #tpu.memory_space<smem>>
    %65 = vector.broadcast %64 : f32 to vector<16x16xf32>
    %66 = arith.mulf %65, %51 : vector<16x16xf32>
    %67 = arith.addf %33, %66 : vector<16x16xf32>
    %c145 = arith.constant 145 : index
    %68 = memref.load %arg3[%c145] : memref<288xf32, #tpu.memory_space<smem>>
    %69 = vector.broadcast %68 : f32 to vector<16x16xf32>
    %70 = arith.mulf %69, %51 : vector<16x16xf32>
    %71 = arith.addf %37, %70 : vector<16x16xf32>
    %c181 = arith.constant 181 : index
    %72 = memref.load %arg3[%c181] : memref<288xf32, #tpu.memory_space<smem>>
    %73 = vector.broadcast %72 : f32 to vector<16x16xf32>
    %74 = arith.mulf %73, %51 : vector<16x16xf32>
    %75 = arith.addf %41, %74 : vector<16x16xf32>
    %c217 = arith.constant 217 : index
    %76 = memref.load %arg3[%c217] : memref<288xf32, #tpu.memory_space<smem>>
    %77 = vector.broadcast %76 : f32 to vector<16x16xf32>
    %78 = arith.mulf %77, %51 : vector<16x16xf32>
    %79 = arith.addf %45, %78 : vector<16x16xf32>
    %c253 = arith.constant 253 : index
    %80 = memref.load %arg3[%c253] : memref<288xf32, #tpu.memory_space<smem>>
    %81 = vector.broadcast %80 : f32 to vector<16x16xf32>
    %82 = arith.mulf %81, %51 : vector<16x16xf32>
    %83 = arith.addf %49, %82 : vector<16x16xf32>
    %c0_31 = arith.constant 0 : index
    %c0_32 = arith.constant 0 : index
    %c2 = arith.constant 2 : index
    %84 = vector.load %arg8[%c0_31, %c0_32, %c2] : memref<4x18x18xf32, #tpu.memory_space<vmem>>, vector<1x16x16xf32>
    %85 = vector.shape_cast %84 : vector<1x16x16xf32> to vector<16x16xf32>
    %c2_33 = arith.constant 2 : index
    %86 = memref.load %arg3[%c2_33] : memref<288xf32, #tpu.memory_space<smem>>
    %87 = vector.broadcast %86 : f32 to vector<16x16xf32>
    %88 = arith.mulf %87, %85 : vector<16x16xf32>
    %89 = arith.addf %55, %88 : vector<16x16xf32>
    %c38 = arith.constant 38 : index
    %90 = memref.load %arg3[%c38] : memref<288xf32, #tpu.memory_space<smem>>
    %91 = vector.broadcast %90 : f32 to vector<16x16xf32>
    %92 = arith.mulf %91, %85 : vector<16x16xf32>
    %93 = arith.addf %59, %92 : vector<16x16xf32>
    %c74 = arith.constant 74 : index
    %94 = memref.load %arg3[%c74] : memref<288xf32, #tpu.memory_space<smem>>
    %95 = vector.broadcast %94 : f32 to vector<16x16xf32>
    %96 = arith.mulf %95, %85 : vector<16x16xf32>
    %97 = arith.addf %63, %96 : vector<16x16xf32>
    %c110 = arith.constant 110 : index
    %98 = memref.load %arg3[%c110] : memref<288xf32, #tpu.memory_space<smem>>
    %99 = vector.broadcast %98 : f32 to vector<16x16xf32>
    %100 = arith.mulf %99, %85 : vector<16x16xf32>
    %101 = arith.addf %67, %100 : vector<16x16xf32>
    %c146 = arith.constant 146 : index
    %102 = memref.load %arg3[%c146] : memref<288xf32, #tpu.memory_space<smem>>
    %103 = vector.broadcast %102 : f32 to vector<16x16xf32>
    %104 = arith.mulf %103, %85 : vector<16x16xf32>
    %105 = arith.addf %71, %104 : vector<16x16xf32>
    %c182 = arith.constant 182 : index
    %106 = memref.load %arg3[%c182] : memref<288xf32, #tpu.memory_space<smem>>
    %107 = vector.broadcast %106 : f32 to vector<16x16xf32>
    %108 = arith.mulf %107, %85 : vector<16x16xf32>
    %109 = arith.addf %75, %108 : vector<16x16xf32>
    %c218 = arith.constant 218 : index
    %110 = memref.load %arg3[%c218] : memref<288xf32, #tpu.memory_space<smem>>
    %111 = vector.broadcast %110 : f32 to vector<16x16xf32>
    %112 = arith.mulf %111, %85 : vector<16x16xf32>
    %113 = arith.addf %79, %112 : vector<16x16xf32>
    %c254 = arith.constant 254 : index
    %114 = memref.load %arg3[%c254] : memref<288xf32, #tpu.memory_space<smem>>
    %115 = vector.broadcast %114 : f32 to vector<16x16xf32>
    %116 = arith.mulf %115, %85 : vector<16x16xf32>
    %117 = arith.addf %83, %116 : vector<16x16xf32>
    %c0_34 = arith.constant 0 : index
    %c1_35 = arith.constant 1 : index
    %c0_36 = arith.constant 0 : index
    %118 = vector.load %arg8[%c0_34, %c1_35, %c0_36] : memref<4x18x18xf32, #tpu.memory_space<vmem>>, vector<1x16x16xf32>
    %119 = vector.shape_cast %118 : vector<1x16x16xf32> to vector<16x16xf32>
    %c3 = arith.constant 3 : index
    %120 = memref.load %arg3[%c3] : memref<288xf32, #tpu.memory_space<smem>>
    %121 = vector.broadcast %120 : f32 to vector<16x16xf32>
    %122 = arith.mulf %121, %119 : vector<16x16xf32>
    %123 = arith.addf %89, %122 : vector<16x16xf32>
    %c39 = arith.constant 39 : index
    %124 = memref.load %arg3[%c39] : memref<288xf32, #tpu.memory_space<smem>>
    %125 = vector.broadcast %124 : f32 to vector<16x16xf32>
    %126 = arith.mulf %125, %119 : vector<16x16xf32>
    %127 = arith.addf %93, %126 : vector<16x16xf32>
    %c75 = arith.constant 75 : index
    %128 = memref.load %arg3[%c75] : memref<288xf32, #tpu.memory_space<smem>>
    %129 = vector.broadcast %128 : f32 to vector<16x16xf32>
    %130 = arith.mulf %129, %119 : vector<16x16xf32>
    %131 = arith.addf %97, %130 : vector<16x16xf32>
    %c111 = arith.constant 111 : index
    %132 = memref.load %arg3[%c111] : memref<288xf32, #tpu.memory_space<smem>>
    %133 = vector.broadcast %132 : f32 to vector<16x16xf32>
    %134 = arith.mulf %133, %119 : vector<16x16xf32>
    %135 = arith.addf %101, %134 : vector<16x16xf32>
    %c147 = arith.constant 147 : index
    %136 = memref.load %arg3[%c147] : memref<288xf32, #tpu.memory_space<smem>>
    %137 = vector.broadcast %136 : f32 to vector<16x16xf32>
    %138 = arith.mulf %137, %119 : vector<16x16xf32>
    %139 = arith.addf %105, %138 : vector<16x16xf32>
    %c183 = arith.constant 183 : index
    %140 = memref.load %arg3[%c183] : memref<288xf32, #tpu.memory_space<smem>>
    %141 = vector.broadcast %140 : f32 to vector<16x16xf32>
    %142 = arith.mulf %141, %119 : vector<16x16xf32>
    %143 = arith.addf %109, %142 : vector<16x16xf32>
    %c219 = arith.constant 219 : index
    %144 = memref.load %arg3[%c219] : memref<288xf32, #tpu.memory_space<smem>>
    %145 = vector.broadcast %144 : f32 to vector<16x16xf32>
    %146 = arith.mulf %145, %119 : vector<16x16xf32>
    %147 = arith.addf %113, %146 : vector<16x16xf32>
    %c255 = arith.constant 255 : index
    %148 = memref.load %arg3[%c255] : memref<288xf32, #tpu.memory_space<smem>>
    %149 = vector.broadcast %148 : f32 to vector<16x16xf32>
    %150 = arith.mulf %149, %119 : vector<16x16xf32>
    %151 = arith.addf %117, %150 : vector<16x16xf32>
    %c0_37 = arith.constant 0 : index
    %c1_38 = arith.constant 1 : index
    %c1_39 = arith.constant 1 : index
    %152 = vector.load %arg8[%c0_37, %c1_38, %c1_39] : memref<4x18x18xf32, #tpu.memory_space<vmem>>, vector<1x16x16xf32>
    %153 = vector.shape_cast %152 : vector<1x16x16xf32> to vector<16x16xf32>
    %c4 = arith.constant 4 : index
    %154 = memref.load %arg3[%c4] : memref<288xf32, #tpu.memory_space<smem>>
    %155 = vector.broadcast %154 : f32 to vector<16x16xf32>
    %156 = arith.mulf %155, %153 : vector<16x16xf32>
    %157 = arith.addf %123, %156 : vector<16x16xf32>
    %c40 = arith.constant 40 : index
    %158 = memref.load %arg3[%c40] : memref<288xf32, #tpu.memory_space<smem>>
    %159 = vector.broadcast %158 : f32 to vector<16x16xf32>
    %160 = arith.mulf %159, %153 : vector<16x16xf32>
    %161 = arith.addf %127, %160 : vector<16x16xf32>
    %c76 = arith.constant 76 : index
    %162 = memref.load %arg3[%c76] : memref<288xf32, #tpu.memory_space<smem>>
    %163 = vector.broadcast %162 : f32 to vector<16x16xf32>
    %164 = arith.mulf %163, %153 : vector<16x16xf32>
    %165 = arith.addf %131, %164 : vector<16x16xf32>
    %c112 = arith.constant 112 : index
    %166 = memref.load %arg3[%c112] : memref<288xf32, #tpu.memory_space<smem>>
    %167 = vector.broadcast %166 : f32 to vector<16x16xf32>
    %168 = arith.mulf %167, %153 : vector<16x16xf32>
    %169 = arith.addf %135, %168 : vector<16x16xf32>
    %c148 = arith.constant 148 : index
    %170 = memref.load %arg3[%c148] : memref<288xf32, #tpu.memory_space<smem>>
    %171 = vector.broadcast %170 : f32 to vector<16x16xf32>
    %172 = arith.mulf %171, %153 : vector<16x16xf32>
    %173 = arith.addf %139, %172 : vector<16x16xf32>
    %c184 = arith.constant 184 : index
    %174 = memref.load %arg3[%c184] : memref<288xf32, #tpu.memory_space<smem>>
    %175 = vector.broadcast %174 : f32 to vector<16x16xf32>
    %176 = arith.mulf %175, %153 : vector<16x16xf32>
    %177 = arith.addf %143, %176 : vector<16x16xf32>
    %c220 = arith.constant 220 : index
    %178 = memref.load %arg3[%c220] : memref<288xf32, #tpu.memory_space<smem>>
    %179 = vector.broadcast %178 : f32 to vector<16x16xf32>
    %180 = arith.mulf %179, %153 : vector<16x16xf32>
    %181 = arith.addf %147, %180 : vector<16x16xf32>
    %c256 = arith.constant 256 : index
    %182 = memref.load %arg3[%c256] : memref<288xf32, #tpu.memory_space<smem>>
    %183 = vector.broadcast %182 : f32 to vector<16x16xf32>
    %184 = arith.mulf %183, %153 : vector<16x16xf32>
    %185 = arith.addf %151, %184 : vector<16x16xf32>
    %c0_40 = arith.constant 0 : index
    %c1_41 = arith.constant 1 : index
    %c2_42 = arith.constant 2 : index
    %186 = vector.load %arg8[%c0_40, %c1_41, %c2_42] : memref<4x18x18xf32, #tpu.memory_space<vmem>>, vector<1x16x16xf32>
    %187 = vector.shape_cast %186 : vector<1x16x16xf32> to vector<16x16xf32>
    %c5 = arith.constant 5 : index
    %188 = memref.load %arg3[%c5] : memref<288xf32, #tpu.memory_space<smem>>
    %189 = vector.broadcast %188 : f32 to vector<16x16xf32>
    %190 = arith.mulf %189, %187 : vector<16x16xf32>
    %191 = arith.addf %157, %190 : vector<16x16xf32>
    %c41 = arith.constant 41 : index
    %192 = memref.load %arg3[%c41] : memref<288xf32, #tpu.memory_space<smem>>
    %193 = vector.broadcast %192 : f32 to vector<16x16xf32>
    %194 = arith.mulf %193, %187 : vector<16x16xf32>
    %195 = arith.addf %161, %194 : vector<16x16xf32>
    %c77 = arith.constant 77 : index
    %196 = memref.load %arg3[%c77] : memref<288xf32, #tpu.memory_space<smem>>
    %197 = vector.broadcast %196 : f32 to vector<16x16xf32>
    %198 = arith.mulf %197, %187 : vector<16x16xf32>
    %199 = arith.addf %165, %198 : vector<16x16xf32>
    %c113 = arith.constant 113 : index
    %200 = memref.load %arg3[%c113] : memref<288xf32, #tpu.memory_space<smem>>
    %201 = vector.broadcast %200 : f32 to vector<16x16xf32>
    %202 = arith.mulf %201, %187 : vector<16x16xf32>
    %203 = arith.addf %169, %202 : vector<16x16xf32>
    %c149 = arith.constant 149 : index
    %204 = memref.load %arg3[%c149] : memref<288xf32, #tpu.memory_space<smem>>
    %205 = vector.broadcast %204 : f32 to vector<16x16xf32>
    %206 = arith.mulf %205, %187 : vector<16x16xf32>
    %207 = arith.addf %173, %206 : vector<16x16xf32>
    %c185 = arith.constant 185 : index
    %208 = memref.load %arg3[%c185] : memref<288xf32, #tpu.memory_space<smem>>
    %209 = vector.broadcast %208 : f32 to vector<16x16xf32>
    %210 = arith.mulf %209, %187 : vector<16x16xf32>
    %211 = arith.addf %177, %210 : vector<16x16xf32>
    %c221 = arith.constant 221 : index
    %212 = memref.load %arg3[%c221] : memref<288xf32, #tpu.memory_space<smem>>
    %213 = vector.broadcast %212 : f32 to vector<16x16xf32>
    %214 = arith.mulf %213, %187 : vector<16x16xf32>
    %215 = arith.addf %181, %214 : vector<16x16xf32>
    %c257 = arith.constant 257 : index
    %216 = memref.load %arg3[%c257] : memref<288xf32, #tpu.memory_space<smem>>
    %217 = vector.broadcast %216 : f32 to vector<16x16xf32>
    %218 = arith.mulf %217, %187 : vector<16x16xf32>
    %219 = arith.addf %185, %218 : vector<16x16xf32>
    %c0_43 = arith.constant 0 : index
    %c2_44 = arith.constant 2 : index
    %c0_45 = arith.constant 0 : index
    %220 = vector.load %arg8[%c0_43, %c2_44, %c0_45] : memref<4x18x18xf32, #tpu.memory_space<vmem>>, vector<1x16x16xf32>
    %221 = vector.shape_cast %220 : vector<1x16x16xf32> to vector<16x16xf32>
    %c6 = arith.constant 6 : index
    %222 = memref.load %arg3[%c6] : memref<288xf32, #tpu.memory_space<smem>>
    %223 = vector.broadcast %222 : f32 to vector<16x16xf32>
    %224 = arith.mulf %223, %221 : vector<16x16xf32>
    %225 = arith.addf %191, %224 : vector<16x16xf32>
    %c42 = arith.constant 42 : index
    %226 = memref.load %arg3[%c42] : memref<288xf32, #tpu.memory_space<smem>>
    %227 = vector.broadcast %226 : f32 to vector<16x16xf32>
    %228 = arith.mulf %227, %221 : vector<16x16xf32>
    %229 = arith.addf %195, %228 : vector<16x16xf32>
    %c78 = arith.constant 78 : index
    %230 = memref.load %arg3[%c78] : memref<288xf32, #tpu.memory_space<smem>>
    %231 = vector.broadcast %230 : f32 to vector<16x16xf32>
    %232 = arith.mulf %231, %221 : vector<16x16xf32>
    %233 = arith.addf %199, %232 : vector<16x16xf32>
    %c114 = arith.constant 114 : index
    %234 = memref.load %arg3[%c114] : memref<288xf32, #tpu.memory_space<smem>>
    %235 = vector.broadcast %234 : f32 to vector<16x16xf32>
    %236 = arith.mulf %235, %221 : vector<16x16xf32>
    %237 = arith.addf %203, %236 : vector<16x16xf32>
    %c150 = arith.constant 150 : index
    %238 = memref.load %arg3[%c150] : memref<288xf32, #tpu.memory_space<smem>>
    %239 = vector.broadcast %238 : f32 to vector<16x16xf32>
    %240 = arith.mulf %239, %221 : vector<16x16xf32>
    %241 = arith.addf %207, %240 : vector<16x16xf32>
    %c186 = arith.constant 186 : index
    %242 = memref.load %arg3[%c186] : memref<288xf32, #tpu.memory_space<smem>>
    %243 = vector.broadcast %242 : f32 to vector<16x16xf32>
    %244 = arith.mulf %243, %221 : vector<16x16xf32>
    %245 = arith.addf %211, %244 : vector<16x16xf32>
    %c222 = arith.constant 222 : index
    %246 = memref.load %arg3[%c222] : memref<288xf32, #tpu.memory_space<smem>>
    %247 = vector.broadcast %246 : f32 to vector<16x16xf32>
    %248 = arith.mulf %247, %221 : vector<16x16xf32>
    %249 = arith.addf %215, %248 : vector<16x16xf32>
    %c258 = arith.constant 258 : index
    %250 = memref.load %arg3[%c258] : memref<288xf32, #tpu.memory_space<smem>>
    %251 = vector.broadcast %250 : f32 to vector<16x16xf32>
    %252 = arith.mulf %251, %221 : vector<16x16xf32>
    %253 = arith.addf %219, %252 : vector<16x16xf32>
    %c0_46 = arith.constant 0 : index
    %c2_47 = arith.constant 2 : index
    %c1_48 = arith.constant 1 : index
    %254 = vector.load %arg8[%c0_46, %c2_47, %c1_48] : memref<4x18x18xf32, #tpu.memory_space<vmem>>, vector<1x16x16xf32>
    %255 = vector.shape_cast %254 : vector<1x16x16xf32> to vector<16x16xf32>
    %c7 = arith.constant 7 : index
    %256 = memref.load %arg3[%c7] : memref<288xf32, #tpu.memory_space<smem>>
    %257 = vector.broadcast %256 : f32 to vector<16x16xf32>
    %258 = arith.mulf %257, %255 : vector<16x16xf32>
    %259 = arith.addf %225, %258 : vector<16x16xf32>
    %c43 = arith.constant 43 : index
    %260 = memref.load %arg3[%c43] : memref<288xf32, #tpu.memory_space<smem>>
    %261 = vector.broadcast %260 : f32 to vector<16x16xf32>
    %262 = arith.mulf %261, %255 : vector<16x16xf32>
    %263 = arith.addf %229, %262 : vector<16x16xf32>
    %c79 = arith.constant 79 : index
    %264 = memref.load %arg3[%c79] : memref<288xf32, #tpu.memory_space<smem>>
    %265 = vector.broadcast %264 : f32 to vector<16x16xf32>
    %266 = arith.mulf %265, %255 : vector<16x16xf32>
    %267 = arith.addf %233, %266 : vector<16x16xf32>
    %c115 = arith.constant 115 : index
    %268 = memref.load %arg3[%c115] : memref<288xf32, #tpu.memory_space<smem>>
    %269 = vector.broadcast %268 : f32 to vector<16x16xf32>
    %270 = arith.mulf %269, %255 : vector<16x16xf32>
    %271 = arith.addf %237, %270 : vector<16x16xf32>
    %c151 = arith.constant 151 : index
    %272 = memref.load %arg3[%c151] : memref<288xf32, #tpu.memory_space<smem>>
    %273 = vector.broadcast %272 : f32 to vector<16x16xf32>
    %274 = arith.mulf %273, %255 : vector<16x16xf32>
    %275 = arith.addf %241, %274 : vector<16x16xf32>
    %c187 = arith.constant 187 : index
    %276 = memref.load %arg3[%c187] : memref<288xf32, #tpu.memory_space<smem>>
    %277 = vector.broadcast %276 : f32 to vector<16x16xf32>
    %278 = arith.mulf %277, %255 : vector<16x16xf32>
    %279 = arith.addf %245, %278 : vector<16x16xf32>
    %c223 = arith.constant 223 : index
    %280 = memref.load %arg3[%c223] : memref<288xf32, #tpu.memory_space<smem>>
    %281 = vector.broadcast %280 : f32 to vector<16x16xf32>
    %282 = arith.mulf %281, %255 : vector<16x16xf32>
    %283 = arith.addf %249, %282 : vector<16x16xf32>
    %c259 = arith.constant 259 : index
    %284 = memref.load %arg3[%c259] : memref<288xf32, #tpu.memory_space<smem>>
    %285 = vector.broadcast %284 : f32 to vector<16x16xf32>
    %286 = arith.mulf %285, %255 : vector<16x16xf32>
    %287 = arith.addf %253, %286 : vector<16x16xf32>
    %c0_49 = arith.constant 0 : index
    %c2_50 = arith.constant 2 : index
    %c2_51 = arith.constant 2 : index
    %288 = vector.load %arg8[%c0_49, %c2_50, %c2_51] : memref<4x18x18xf32, #tpu.memory_space<vmem>>, vector<1x16x16xf32>
    %289 = vector.shape_cast %288 : vector<1x16x16xf32> to vector<16x16xf32>
    %c8 = arith.constant 8 : index
    %290 = memref.load %arg3[%c8] : memref<288xf32, #tpu.memory_space<smem>>
    %291 = vector.broadcast %290 : f32 to vector<16x16xf32>
    %292 = arith.mulf %291, %289 : vector<16x16xf32>
    %293 = arith.addf %259, %292 : vector<16x16xf32>
    %c44 = arith.constant 44 : index
    %294 = memref.load %arg3[%c44] : memref<288xf32, #tpu.memory_space<smem>>
    %295 = vector.broadcast %294 : f32 to vector<16x16xf32>
    %296 = arith.mulf %295, %289 : vector<16x16xf32>
    %297 = arith.addf %263, %296 : vector<16x16xf32>
    %c80 = arith.constant 80 : index
    %298 = memref.load %arg3[%c80] : memref<288xf32, #tpu.memory_space<smem>>
    %299 = vector.broadcast %298 : f32 to vector<16x16xf32>
    %300 = arith.mulf %299, %289 : vector<16x16xf32>
    %301 = arith.addf %267, %300 : vector<16x16xf32>
    %c116 = arith.constant 116 : index
    %302 = memref.load %arg3[%c116] : memref<288xf32, #tpu.memory_space<smem>>
    %303 = vector.broadcast %302 : f32 to vector<16x16xf32>
    %304 = arith.mulf %303, %289 : vector<16x16xf32>
    %305 = arith.addf %271, %304 : vector<16x16xf32>
    %c152 = arith.constant 152 : index
    %306 = memref.load %arg3[%c152] : memref<288xf32, #tpu.memory_space<smem>>
    %307 = vector.broadcast %306 : f32 to vector<16x16xf32>
    %308 = arith.mulf %307, %289 : vector<16x16xf32>
    %309 = arith.addf %275, %308 : vector<16x16xf32>
    %c188 = arith.constant 188 : index
    %310 = memref.load %arg3[%c188] : memref<288xf32, #tpu.memory_space<smem>>
    %311 = vector.broadcast %310 : f32 to vector<16x16xf32>
    %312 = arith.mulf %311, %289 : vector<16x16xf32>
    %313 = arith.addf %279, %312 : vector<16x16xf32>
    %c224 = arith.constant 224 : index
    %314 = memref.load %arg3[%c224] : memref<288xf32, #tpu.memory_space<smem>>
    %315 = vector.broadcast %314 : f32 to vector<16x16xf32>
    %316 = arith.mulf %315, %289 : vector<16x16xf32>
    %317 = arith.addf %283, %316 : vector<16x16xf32>
    %c260 = arith.constant 260 : index
    %318 = memref.load %arg3[%c260] : memref<288xf32, #tpu.memory_space<smem>>
    %319 = vector.broadcast %318 : f32 to vector<16x16xf32>
    %320 = arith.mulf %319, %289 : vector<16x16xf32>
    %321 = arith.addf %287, %320 : vector<16x16xf32>
    %c1_52 = arith.constant 1 : index
    %c0_53 = arith.constant 0 : index
    %c0_54 = arith.constant 0 : index
    %322 = vector.load %arg8[%c1_52, %c0_53, %c0_54] : memref<4x18x18xf32, #tpu.memory_space<vmem>>, vector<1x16x16xf32>
    %323 = vector.shape_cast %322 : vector<1x16x16xf32> to vector<16x16xf32>
    %c9 = arith.constant 9 : index
    %324 = memref.load %arg3[%c9] : memref<288xf32, #tpu.memory_space<smem>>
    %325 = vector.broadcast %324 : f32 to vector<16x16xf32>
    %326 = arith.mulf %325, %323 : vector<16x16xf32>
    %327 = arith.addf %293, %326 : vector<16x16xf32>
    %c45 = arith.constant 45 : index
    %328 = memref.load %arg3[%c45] : memref<288xf32, #tpu.memory_space<smem>>
    %329 = vector.broadcast %328 : f32 to vector<16x16xf32>
    %330 = arith.mulf %329, %323 : vector<16x16xf32>
    %331 = arith.addf %297, %330 : vector<16x16xf32>
    %c81 = arith.constant 81 : index
    %332 = memref.load %arg3[%c81] : memref<288xf32, #tpu.memory_space<smem>>
    %333 = vector.broadcast %332 : f32 to vector<16x16xf32>
    %334 = arith.mulf %333, %323 : vector<16x16xf32>
    %335 = arith.addf %301, %334 : vector<16x16xf32>
    %c117 = arith.constant 117 : index
    %336 = memref.load %arg3[%c117] : memref<288xf32, #tpu.memory_space<smem>>
    %337 = vector.broadcast %336 : f32 to vector<16x16xf32>
    %338 = arith.mulf %337, %323 : vector<16x16xf32>
    %339 = arith.addf %305, %338 : vector<16x16xf32>
    %c153 = arith.constant 153 : index
    %340 = memref.load %arg3[%c153] : memref<288xf32, #tpu.memory_space<smem>>
    %341 = vector.broadcast %340 : f32 to vector<16x16xf32>
    %342 = arith.mulf %341, %323 : vector<16x16xf32>
    %343 = arith.addf %309, %342 : vector<16x16xf32>
    %c189 = arith.constant 189 : index
    %344 = memref.load %arg3[%c189] : memref<288xf32, #tpu.memory_space<smem>>
    %345 = vector.broadcast %344 : f32 to vector<16x16xf32>
    %346 = arith.mulf %345, %323 : vector<16x16xf32>
    %347 = arith.addf %313, %346 : vector<16x16xf32>
    %c225 = arith.constant 225 : index
    %348 = memref.load %arg3[%c225] : memref<288xf32, #tpu.memory_space<smem>>
    %349 = vector.broadcast %348 : f32 to vector<16x16xf32>
    %350 = arith.mulf %349, %323 : vector<16x16xf32>
    %351 = arith.addf %317, %350 : vector<16x16xf32>
    %c261 = arith.constant 261 : index
    %352 = memref.load %arg3[%c261] : memref<288xf32, #tpu.memory_space<smem>>
    %353 = vector.broadcast %352 : f32 to vector<16x16xf32>
    %354 = arith.mulf %353, %323 : vector<16x16xf32>
    %355 = arith.addf %321, %354 : vector<16x16xf32>
    %c1_55 = arith.constant 1 : index
    %c0_56 = arith.constant 0 : index
    %c1_57 = arith.constant 1 : index
    %356 = vector.load %arg8[%c1_55, %c0_56, %c1_57] : memref<4x18x18xf32, #tpu.memory_space<vmem>>, vector<1x16x16xf32>
    %357 = vector.shape_cast %356 : vector<1x16x16xf32> to vector<16x16xf32>
    %c10 = arith.constant 10 : index
    %358 = memref.load %arg3[%c10] : memref<288xf32, #tpu.memory_space<smem>>
    %359 = vector.broadcast %358 : f32 to vector<16x16xf32>
    %360 = arith.mulf %359, %357 : vector<16x16xf32>
    %361 = arith.addf %327, %360 : vector<16x16xf32>
    %c46 = arith.constant 46 : index
    %362 = memref.load %arg3[%c46] : memref<288xf32, #tpu.memory_space<smem>>
    %363 = vector.broadcast %362 : f32 to vector<16x16xf32>
    %364 = arith.mulf %363, %357 : vector<16x16xf32>
    %365 = arith.addf %331, %364 : vector<16x16xf32>
    %c82 = arith.constant 82 : index
    %366 = memref.load %arg3[%c82] : memref<288xf32, #tpu.memory_space<smem>>
    %367 = vector.broadcast %366 : f32 to vector<16x16xf32>
    %368 = arith.mulf %367, %357 : vector<16x16xf32>
    %369 = arith.addf %335, %368 : vector<16x16xf32>
    %c118 = arith.constant 118 : index
    %370 = memref.load %arg3[%c118] : memref<288xf32, #tpu.memory_space<smem>>
    %371 = vector.broadcast %370 : f32 to vector<16x16xf32>
    %372 = arith.mulf %371, %357 : vector<16x16xf32>
    %373 = arith.addf %339, %372 : vector<16x16xf32>
    %c154 = arith.constant 154 : index
    %374 = memref.load %arg3[%c154] : memref<288xf32, #tpu.memory_space<smem>>
    %375 = vector.broadcast %374 : f32 to vector<16x16xf32>
    %376 = arith.mulf %375, %357 : vector<16x16xf32>
    %377 = arith.addf %343, %376 : vector<16x16xf32>
    %c190 = arith.constant 190 : index
    %378 = memref.load %arg3[%c190] : memref<288xf32, #tpu.memory_space<smem>>
    %379 = vector.broadcast %378 : f32 to vector<16x16xf32>
    %380 = arith.mulf %379, %357 : vector<16x16xf32>
    %381 = arith.addf %347, %380 : vector<16x16xf32>
    %c226 = arith.constant 226 : index
    %382 = memref.load %arg3[%c226] : memref<288xf32, #tpu.memory_space<smem>>
    %383 = vector.broadcast %382 : f32 to vector<16x16xf32>
    %384 = arith.mulf %383, %357 : vector<16x16xf32>
    %385 = arith.addf %351, %384 : vector<16x16xf32>
    %c262 = arith.constant 262 : index
    %386 = memref.load %arg3[%c262] : memref<288xf32, #tpu.memory_space<smem>>
    %387 = vector.broadcast %386 : f32 to vector<16x16xf32>
    %388 = arith.mulf %387, %357 : vector<16x16xf32>
    %389 = arith.addf %355, %388 : vector<16x16xf32>
    %c1_58 = arith.constant 1 : index
    %c0_59 = arith.constant 0 : index
    %c2_60 = arith.constant 2 : index
    %390 = vector.load %arg8[%c1_58, %c0_59, %c2_60] : memref<4x18x18xf32, #tpu.memory_space<vmem>>, vector<1x16x16xf32>
    %391 = vector.shape_cast %390 : vector<1x16x16xf32> to vector<16x16xf32>
    %c11 = arith.constant 11 : index
    %392 = memref.load %arg3[%c11] : memref<288xf32, #tpu.memory_space<smem>>
    %393 = vector.broadcast %392 : f32 to vector<16x16xf32>
    %394 = arith.mulf %393, %391 : vector<16x16xf32>
    %395 = arith.addf %361, %394 : vector<16x16xf32>
    %c47 = arith.constant 47 : index
    %396 = memref.load %arg3[%c47] : memref<288xf32, #tpu.memory_space<smem>>
    %397 = vector.broadcast %396 : f32 to vector<16x16xf32>
    %398 = arith.mulf %397, %391 : vector<16x16xf32>
    %399 = arith.addf %365, %398 : vector<16x16xf32>
    %c83 = arith.constant 83 : index
    %400 = memref.load %arg3[%c83] : memref<288xf32, #tpu.memory_space<smem>>
    %401 = vector.broadcast %400 : f32 to vector<16x16xf32>
    %402 = arith.mulf %401, %391 : vector<16x16xf32>
    %403 = arith.addf %369, %402 : vector<16x16xf32>
    %c119 = arith.constant 119 : index
    %404 = memref.load %arg3[%c119] : memref<288xf32, #tpu.memory_space<smem>>
    %405 = vector.broadcast %404 : f32 to vector<16x16xf32>
    %406 = arith.mulf %405, %391 : vector<16x16xf32>
    %407 = arith.addf %373, %406 : vector<16x16xf32>
    %c155 = arith.constant 155 : index
    %408 = memref.load %arg3[%c155] : memref<288xf32, #tpu.memory_space<smem>>
    %409 = vector.broadcast %408 : f32 to vector<16x16xf32>
    %410 = arith.mulf %409, %391 : vector<16x16xf32>
    %411 = arith.addf %377, %410 : vector<16x16xf32>
    %c191 = arith.constant 191 : index
    %412 = memref.load %arg3[%c191] : memref<288xf32, #tpu.memory_space<smem>>
    %413 = vector.broadcast %412 : f32 to vector<16x16xf32>
    %414 = arith.mulf %413, %391 : vector<16x16xf32>
    %415 = arith.addf %381, %414 : vector<16x16xf32>
    %c227 = arith.constant 227 : index
    %416 = memref.load %arg3[%c227] : memref<288xf32, #tpu.memory_space<smem>>
    %417 = vector.broadcast %416 : f32 to vector<16x16xf32>
    %418 = arith.mulf %417, %391 : vector<16x16xf32>
    %419 = arith.addf %385, %418 : vector<16x16xf32>
    %c263 = arith.constant 263 : index
    %420 = memref.load %arg3[%c263] : memref<288xf32, #tpu.memory_space<smem>>
    %421 = vector.broadcast %420 : f32 to vector<16x16xf32>
    %422 = arith.mulf %421, %391 : vector<16x16xf32>
    %423 = arith.addf %389, %422 : vector<16x16xf32>
    %c1_61 = arith.constant 1 : index
    %c1_62 = arith.constant 1 : index
    %c0_63 = arith.constant 0 : index
    %424 = vector.load %arg8[%c1_61, %c1_62, %c0_63] : memref<4x18x18xf32, #tpu.memory_space<vmem>>, vector<1x16x16xf32>
    %425 = vector.shape_cast %424 : vector<1x16x16xf32> to vector<16x16xf32>
    %c12 = arith.constant 12 : index
    %426 = memref.load %arg3[%c12] : memref<288xf32, #tpu.memory_space<smem>>
    %427 = vector.broadcast %426 : f32 to vector<16x16xf32>
    %428 = arith.mulf %427, %425 : vector<16x16xf32>
    %429 = arith.addf %395, %428 : vector<16x16xf32>
    %c48 = arith.constant 48 : index
    %430 = memref.load %arg3[%c48] : memref<288xf32, #tpu.memory_space<smem>>
    %431 = vector.broadcast %430 : f32 to vector<16x16xf32>
    %432 = arith.mulf %431, %425 : vector<16x16xf32>
    %433 = arith.addf %399, %432 : vector<16x16xf32>
    %c84 = arith.constant 84 : index
    %434 = memref.load %arg3[%c84] : memref<288xf32, #tpu.memory_space<smem>>
    %435 = vector.broadcast %434 : f32 to vector<16x16xf32>
    %436 = arith.mulf %435, %425 : vector<16x16xf32>
    %437 = arith.addf %403, %436 : vector<16x16xf32>
    %c120 = arith.constant 120 : index
    %438 = memref.load %arg3[%c120] : memref<288xf32, #tpu.memory_space<smem>>
    %439 = vector.broadcast %438 : f32 to vector<16x16xf32>
    %440 = arith.mulf %439, %425 : vector<16x16xf32>
    %441 = arith.addf %407, %440 : vector<16x16xf32>
    %c156 = arith.constant 156 : index
    %442 = memref.load %arg3[%c156] : memref<288xf32, #tpu.memory_space<smem>>
    %443 = vector.broadcast %442 : f32 to vector<16x16xf32>
    %444 = arith.mulf %443, %425 : vector<16x16xf32>
    %445 = arith.addf %411, %444 : vector<16x16xf32>
    %c192 = arith.constant 192 : index
    %446 = memref.load %arg3[%c192] : memref<288xf32, #tpu.memory_space<smem>>
    %447 = vector.broadcast %446 : f32 to vector<16x16xf32>
    %448 = arith.mulf %447, %425 : vector<16x16xf32>
    %449 = arith.addf %415, %448 : vector<16x16xf32>
    %c228 = arith.constant 228 : index
    %450 = memref.load %arg3[%c228] : memref<288xf32, #tpu.memory_space<smem>>
    %451 = vector.broadcast %450 : f32 to vector<16x16xf32>
    %452 = arith.mulf %451, %425 : vector<16x16xf32>
    %453 = arith.addf %419, %452 : vector<16x16xf32>
    %c264 = arith.constant 264 : index
    %454 = memref.load %arg3[%c264] : memref<288xf32, #tpu.memory_space<smem>>
    %455 = vector.broadcast %454 : f32 to vector<16x16xf32>
    %456 = arith.mulf %455, %425 : vector<16x16xf32>
    %457 = arith.addf %423, %456 : vector<16x16xf32>
    %c1_64 = arith.constant 1 : index
    %c1_65 = arith.constant 1 : index
    %c1_66 = arith.constant 1 : index
    %458 = vector.load %arg8[%c1_64, %c1_65, %c1_66] : memref<4x18x18xf32, #tpu.memory_space<vmem>>, vector<1x16x16xf32>
    %459 = vector.shape_cast %458 : vector<1x16x16xf32> to vector<16x16xf32>
    %c13 = arith.constant 13 : index
    %460 = memref.load %arg3[%c13] : memref<288xf32, #tpu.memory_space<smem>>
    %461 = vector.broadcast %460 : f32 to vector<16x16xf32>
    %462 = arith.mulf %461, %459 : vector<16x16xf32>
    %463 = arith.addf %429, %462 : vector<16x16xf32>
    %c49 = arith.constant 49 : index
    %464 = memref.load %arg3[%c49] : memref<288xf32, #tpu.memory_space<smem>>
    %465 = vector.broadcast %464 : f32 to vector<16x16xf32>
    %466 = arith.mulf %465, %459 : vector<16x16xf32>
    %467 = arith.addf %433, %466 : vector<16x16xf32>
    %c85 = arith.constant 85 : index
    %468 = memref.load %arg3[%c85] : memref<288xf32, #tpu.memory_space<smem>>
    %469 = vector.broadcast %468 : f32 to vector<16x16xf32>
    %470 = arith.mulf %469, %459 : vector<16x16xf32>
    %471 = arith.addf %437, %470 : vector<16x16xf32>
    %c121 = arith.constant 121 : index
    %472 = memref.load %arg3[%c121] : memref<288xf32, #tpu.memory_space<smem>>
    %473 = vector.broadcast %472 : f32 to vector<16x16xf32>
    %474 = arith.mulf %473, %459 : vector<16x16xf32>
    %475 = arith.addf %441, %474 : vector<16x16xf32>
    %c157 = arith.constant 157 : index
    %476 = memref.load %arg3[%c157] : memref<288xf32, #tpu.memory_space<smem>>
    %477 = vector.broadcast %476 : f32 to vector<16x16xf32>
    %478 = arith.mulf %477, %459 : vector<16x16xf32>
    %479 = arith.addf %445, %478 : vector<16x16xf32>
    %c193 = arith.constant 193 : index
    %480 = memref.load %arg3[%c193] : memref<288xf32, #tpu.memory_space<smem>>
    %481 = vector.broadcast %480 : f32 to vector<16x16xf32>
    %482 = arith.mulf %481, %459 : vector<16x16xf32>
    %483 = arith.addf %449, %482 : vector<16x16xf32>
    %c229 = arith.constant 229 : index
    %484 = memref.load %arg3[%c229] : memref<288xf32, #tpu.memory_space<smem>>
    %485 = vector.broadcast %484 : f32 to vector<16x16xf32>
    %486 = arith.mulf %485, %459 : vector<16x16xf32>
    %487 = arith.addf %453, %486 : vector<16x16xf32>
    %c265 = arith.constant 265 : index
    %488 = memref.load %arg3[%c265] : memref<288xf32, #tpu.memory_space<smem>>
    %489 = vector.broadcast %488 : f32 to vector<16x16xf32>
    %490 = arith.mulf %489, %459 : vector<16x16xf32>
    %491 = arith.addf %457, %490 : vector<16x16xf32>
    %c1_67 = arith.constant 1 : index
    %c1_68 = arith.constant 1 : index
    %c2_69 = arith.constant 2 : index
    %492 = vector.load %arg8[%c1_67, %c1_68, %c2_69] : memref<4x18x18xf32, #tpu.memory_space<vmem>>, vector<1x16x16xf32>
    %493 = vector.shape_cast %492 : vector<1x16x16xf32> to vector<16x16xf32>
    %c14 = arith.constant 14 : index
    %494 = memref.load %arg3[%c14] : memref<288xf32, #tpu.memory_space<smem>>
    %495 = vector.broadcast %494 : f32 to vector<16x16xf32>
    %496 = arith.mulf %495, %493 : vector<16x16xf32>
    %497 = arith.addf %463, %496 : vector<16x16xf32>
    %c50 = arith.constant 50 : index
    %498 = memref.load %arg3[%c50] : memref<288xf32, #tpu.memory_space<smem>>
    %499 = vector.broadcast %498 : f32 to vector<16x16xf32>
    %500 = arith.mulf %499, %493 : vector<16x16xf32>
    %501 = arith.addf %467, %500 : vector<16x16xf32>
    %c86 = arith.constant 86 : index
    %502 = memref.load %arg3[%c86] : memref<288xf32, #tpu.memory_space<smem>>
    %503 = vector.broadcast %502 : f32 to vector<16x16xf32>
    %504 = arith.mulf %503, %493 : vector<16x16xf32>
    %505 = arith.addf %471, %504 : vector<16x16xf32>
    %c122 = arith.constant 122 : index
    %506 = memref.load %arg3[%c122] : memref<288xf32, #tpu.memory_space<smem>>
    %507 = vector.broadcast %506 : f32 to vector<16x16xf32>
    %508 = arith.mulf %507, %493 : vector<16x16xf32>
    %509 = arith.addf %475, %508 : vector<16x16xf32>
    %c158 = arith.constant 158 : index
    %510 = memref.load %arg3[%c158] : memref<288xf32, #tpu.memory_space<smem>>
    %511 = vector.broadcast %510 : f32 to vector<16x16xf32>
    %512 = arith.mulf %511, %493 : vector<16x16xf32>
    %513 = arith.addf %479, %512 : vector<16x16xf32>
    %c194 = arith.constant 194 : index
    %514 = memref.load %arg3[%c194] : memref<288xf32, #tpu.memory_space<smem>>
    %515 = vector.broadcast %514 : f32 to vector<16x16xf32>
    %516 = arith.mulf %515, %493 : vector<16x16xf32>
    %517 = arith.addf %483, %516 : vector<16x16xf32>
    %c230 = arith.constant 230 : index
    %518 = memref.load %arg3[%c230] : memref<288xf32, #tpu.memory_space<smem>>
    %519 = vector.broadcast %518 : f32 to vector<16x16xf32>
    %520 = arith.mulf %519, %493 : vector<16x16xf32>
    %521 = arith.addf %487, %520 : vector<16x16xf32>
    %c266 = arith.constant 266 : index
    %522 = memref.load %arg3[%c266] : memref<288xf32, #tpu.memory_space<smem>>
    %523 = vector.broadcast %522 : f32 to vector<16x16xf32>
    %524 = arith.mulf %523, %493 : vector<16x16xf32>
    %525 = arith.addf %491, %524 : vector<16x16xf32>
    %c1_70 = arith.constant 1 : index
    %c2_71 = arith.constant 2 : index
    %c0_72 = arith.constant 0 : index
    %526 = vector.load %arg8[%c1_70, %c2_71, %c0_72] : memref<4x18x18xf32, #tpu.memory_space<vmem>>, vector<1x16x16xf32>
    %527 = vector.shape_cast %526 : vector<1x16x16xf32> to vector<16x16xf32>
    %c15 = arith.constant 15 : index
    %528 = memref.load %arg3[%c15] : memref<288xf32, #tpu.memory_space<smem>>
    %529 = vector.broadcast %528 : f32 to vector<16x16xf32>
    %530 = arith.mulf %529, %527 : vector<16x16xf32>
    %531 = arith.addf %497, %530 : vector<16x16xf32>
    %c51 = arith.constant 51 : index
    %532 = memref.load %arg3[%c51] : memref<288xf32, #tpu.memory_space<smem>>
    %533 = vector.broadcast %532 : f32 to vector<16x16xf32>
    %534 = arith.mulf %533, %527 : vector<16x16xf32>
    %535 = arith.addf %501, %534 : vector<16x16xf32>
    %c87 = arith.constant 87 : index
    %536 = memref.load %arg3[%c87] : memref<288xf32, #tpu.memory_space<smem>>
    %537 = vector.broadcast %536 : f32 to vector<16x16xf32>
    %538 = arith.mulf %537, %527 : vector<16x16xf32>
    %539 = arith.addf %505, %538 : vector<16x16xf32>
    %c123 = arith.constant 123 : index
    %540 = memref.load %arg3[%c123] : memref<288xf32, #tpu.memory_space<smem>>
    %541 = vector.broadcast %540 : f32 to vector<16x16xf32>
    %542 = arith.mulf %541, %527 : vector<16x16xf32>
    %543 = arith.addf %509, %542 : vector<16x16xf32>
    %c159 = arith.constant 159 : index
    %544 = memref.load %arg3[%c159] : memref<288xf32, #tpu.memory_space<smem>>
    %545 = vector.broadcast %544 : f32 to vector<16x16xf32>
    %546 = arith.mulf %545, %527 : vector<16x16xf32>
    %547 = arith.addf %513, %546 : vector<16x16xf32>
    %c195 = arith.constant 195 : index
    %548 = memref.load %arg3[%c195] : memref<288xf32, #tpu.memory_space<smem>>
    %549 = vector.broadcast %548 : f32 to vector<16x16xf32>
    %550 = arith.mulf %549, %527 : vector<16x16xf32>
    %551 = arith.addf %517, %550 : vector<16x16xf32>
    %c231 = arith.constant 231 : index
    %552 = memref.load %arg3[%c231] : memref<288xf32, #tpu.memory_space<smem>>
    %553 = vector.broadcast %552 : f32 to vector<16x16xf32>
    %554 = arith.mulf %553, %527 : vector<16x16xf32>
    %555 = arith.addf %521, %554 : vector<16x16xf32>
    %c267 = arith.constant 267 : index
    %556 = memref.load %arg3[%c267] : memref<288xf32, #tpu.memory_space<smem>>
    %557 = vector.broadcast %556 : f32 to vector<16x16xf32>
    %558 = arith.mulf %557, %527 : vector<16x16xf32>
    %559 = arith.addf %525, %558 : vector<16x16xf32>
    %c1_73 = arith.constant 1 : index
    %c2_74 = arith.constant 2 : index
    %c1_75 = arith.constant 1 : index
    %560 = vector.load %arg8[%c1_73, %c2_74, %c1_75] : memref<4x18x18xf32, #tpu.memory_space<vmem>>, vector<1x16x16xf32>
    %561 = vector.shape_cast %560 : vector<1x16x16xf32> to vector<16x16xf32>
    %c16 = arith.constant 16 : index
    %562 = memref.load %arg3[%c16] : memref<288xf32, #tpu.memory_space<smem>>
    %563 = vector.broadcast %562 : f32 to vector<16x16xf32>
    %564 = arith.mulf %563, %561 : vector<16x16xf32>
    %565 = arith.addf %531, %564 : vector<16x16xf32>
    %c52 = arith.constant 52 : index
    %566 = memref.load %arg3[%c52] : memref<288xf32, #tpu.memory_space<smem>>
    %567 = vector.broadcast %566 : f32 to vector<16x16xf32>
    %568 = arith.mulf %567, %561 : vector<16x16xf32>
    %569 = arith.addf %535, %568 : vector<16x16xf32>
    %c88 = arith.constant 88 : index
    %570 = memref.load %arg3[%c88] : memref<288xf32, #tpu.memory_space<smem>>
    %571 = vector.broadcast %570 : f32 to vector<16x16xf32>
    %572 = arith.mulf %571, %561 : vector<16x16xf32>
    %573 = arith.addf %539, %572 : vector<16x16xf32>
    %c124 = arith.constant 124 : index
    %574 = memref.load %arg3[%c124] : memref<288xf32, #tpu.memory_space<smem>>
    %575 = vector.broadcast %574 : f32 to vector<16x16xf32>
    %576 = arith.mulf %575, %561 : vector<16x16xf32>
    %577 = arith.addf %543, %576 : vector<16x16xf32>
    %c160 = arith.constant 160 : index
    %578 = memref.load %arg3[%c160] : memref<288xf32, #tpu.memory_space<smem>>
    %579 = vector.broadcast %578 : f32 to vector<16x16xf32>
    %580 = arith.mulf %579, %561 : vector<16x16xf32>
    %581 = arith.addf %547, %580 : vector<16x16xf32>
    %c196 = arith.constant 196 : index
    %582 = memref.load %arg3[%c196] : memref<288xf32, #tpu.memory_space<smem>>
    %583 = vector.broadcast %582 : f32 to vector<16x16xf32>
    %584 = arith.mulf %583, %561 : vector<16x16xf32>
    %585 = arith.addf %551, %584 : vector<16x16xf32>
    %c232 = arith.constant 232 : index
    %586 = memref.load %arg3[%c232] : memref<288xf32, #tpu.memory_space<smem>>
    %587 = vector.broadcast %586 : f32 to vector<16x16xf32>
    %588 = arith.mulf %587, %561 : vector<16x16xf32>
    %589 = arith.addf %555, %588 : vector<16x16xf32>
    %c268 = arith.constant 268 : index
    %590 = memref.load %arg3[%c268] : memref<288xf32, #tpu.memory_space<smem>>
    %591 = vector.broadcast %590 : f32 to vector<16x16xf32>
    %592 = arith.mulf %591, %561 : vector<16x16xf32>
    %593 = arith.addf %559, %592 : vector<16x16xf32>
    %c1_76 = arith.constant 1 : index
    %c2_77 = arith.constant 2 : index
    %c2_78 = arith.constant 2 : index
    %594 = vector.load %arg8[%c1_76, %c2_77, %c2_78] : memref<4x18x18xf32, #tpu.memory_space<vmem>>, vector<1x16x16xf32>
    %595 = vector.shape_cast %594 : vector<1x16x16xf32> to vector<16x16xf32>
    %c17 = arith.constant 17 : index
    %596 = memref.load %arg3[%c17] : memref<288xf32, #tpu.memory_space<smem>>
    %597 = vector.broadcast %596 : f32 to vector<16x16xf32>
    %598 = arith.mulf %597, %595 : vector<16x16xf32>
    %599 = arith.addf %565, %598 : vector<16x16xf32>
    %c53 = arith.constant 53 : index
    %600 = memref.load %arg3[%c53] : memref<288xf32, #tpu.memory_space<smem>>
    %601 = vector.broadcast %600 : f32 to vector<16x16xf32>
    %602 = arith.mulf %601, %595 : vector<16x16xf32>
    %603 = arith.addf %569, %602 : vector<16x16xf32>
    %c89 = arith.constant 89 : index
    %604 = memref.load %arg3[%c89] : memref<288xf32, #tpu.memory_space<smem>>
    %605 = vector.broadcast %604 : f32 to vector<16x16xf32>
    %606 = arith.mulf %605, %595 : vector<16x16xf32>
    %607 = arith.addf %573, %606 : vector<16x16xf32>
    %c125 = arith.constant 125 : index
    %608 = memref.load %arg3[%c125] : memref<288xf32, #tpu.memory_space<smem>>
    %609 = vector.broadcast %608 : f32 to vector<16x16xf32>
    %610 = arith.mulf %609, %595 : vector<16x16xf32>
    %611 = arith.addf %577, %610 : vector<16x16xf32>
    %c161 = arith.constant 161 : index
    %612 = memref.load %arg3[%c161] : memref<288xf32, #tpu.memory_space<smem>>
    %613 = vector.broadcast %612 : f32 to vector<16x16xf32>
    %614 = arith.mulf %613, %595 : vector<16x16xf32>
    %615 = arith.addf %581, %614 : vector<16x16xf32>
    %c197 = arith.constant 197 : index
    %616 = memref.load %arg3[%c197] : memref<288xf32, #tpu.memory_space<smem>>
    %617 = vector.broadcast %616 : f32 to vector<16x16xf32>
    %618 = arith.mulf %617, %595 : vector<16x16xf32>
    %619 = arith.addf %585, %618 : vector<16x16xf32>
    %c233 = arith.constant 233 : index
    %620 = memref.load %arg3[%c233] : memref<288xf32, #tpu.memory_space<smem>>
    %621 = vector.broadcast %620 : f32 to vector<16x16xf32>
    %622 = arith.mulf %621, %595 : vector<16x16xf32>
    %623 = arith.addf %589, %622 : vector<16x16xf32>
    %c269 = arith.constant 269 : index
    %624 = memref.load %arg3[%c269] : memref<288xf32, #tpu.memory_space<smem>>
    %625 = vector.broadcast %624 : f32 to vector<16x16xf32>
    %626 = arith.mulf %625, %595 : vector<16x16xf32>
    %627 = arith.addf %593, %626 : vector<16x16xf32>
    %c2_79 = arith.constant 2 : index
    %c0_80 = arith.constant 0 : index
    %c0_81 = arith.constant 0 : index
    %628 = vector.load %arg8[%c2_79, %c0_80, %c0_81] : memref<4x18x18xf32, #tpu.memory_space<vmem>>, vector<1x16x16xf32>
    %629 = vector.shape_cast %628 : vector<1x16x16xf32> to vector<16x16xf32>
    %c18 = arith.constant 18 : index
    %630 = memref.load %arg3[%c18] : memref<288xf32, #tpu.memory_space<smem>>
    %631 = vector.broadcast %630 : f32 to vector<16x16xf32>
    %632 = arith.mulf %631, %629 : vector<16x16xf32>
    %633 = arith.addf %599, %632 : vector<16x16xf32>
    %c54 = arith.constant 54 : index
    %634 = memref.load %arg3[%c54] : memref<288xf32, #tpu.memory_space<smem>>
    %635 = vector.broadcast %634 : f32 to vector<16x16xf32>
    %636 = arith.mulf %635, %629 : vector<16x16xf32>
    %637 = arith.addf %603, %636 : vector<16x16xf32>
    %c90 = arith.constant 90 : index
    %638 = memref.load %arg3[%c90] : memref<288xf32, #tpu.memory_space<smem>>
    %639 = vector.broadcast %638 : f32 to vector<16x16xf32>
    %640 = arith.mulf %639, %629 : vector<16x16xf32>
    %641 = arith.addf %607, %640 : vector<16x16xf32>
    %c126 = arith.constant 126 : index
    %642 = memref.load %arg3[%c126] : memref<288xf32, #tpu.memory_space<smem>>
    %643 = vector.broadcast %642 : f32 to vector<16x16xf32>
    %644 = arith.mulf %643, %629 : vector<16x16xf32>
    %645 = arith.addf %611, %644 : vector<16x16xf32>
    %c162 = arith.constant 162 : index
    %646 = memref.load %arg3[%c162] : memref<288xf32, #tpu.memory_space<smem>>
    %647 = vector.broadcast %646 : f32 to vector<16x16xf32>
    %648 = arith.mulf %647, %629 : vector<16x16xf32>
    %649 = arith.addf %615, %648 : vector<16x16xf32>
    %c198 = arith.constant 198 : index
    %650 = memref.load %arg3[%c198] : memref<288xf32, #tpu.memory_space<smem>>
    %651 = vector.broadcast %650 : f32 to vector<16x16xf32>
    %652 = arith.mulf %651, %629 : vector<16x16xf32>
    %653 = arith.addf %619, %652 : vector<16x16xf32>
    %c234 = arith.constant 234 : index
    %654 = memref.load %arg3[%c234] : memref<288xf32, #tpu.memory_space<smem>>
    %655 = vector.broadcast %654 : f32 to vector<16x16xf32>
    %656 = arith.mulf %655, %629 : vector<16x16xf32>
    %657 = arith.addf %623, %656 : vector<16x16xf32>
    %c270 = arith.constant 270 : index
    %658 = memref.load %arg3[%c270] : memref<288xf32, #tpu.memory_space<smem>>
    %659 = vector.broadcast %658 : f32 to vector<16x16xf32>
    %660 = arith.mulf %659, %629 : vector<16x16xf32>
    %661 = arith.addf %627, %660 : vector<16x16xf32>
    %c2_82 = arith.constant 2 : index
    %c0_83 = arith.constant 0 : index
    %c1_84 = arith.constant 1 : index
    %662 = vector.load %arg8[%c2_82, %c0_83, %c1_84] : memref<4x18x18xf32, #tpu.memory_space<vmem>>, vector<1x16x16xf32>
    %663 = vector.shape_cast %662 : vector<1x16x16xf32> to vector<16x16xf32>
    %c19 = arith.constant 19 : index
    %664 = memref.load %arg3[%c19] : memref<288xf32, #tpu.memory_space<smem>>
    %665 = vector.broadcast %664 : f32 to vector<16x16xf32>
    %666 = arith.mulf %665, %663 : vector<16x16xf32>
    %667 = arith.addf %633, %666 : vector<16x16xf32>
    %c55 = arith.constant 55 : index
    %668 = memref.load %arg3[%c55] : memref<288xf32, #tpu.memory_space<smem>>
    %669 = vector.broadcast %668 : f32 to vector<16x16xf32>
    %670 = arith.mulf %669, %663 : vector<16x16xf32>
    %671 = arith.addf %637, %670 : vector<16x16xf32>
    %c91 = arith.constant 91 : index
    %672 = memref.load %arg3[%c91] : memref<288xf32, #tpu.memory_space<smem>>
    %673 = vector.broadcast %672 : f32 to vector<16x16xf32>
    %674 = arith.mulf %673, %663 : vector<16x16xf32>
    %675 = arith.addf %641, %674 : vector<16x16xf32>
    %c127 = arith.constant 127 : index
    %676 = memref.load %arg3[%c127] : memref<288xf32, #tpu.memory_space<smem>>
    %677 = vector.broadcast %676 : f32 to vector<16x16xf32>
    %678 = arith.mulf %677, %663 : vector<16x16xf32>
    %679 = arith.addf %645, %678 : vector<16x16xf32>
    %c163 = arith.constant 163 : index
    %680 = memref.load %arg3[%c163] : memref<288xf32, #tpu.memory_space<smem>>
    %681 = vector.broadcast %680 : f32 to vector<16x16xf32>
    %682 = arith.mulf %681, %663 : vector<16x16xf32>
    %683 = arith.addf %649, %682 : vector<16x16xf32>
    %c199 = arith.constant 199 : index
    %684 = memref.load %arg3[%c199] : memref<288xf32, #tpu.memory_space<smem>>
    %685 = vector.broadcast %684 : f32 to vector<16x16xf32>
    %686 = arith.mulf %685, %663 : vector<16x16xf32>
    %687 = arith.addf %653, %686 : vector<16x16xf32>
    %c235 = arith.constant 235 : index
    %688 = memref.load %arg3[%c235] : memref<288xf32, #tpu.memory_space<smem>>
    %689 = vector.broadcast %688 : f32 to vector<16x16xf32>
    %690 = arith.mulf %689, %663 : vector<16x16xf32>
    %691 = arith.addf %657, %690 : vector<16x16xf32>
    %c271 = arith.constant 271 : index
    %692 = memref.load %arg3[%c271] : memref<288xf32, #tpu.memory_space<smem>>
    %693 = vector.broadcast %692 : f32 to vector<16x16xf32>
    %694 = arith.mulf %693, %663 : vector<16x16xf32>
    %695 = arith.addf %661, %694 : vector<16x16xf32>
    %c2_85 = arith.constant 2 : index
    %c0_86 = arith.constant 0 : index
    %c2_87 = arith.constant 2 : index
    %696 = vector.load %arg8[%c2_85, %c0_86, %c2_87] : memref<4x18x18xf32, #tpu.memory_space<vmem>>, vector<1x16x16xf32>
    %697 = vector.shape_cast %696 : vector<1x16x16xf32> to vector<16x16xf32>
    %c20 = arith.constant 20 : index
    %698 = memref.load %arg3[%c20] : memref<288xf32, #tpu.memory_space<smem>>
    %699 = vector.broadcast %698 : f32 to vector<16x16xf32>
    %700 = arith.mulf %699, %697 : vector<16x16xf32>
    %701 = arith.addf %667, %700 : vector<16x16xf32>
    %c56 = arith.constant 56 : index
    %702 = memref.load %arg3[%c56] : memref<288xf32, #tpu.memory_space<smem>>
    %703 = vector.broadcast %702 : f32 to vector<16x16xf32>
    %704 = arith.mulf %703, %697 : vector<16x16xf32>
    %705 = arith.addf %671, %704 : vector<16x16xf32>
    %c92 = arith.constant 92 : index
    %706 = memref.load %arg3[%c92] : memref<288xf32, #tpu.memory_space<smem>>
    %707 = vector.broadcast %706 : f32 to vector<16x16xf32>
    %708 = arith.mulf %707, %697 : vector<16x16xf32>
    %709 = arith.addf %675, %708 : vector<16x16xf32>
    %c128 = arith.constant 128 : index
    %710 = memref.load %arg3[%c128] : memref<288xf32, #tpu.memory_space<smem>>
    %711 = vector.broadcast %710 : f32 to vector<16x16xf32>
    %712 = arith.mulf %711, %697 : vector<16x16xf32>
    %713 = arith.addf %679, %712 : vector<16x16xf32>
    %c164 = arith.constant 164 : index
    %714 = memref.load %arg3[%c164] : memref<288xf32, #tpu.memory_space<smem>>
    %715 = vector.broadcast %714 : f32 to vector<16x16xf32>
    %716 = arith.mulf %715, %697 : vector<16x16xf32>
    %717 = arith.addf %683, %716 : vector<16x16xf32>
    %c200 = arith.constant 200 : index
    %718 = memref.load %arg3[%c200] : memref<288xf32, #tpu.memory_space<smem>>
    %719 = vector.broadcast %718 : f32 to vector<16x16xf32>
    %720 = arith.mulf %719, %697 : vector<16x16xf32>
    %721 = arith.addf %687, %720 : vector<16x16xf32>
    %c236 = arith.constant 236 : index
    %722 = memref.load %arg3[%c236] : memref<288xf32, #tpu.memory_space<smem>>
    %723 = vector.broadcast %722 : f32 to vector<16x16xf32>
    %724 = arith.mulf %723, %697 : vector<16x16xf32>
    %725 = arith.addf %691, %724 : vector<16x16xf32>
    %c272 = arith.constant 272 : index
    %726 = memref.load %arg3[%c272] : memref<288xf32, #tpu.memory_space<smem>>
    %727 = vector.broadcast %726 : f32 to vector<16x16xf32>
    %728 = arith.mulf %727, %697 : vector<16x16xf32>
    %729 = arith.addf %695, %728 : vector<16x16xf32>
    %c2_88 = arith.constant 2 : index
    %c1_89 = arith.constant 1 : index
    %c0_90 = arith.constant 0 : index
    %730 = vector.load %arg8[%c2_88, %c1_89, %c0_90] : memref<4x18x18xf32, #tpu.memory_space<vmem>>, vector<1x16x16xf32>
    %731 = vector.shape_cast %730 : vector<1x16x16xf32> to vector<16x16xf32>
    %c21 = arith.constant 21 : index
    %732 = memref.load %arg3[%c21] : memref<288xf32, #tpu.memory_space<smem>>
    %733 = vector.broadcast %732 : f32 to vector<16x16xf32>
    %734 = arith.mulf %733, %731 : vector<16x16xf32>
    %735 = arith.addf %701, %734 : vector<16x16xf32>
    %c57 = arith.constant 57 : index
    %736 = memref.load %arg3[%c57] : memref<288xf32, #tpu.memory_space<smem>>
    %737 = vector.broadcast %736 : f32 to vector<16x16xf32>
    %738 = arith.mulf %737, %731 : vector<16x16xf32>
    %739 = arith.addf %705, %738 : vector<16x16xf32>
    %c93 = arith.constant 93 : index
    %740 = memref.load %arg3[%c93] : memref<288xf32, #tpu.memory_space<smem>>
    %741 = vector.broadcast %740 : f32 to vector<16x16xf32>
    %742 = arith.mulf %741, %731 : vector<16x16xf32>
    %743 = arith.addf %709, %742 : vector<16x16xf32>
    %c129 = arith.constant 129 : index
    %744 = memref.load %arg3[%c129] : memref<288xf32, #tpu.memory_space<smem>>
    %745 = vector.broadcast %744 : f32 to vector<16x16xf32>
    %746 = arith.mulf %745, %731 : vector<16x16xf32>
    %747 = arith.addf %713, %746 : vector<16x16xf32>
    %c165 = arith.constant 165 : index
    %748 = memref.load %arg3[%c165] : memref<288xf32, #tpu.memory_space<smem>>
    %749 = vector.broadcast %748 : f32 to vector<16x16xf32>
    %750 = arith.mulf %749, %731 : vector<16x16xf32>
    %751 = arith.addf %717, %750 : vector<16x16xf32>
    %c201 = arith.constant 201 : index
    %752 = memref.load %arg3[%c201] : memref<288xf32, #tpu.memory_space<smem>>
    %753 = vector.broadcast %752 : f32 to vector<16x16xf32>
    %754 = arith.mulf %753, %731 : vector<16x16xf32>
    %755 = arith.addf %721, %754 : vector<16x16xf32>
    %c237 = arith.constant 237 : index
    %756 = memref.load %arg3[%c237] : memref<288xf32, #tpu.memory_space<smem>>
    %757 = vector.broadcast %756 : f32 to vector<16x16xf32>
    %758 = arith.mulf %757, %731 : vector<16x16xf32>
    %759 = arith.addf %725, %758 : vector<16x16xf32>
    %c273 = arith.constant 273 : index
    %760 = memref.load %arg3[%c273] : memref<288xf32, #tpu.memory_space<smem>>
    %761 = vector.broadcast %760 : f32 to vector<16x16xf32>
    %762 = arith.mulf %761, %731 : vector<16x16xf32>
    %763 = arith.addf %729, %762 : vector<16x16xf32>
    %c2_91 = arith.constant 2 : index
    %c1_92 = arith.constant 1 : index
    %c1_93 = arith.constant 1 : index
    %764 = vector.load %arg8[%c2_91, %c1_92, %c1_93] : memref<4x18x18xf32, #tpu.memory_space<vmem>>, vector<1x16x16xf32>
    %765 = vector.shape_cast %764 : vector<1x16x16xf32> to vector<16x16xf32>
    %c22 = arith.constant 22 : index
    %766 = memref.load %arg3[%c22] : memref<288xf32, #tpu.memory_space<smem>>
    %767 = vector.broadcast %766 : f32 to vector<16x16xf32>
    %768 = arith.mulf %767, %765 : vector<16x16xf32>
    %769 = arith.addf %735, %768 : vector<16x16xf32>
    %c58 = arith.constant 58 : index
    %770 = memref.load %arg3[%c58] : memref<288xf32, #tpu.memory_space<smem>>
    %771 = vector.broadcast %770 : f32 to vector<16x16xf32>
    %772 = arith.mulf %771, %765 : vector<16x16xf32>
    %773 = arith.addf %739, %772 : vector<16x16xf32>
    %c94 = arith.constant 94 : index
    %774 = memref.load %arg3[%c94] : memref<288xf32, #tpu.memory_space<smem>>
    %775 = vector.broadcast %774 : f32 to vector<16x16xf32>
    %776 = arith.mulf %775, %765 : vector<16x16xf32>
    %777 = arith.addf %743, %776 : vector<16x16xf32>
    %c130 = arith.constant 130 : index
    %778 = memref.load %arg3[%c130] : memref<288xf32, #tpu.memory_space<smem>>
    %779 = vector.broadcast %778 : f32 to vector<16x16xf32>
    %780 = arith.mulf %779, %765 : vector<16x16xf32>
    %781 = arith.addf %747, %780 : vector<16x16xf32>
    %c166 = arith.constant 166 : index
    %782 = memref.load %arg3[%c166] : memref<288xf32, #tpu.memory_space<smem>>
    %783 = vector.broadcast %782 : f32 to vector<16x16xf32>
    %784 = arith.mulf %783, %765 : vector<16x16xf32>
    %785 = arith.addf %751, %784 : vector<16x16xf32>
    %c202 = arith.constant 202 : index
    %786 = memref.load %arg3[%c202] : memref<288xf32, #tpu.memory_space<smem>>
    %787 = vector.broadcast %786 : f32 to vector<16x16xf32>
    %788 = arith.mulf %787, %765 : vector<16x16xf32>
    %789 = arith.addf %755, %788 : vector<16x16xf32>
    %c238 = arith.constant 238 : index
    %790 = memref.load %arg3[%c238] : memref<288xf32, #tpu.memory_space<smem>>
    %791 = vector.broadcast %790 : f32 to vector<16x16xf32>
    %792 = arith.mulf %791, %765 : vector<16x16xf32>
    %793 = arith.addf %759, %792 : vector<16x16xf32>
    %c274 = arith.constant 274 : index
    %794 = memref.load %arg3[%c274] : memref<288xf32, #tpu.memory_space<smem>>
    %795 = vector.broadcast %794 : f32 to vector<16x16xf32>
    %796 = arith.mulf %795, %765 : vector<16x16xf32>
    %797 = arith.addf %763, %796 : vector<16x16xf32>
    %c2_94 = arith.constant 2 : index
    %c1_95 = arith.constant 1 : index
    %c2_96 = arith.constant 2 : index
    %798 = vector.load %arg8[%c2_94, %c1_95, %c2_96] : memref<4x18x18xf32, #tpu.memory_space<vmem>>, vector<1x16x16xf32>
    %799 = vector.shape_cast %798 : vector<1x16x16xf32> to vector<16x16xf32>
    %c23 = arith.constant 23 : index
    %800 = memref.load %arg3[%c23] : memref<288xf32, #tpu.memory_space<smem>>
    %801 = vector.broadcast %800 : f32 to vector<16x16xf32>
    %802 = arith.mulf %801, %799 : vector<16x16xf32>
    %803 = arith.addf %769, %802 : vector<16x16xf32>
    %c59 = arith.constant 59 : index
    %804 = memref.load %arg3[%c59] : memref<288xf32, #tpu.memory_space<smem>>
    %805 = vector.broadcast %804 : f32 to vector<16x16xf32>
    %806 = arith.mulf %805, %799 : vector<16x16xf32>
    %807 = arith.addf %773, %806 : vector<16x16xf32>
    %c95 = arith.constant 95 : index
    %808 = memref.load %arg3[%c95] : memref<288xf32, #tpu.memory_space<smem>>
    %809 = vector.broadcast %808 : f32 to vector<16x16xf32>
    %810 = arith.mulf %809, %799 : vector<16x16xf32>
    %811 = arith.addf %777, %810 : vector<16x16xf32>
    %c131 = arith.constant 131 : index
    %812 = memref.load %arg3[%c131] : memref<288xf32, #tpu.memory_space<smem>>
    %813 = vector.broadcast %812 : f32 to vector<16x16xf32>
    %814 = arith.mulf %813, %799 : vector<16x16xf32>
    %815 = arith.addf %781, %814 : vector<16x16xf32>
    %c167 = arith.constant 167 : index
    %816 = memref.load %arg3[%c167] : memref<288xf32, #tpu.memory_space<smem>>
    %817 = vector.broadcast %816 : f32 to vector<16x16xf32>
    %818 = arith.mulf %817, %799 : vector<16x16xf32>
    %819 = arith.addf %785, %818 : vector<16x16xf32>
    %c203 = arith.constant 203 : index
    %820 = memref.load %arg3[%c203] : memref<288xf32, #tpu.memory_space<smem>>
    %821 = vector.broadcast %820 : f32 to vector<16x16xf32>
    %822 = arith.mulf %821, %799 : vector<16x16xf32>
    %823 = arith.addf %789, %822 : vector<16x16xf32>
    %c239 = arith.constant 239 : index
    %824 = memref.load %arg3[%c239] : memref<288xf32, #tpu.memory_space<smem>>
    %825 = vector.broadcast %824 : f32 to vector<16x16xf32>
    %826 = arith.mulf %825, %799 : vector<16x16xf32>
    %827 = arith.addf %793, %826 : vector<16x16xf32>
    %c275 = arith.constant 275 : index
    %828 = memref.load %arg3[%c275] : memref<288xf32, #tpu.memory_space<smem>>
    %829 = vector.broadcast %828 : f32 to vector<16x16xf32>
    %830 = arith.mulf %829, %799 : vector<16x16xf32>
    %831 = arith.addf %797, %830 : vector<16x16xf32>
    %c2_97 = arith.constant 2 : index
    %c2_98 = arith.constant 2 : index
    %c0_99 = arith.constant 0 : index
    %832 = vector.load %arg8[%c2_97, %c2_98, %c0_99] : memref<4x18x18xf32, #tpu.memory_space<vmem>>, vector<1x16x16xf32>
    %833 = vector.shape_cast %832 : vector<1x16x16xf32> to vector<16x16xf32>
    %c24 = arith.constant 24 : index
    %834 = memref.load %arg3[%c24] : memref<288xf32, #tpu.memory_space<smem>>
    %835 = vector.broadcast %834 : f32 to vector<16x16xf32>
    %836 = arith.mulf %835, %833 : vector<16x16xf32>
    %837 = arith.addf %803, %836 : vector<16x16xf32>
    %c60 = arith.constant 60 : index
    %838 = memref.load %arg3[%c60] : memref<288xf32, #tpu.memory_space<smem>>
    %839 = vector.broadcast %838 : f32 to vector<16x16xf32>
    %840 = arith.mulf %839, %833 : vector<16x16xf32>
    %841 = arith.addf %807, %840 : vector<16x16xf32>
    %c96 = arith.constant 96 : index
    %842 = memref.load %arg3[%c96] : memref<288xf32, #tpu.memory_space<smem>>
    %843 = vector.broadcast %842 : f32 to vector<16x16xf32>
    %844 = arith.mulf %843, %833 : vector<16x16xf32>
    %845 = arith.addf %811, %844 : vector<16x16xf32>
    %c132 = arith.constant 132 : index
    %846 = memref.load %arg3[%c132] : memref<288xf32, #tpu.memory_space<smem>>
    %847 = vector.broadcast %846 : f32 to vector<16x16xf32>
    %848 = arith.mulf %847, %833 : vector<16x16xf32>
    %849 = arith.addf %815, %848 : vector<16x16xf32>
    %c168 = arith.constant 168 : index
    %850 = memref.load %arg3[%c168] : memref<288xf32, #tpu.memory_space<smem>>
    %851 = vector.broadcast %850 : f32 to vector<16x16xf32>
    %852 = arith.mulf %851, %833 : vector<16x16xf32>
    %853 = arith.addf %819, %852 : vector<16x16xf32>
    %c204 = arith.constant 204 : index
    %854 = memref.load %arg3[%c204] : memref<288xf32, #tpu.memory_space<smem>>
    %855 = vector.broadcast %854 : f32 to vector<16x16xf32>
    %856 = arith.mulf %855, %833 : vector<16x16xf32>
    %857 = arith.addf %823, %856 : vector<16x16xf32>
    %c240 = arith.constant 240 : index
    %858 = memref.load %arg3[%c240] : memref<288xf32, #tpu.memory_space<smem>>
    %859 = vector.broadcast %858 : f32 to vector<16x16xf32>
    %860 = arith.mulf %859, %833 : vector<16x16xf32>
    %861 = arith.addf %827, %860 : vector<16x16xf32>
    %c276 = arith.constant 276 : index
    %862 = memref.load %arg3[%c276] : memref<288xf32, #tpu.memory_space<smem>>
    %863 = vector.broadcast %862 : f32 to vector<16x16xf32>
    %864 = arith.mulf %863, %833 : vector<16x16xf32>
    %865 = arith.addf %831, %864 : vector<16x16xf32>
    %c2_100 = arith.constant 2 : index
    %c2_101 = arith.constant 2 : index
    %c1_102 = arith.constant 1 : index
    %866 = vector.load %arg8[%c2_100, %c2_101, %c1_102] : memref<4x18x18xf32, #tpu.memory_space<vmem>>, vector<1x16x16xf32>
    %867 = vector.shape_cast %866 : vector<1x16x16xf32> to vector<16x16xf32>
    %c25 = arith.constant 25 : index
    %868 = memref.load %arg3[%c25] : memref<288xf32, #tpu.memory_space<smem>>
    %869 = vector.broadcast %868 : f32 to vector<16x16xf32>
    %870 = arith.mulf %869, %867 : vector<16x16xf32>
    %871 = arith.addf %837, %870 : vector<16x16xf32>
    %c61 = arith.constant 61 : index
    %872 = memref.load %arg3[%c61] : memref<288xf32, #tpu.memory_space<smem>>
    %873 = vector.broadcast %872 : f32 to vector<16x16xf32>
    %874 = arith.mulf %873, %867 : vector<16x16xf32>
    %875 = arith.addf %841, %874 : vector<16x16xf32>
    %c97 = arith.constant 97 : index
    %876 = memref.load %arg3[%c97] : memref<288xf32, #tpu.memory_space<smem>>
    %877 = vector.broadcast %876 : f32 to vector<16x16xf32>
    %878 = arith.mulf %877, %867 : vector<16x16xf32>
    %879 = arith.addf %845, %878 : vector<16x16xf32>
    %c133 = arith.constant 133 : index
    %880 = memref.load %arg3[%c133] : memref<288xf32, #tpu.memory_space<smem>>
    %881 = vector.broadcast %880 : f32 to vector<16x16xf32>
    %882 = arith.mulf %881, %867 : vector<16x16xf32>
    %883 = arith.addf %849, %882 : vector<16x16xf32>
    %c169 = arith.constant 169 : index
    %884 = memref.load %arg3[%c169] : memref<288xf32, #tpu.memory_space<smem>>
    %885 = vector.broadcast %884 : f32 to vector<16x16xf32>
    %886 = arith.mulf %885, %867 : vector<16x16xf32>
    %887 = arith.addf %853, %886 : vector<16x16xf32>
    %c205 = arith.constant 205 : index
    %888 = memref.load %arg3[%c205] : memref<288xf32, #tpu.memory_space<smem>>
    %889 = vector.broadcast %888 : f32 to vector<16x16xf32>
    %890 = arith.mulf %889, %867 : vector<16x16xf32>
    %891 = arith.addf %857, %890 : vector<16x16xf32>
    %c241 = arith.constant 241 : index
    %892 = memref.load %arg3[%c241] : memref<288xf32, #tpu.memory_space<smem>>
    %893 = vector.broadcast %892 : f32 to vector<16x16xf32>
    %894 = arith.mulf %893, %867 : vector<16x16xf32>
    %895 = arith.addf %861, %894 : vector<16x16xf32>
    %c277 = arith.constant 277 : index
    %896 = memref.load %arg3[%c277] : memref<288xf32, #tpu.memory_space<smem>>
    %897 = vector.broadcast %896 : f32 to vector<16x16xf32>
    %898 = arith.mulf %897, %867 : vector<16x16xf32>
    %899 = arith.addf %865, %898 : vector<16x16xf32>
    %c2_103 = arith.constant 2 : index
    %c2_104 = arith.constant 2 : index
    %c2_105 = arith.constant 2 : index
    %900 = vector.load %arg8[%c2_103, %c2_104, %c2_105] : memref<4x18x18xf32, #tpu.memory_space<vmem>>, vector<1x16x16xf32>
    %901 = vector.shape_cast %900 : vector<1x16x16xf32> to vector<16x16xf32>
    %c26 = arith.constant 26 : index
    %902 = memref.load %arg3[%c26] : memref<288xf32, #tpu.memory_space<smem>>
    %903 = vector.broadcast %902 : f32 to vector<16x16xf32>
    %904 = arith.mulf %903, %901 : vector<16x16xf32>
    %905 = arith.addf %871, %904 : vector<16x16xf32>
    %c62 = arith.constant 62 : index
    %906 = memref.load %arg3[%c62] : memref<288xf32, #tpu.memory_space<smem>>
    %907 = vector.broadcast %906 : f32 to vector<16x16xf32>
    %908 = arith.mulf %907, %901 : vector<16x16xf32>
    %909 = arith.addf %875, %908 : vector<16x16xf32>
    %c98 = arith.constant 98 : index
    %910 = memref.load %arg3[%c98] : memref<288xf32, #tpu.memory_space<smem>>
    %911 = vector.broadcast %910 : f32 to vector<16x16xf32>
    %912 = arith.mulf %911, %901 : vector<16x16xf32>
    %913 = arith.addf %879, %912 : vector<16x16xf32>
    %c134 = arith.constant 134 : index
    %914 = memref.load %arg3[%c134] : memref<288xf32, #tpu.memory_space<smem>>
    %915 = vector.broadcast %914 : f32 to vector<16x16xf32>
    %916 = arith.mulf %915, %901 : vector<16x16xf32>
    %917 = arith.addf %883, %916 : vector<16x16xf32>
    %c170 = arith.constant 170 : index
    %918 = memref.load %arg3[%c170] : memref<288xf32, #tpu.memory_space<smem>>
    %919 = vector.broadcast %918 : f32 to vector<16x16xf32>
    %920 = arith.mulf %919, %901 : vector<16x16xf32>
    %921 = arith.addf %887, %920 : vector<16x16xf32>
    %c206 = arith.constant 206 : index
    %922 = memref.load %arg3[%c206] : memref<288xf32, #tpu.memory_space<smem>>
    %923 = vector.broadcast %922 : f32 to vector<16x16xf32>
    %924 = arith.mulf %923, %901 : vector<16x16xf32>
    %925 = arith.addf %891, %924 : vector<16x16xf32>
    %c242 = arith.constant 242 : index
    %926 = memref.load %arg3[%c242] : memref<288xf32, #tpu.memory_space<smem>>
    %927 = vector.broadcast %926 : f32 to vector<16x16xf32>
    %928 = arith.mulf %927, %901 : vector<16x16xf32>
    %929 = arith.addf %895, %928 : vector<16x16xf32>
    %c278 = arith.constant 278 : index
    %930 = memref.load %arg3[%c278] : memref<288xf32, #tpu.memory_space<smem>>
    %931 = vector.broadcast %930 : f32 to vector<16x16xf32>
    %932 = arith.mulf %931, %901 : vector<16x16xf32>
    %933 = arith.addf %899, %932 : vector<16x16xf32>
    %c3_106 = arith.constant 3 : index
    %c0_107 = arith.constant 0 : index
    %c0_108 = arith.constant 0 : index
    %934 = vector.load %arg8[%c3_106, %c0_107, %c0_108] : memref<4x18x18xf32, #tpu.memory_space<vmem>>, vector<1x16x16xf32>
    %935 = vector.shape_cast %934 : vector<1x16x16xf32> to vector<16x16xf32>
    %c27 = arith.constant 27 : index
    %936 = memref.load %arg3[%c27] : memref<288xf32, #tpu.memory_space<smem>>
    %937 = vector.broadcast %936 : f32 to vector<16x16xf32>
    %938 = arith.mulf %937, %935 : vector<16x16xf32>
    %939 = arith.addf %905, %938 : vector<16x16xf32>
    %c63 = arith.constant 63 : index
    %940 = memref.load %arg3[%c63] : memref<288xf32, #tpu.memory_space<smem>>
    %941 = vector.broadcast %940 : f32 to vector<16x16xf32>
    %942 = arith.mulf %941, %935 : vector<16x16xf32>
    %943 = arith.addf %909, %942 : vector<16x16xf32>
    %c99 = arith.constant 99 : index
    %944 = memref.load %arg3[%c99] : memref<288xf32, #tpu.memory_space<smem>>
    %945 = vector.broadcast %944 : f32 to vector<16x16xf32>
    %946 = arith.mulf %945, %935 : vector<16x16xf32>
    %947 = arith.addf %913, %946 : vector<16x16xf32>
    %c135 = arith.constant 135 : index
    %948 = memref.load %arg3[%c135] : memref<288xf32, #tpu.memory_space<smem>>
    %949 = vector.broadcast %948 : f32 to vector<16x16xf32>
    %950 = arith.mulf %949, %935 : vector<16x16xf32>
    %951 = arith.addf %917, %950 : vector<16x16xf32>
    %c171 = arith.constant 171 : index
    %952 = memref.load %arg3[%c171] : memref<288xf32, #tpu.memory_space<smem>>
    %953 = vector.broadcast %952 : f32 to vector<16x16xf32>
    %954 = arith.mulf %953, %935 : vector<16x16xf32>
    %955 = arith.addf %921, %954 : vector<16x16xf32>
    %c207 = arith.constant 207 : index
    %956 = memref.load %arg3[%c207] : memref<288xf32, #tpu.memory_space<smem>>
    %957 = vector.broadcast %956 : f32 to vector<16x16xf32>
    %958 = arith.mulf %957, %935 : vector<16x16xf32>
    %959 = arith.addf %925, %958 : vector<16x16xf32>
    %c243 = arith.constant 243 : index
    %960 = memref.load %arg3[%c243] : memref<288xf32, #tpu.memory_space<smem>>
    %961 = vector.broadcast %960 : f32 to vector<16x16xf32>
    %962 = arith.mulf %961, %935 : vector<16x16xf32>
    %963 = arith.addf %929, %962 : vector<16x16xf32>
    %c279 = arith.constant 279 : index
    %964 = memref.load %arg3[%c279] : memref<288xf32, #tpu.memory_space<smem>>
    %965 = vector.broadcast %964 : f32 to vector<16x16xf32>
    %966 = arith.mulf %965, %935 : vector<16x16xf32>
    %967 = arith.addf %933, %966 : vector<16x16xf32>
    %c3_109 = arith.constant 3 : index
    %c0_110 = arith.constant 0 : index
    %c1_111 = arith.constant 1 : index
    %968 = vector.load %arg8[%c3_109, %c0_110, %c1_111] : memref<4x18x18xf32, #tpu.memory_space<vmem>>, vector<1x16x16xf32>
    %969 = vector.shape_cast %968 : vector<1x16x16xf32> to vector<16x16xf32>
    %c28 = arith.constant 28 : index
    %970 = memref.load %arg3[%c28] : memref<288xf32, #tpu.memory_space<smem>>
    %971 = vector.broadcast %970 : f32 to vector<16x16xf32>
    %972 = arith.mulf %971, %969 : vector<16x16xf32>
    %973 = arith.addf %939, %972 : vector<16x16xf32>
    %c64 = arith.constant 64 : index
    %974 = memref.load %arg3[%c64] : memref<288xf32, #tpu.memory_space<smem>>
    %975 = vector.broadcast %974 : f32 to vector<16x16xf32>
    %976 = arith.mulf %975, %969 : vector<16x16xf32>
    %977 = arith.addf %943, %976 : vector<16x16xf32>
    %c100 = arith.constant 100 : index
    %978 = memref.load %arg3[%c100] : memref<288xf32, #tpu.memory_space<smem>>
    %979 = vector.broadcast %978 : f32 to vector<16x16xf32>
    %980 = arith.mulf %979, %969 : vector<16x16xf32>
    %981 = arith.addf %947, %980 : vector<16x16xf32>
    %c136 = arith.constant 136 : index
    %982 = memref.load %arg3[%c136] : memref<288xf32, #tpu.memory_space<smem>>
    %983 = vector.broadcast %982 : f32 to vector<16x16xf32>
    %984 = arith.mulf %983, %969 : vector<16x16xf32>
    %985 = arith.addf %951, %984 : vector<16x16xf32>
    %c172 = arith.constant 172 : index
    %986 = memref.load %arg3[%c172] : memref<288xf32, #tpu.memory_space<smem>>
    %987 = vector.broadcast %986 : f32 to vector<16x16xf32>
    %988 = arith.mulf %987, %969 : vector<16x16xf32>
    %989 = arith.addf %955, %988 : vector<16x16xf32>
    %c208 = arith.constant 208 : index
    %990 = memref.load %arg3[%c208] : memref<288xf32, #tpu.memory_space<smem>>
    %991 = vector.broadcast %990 : f32 to vector<16x16xf32>
    %992 = arith.mulf %991, %969 : vector<16x16xf32>
    %993 = arith.addf %959, %992 : vector<16x16xf32>
    %c244 = arith.constant 244 : index
    %994 = memref.load %arg3[%c244] : memref<288xf32, #tpu.memory_space<smem>>
    %995 = vector.broadcast %994 : f32 to vector<16x16xf32>
    %996 = arith.mulf %995, %969 : vector<16x16xf32>
    %997 = arith.addf %963, %996 : vector<16x16xf32>
    %c280 = arith.constant 280 : index
    %998 = memref.load %arg3[%c280] : memref<288xf32, #tpu.memory_space<smem>>
    %999 = vector.broadcast %998 : f32 to vector<16x16xf32>
    %1000 = arith.mulf %999, %969 : vector<16x16xf32>
    %1001 = arith.addf %967, %1000 : vector<16x16xf32>
    %c3_112 = arith.constant 3 : index
    %c0_113 = arith.constant 0 : index
    %c2_114 = arith.constant 2 : index
    %1002 = vector.load %arg8[%c3_112, %c0_113, %c2_114] : memref<4x18x18xf32, #tpu.memory_space<vmem>>, vector<1x16x16xf32>
    %1003 = vector.shape_cast %1002 : vector<1x16x16xf32> to vector<16x16xf32>
    %c29 = arith.constant 29 : index
    %1004 = memref.load %arg3[%c29] : memref<288xf32, #tpu.memory_space<smem>>
    %1005 = vector.broadcast %1004 : f32 to vector<16x16xf32>
    %1006 = arith.mulf %1005, %1003 : vector<16x16xf32>
    %1007 = arith.addf %973, %1006 : vector<16x16xf32>
    %c65 = arith.constant 65 : index
    %1008 = memref.load %arg3[%c65] : memref<288xf32, #tpu.memory_space<smem>>
    %1009 = vector.broadcast %1008 : f32 to vector<16x16xf32>
    %1010 = arith.mulf %1009, %1003 : vector<16x16xf32>
    %1011 = arith.addf %977, %1010 : vector<16x16xf32>
    %c101 = arith.constant 101 : index
    %1012 = memref.load %arg3[%c101] : memref<288xf32, #tpu.memory_space<smem>>
    %1013 = vector.broadcast %1012 : f32 to vector<16x16xf32>
    %1014 = arith.mulf %1013, %1003 : vector<16x16xf32>
    %1015 = arith.addf %981, %1014 : vector<16x16xf32>
    %c137 = arith.constant 137 : index
    %1016 = memref.load %arg3[%c137] : memref<288xf32, #tpu.memory_space<smem>>
    %1017 = vector.broadcast %1016 : f32 to vector<16x16xf32>
    %1018 = arith.mulf %1017, %1003 : vector<16x16xf32>
    %1019 = arith.addf %985, %1018 : vector<16x16xf32>
    %c173 = arith.constant 173 : index
    %1020 = memref.load %arg3[%c173] : memref<288xf32, #tpu.memory_space<smem>>
    %1021 = vector.broadcast %1020 : f32 to vector<16x16xf32>
    %1022 = arith.mulf %1021, %1003 : vector<16x16xf32>
    %1023 = arith.addf %989, %1022 : vector<16x16xf32>
    %c209 = arith.constant 209 : index
    %1024 = memref.load %arg3[%c209] : memref<288xf32, #tpu.memory_space<smem>>
    %1025 = vector.broadcast %1024 : f32 to vector<16x16xf32>
    %1026 = arith.mulf %1025, %1003 : vector<16x16xf32>
    %1027 = arith.addf %993, %1026 : vector<16x16xf32>
    %c245 = arith.constant 245 : index
    %1028 = memref.load %arg3[%c245] : memref<288xf32, #tpu.memory_space<smem>>
    %1029 = vector.broadcast %1028 : f32 to vector<16x16xf32>
    %1030 = arith.mulf %1029, %1003 : vector<16x16xf32>
    %1031 = arith.addf %997, %1030 : vector<16x16xf32>
    %c281 = arith.constant 281 : index
    %1032 = memref.load %arg3[%c281] : memref<288xf32, #tpu.memory_space<smem>>
    %1033 = vector.broadcast %1032 : f32 to vector<16x16xf32>
    %1034 = arith.mulf %1033, %1003 : vector<16x16xf32>
    %1035 = arith.addf %1001, %1034 : vector<16x16xf32>
    %c3_115 = arith.constant 3 : index
    %c1_116 = arith.constant 1 : index
    %c0_117 = arith.constant 0 : index
    %1036 = vector.load %arg8[%c3_115, %c1_116, %c0_117] : memref<4x18x18xf32, #tpu.memory_space<vmem>>, vector<1x16x16xf32>
    %1037 = vector.shape_cast %1036 : vector<1x16x16xf32> to vector<16x16xf32>
    %c30 = arith.constant 30 : index
    %1038 = memref.load %arg3[%c30] : memref<288xf32, #tpu.memory_space<smem>>
    %1039 = vector.broadcast %1038 : f32 to vector<16x16xf32>
    %1040 = arith.mulf %1039, %1037 : vector<16x16xf32>
    %1041 = arith.addf %1007, %1040 : vector<16x16xf32>
    %c66 = arith.constant 66 : index
    %1042 = memref.load %arg3[%c66] : memref<288xf32, #tpu.memory_space<smem>>
    %1043 = vector.broadcast %1042 : f32 to vector<16x16xf32>
    %1044 = arith.mulf %1043, %1037 : vector<16x16xf32>
    %1045 = arith.addf %1011, %1044 : vector<16x16xf32>
    %c102 = arith.constant 102 : index
    %1046 = memref.load %arg3[%c102] : memref<288xf32, #tpu.memory_space<smem>>
    %1047 = vector.broadcast %1046 : f32 to vector<16x16xf32>
    %1048 = arith.mulf %1047, %1037 : vector<16x16xf32>
    %1049 = arith.addf %1015, %1048 : vector<16x16xf32>
    %c138 = arith.constant 138 : index
    %1050 = memref.load %arg3[%c138] : memref<288xf32, #tpu.memory_space<smem>>
    %1051 = vector.broadcast %1050 : f32 to vector<16x16xf32>
    %1052 = arith.mulf %1051, %1037 : vector<16x16xf32>
    %1053 = arith.addf %1019, %1052 : vector<16x16xf32>
    %c174 = arith.constant 174 : index
    %1054 = memref.load %arg3[%c174] : memref<288xf32, #tpu.memory_space<smem>>
    %1055 = vector.broadcast %1054 : f32 to vector<16x16xf32>
    %1056 = arith.mulf %1055, %1037 : vector<16x16xf32>
    %1057 = arith.addf %1023, %1056 : vector<16x16xf32>
    %c210 = arith.constant 210 : index
    %1058 = memref.load %arg3[%c210] : memref<288xf32, #tpu.memory_space<smem>>
    %1059 = vector.broadcast %1058 : f32 to vector<16x16xf32>
    %1060 = arith.mulf %1059, %1037 : vector<16x16xf32>
    %1061 = arith.addf %1027, %1060 : vector<16x16xf32>
    %c246 = arith.constant 246 : index
    %1062 = memref.load %arg3[%c246] : memref<288xf32, #tpu.memory_space<smem>>
    %1063 = vector.broadcast %1062 : f32 to vector<16x16xf32>
    %1064 = arith.mulf %1063, %1037 : vector<16x16xf32>
    %1065 = arith.addf %1031, %1064 : vector<16x16xf32>
    %c282 = arith.constant 282 : index
    %1066 = memref.load %arg3[%c282] : memref<288xf32, #tpu.memory_space<smem>>
    %1067 = vector.broadcast %1066 : f32 to vector<16x16xf32>
    %1068 = arith.mulf %1067, %1037 : vector<16x16xf32>
    %1069 = arith.addf %1035, %1068 : vector<16x16xf32>
    %c3_118 = arith.constant 3 : index
    %c1_119 = arith.constant 1 : index
    %c1_120 = arith.constant 1 : index
    %1070 = vector.load %arg8[%c3_118, %c1_119, %c1_120] : memref<4x18x18xf32, #tpu.memory_space<vmem>>, vector<1x16x16xf32>
    %1071 = vector.shape_cast %1070 : vector<1x16x16xf32> to vector<16x16xf32>
    %c31 = arith.constant 31 : index
    %1072 = memref.load %arg3[%c31] : memref<288xf32, #tpu.memory_space<smem>>
    %1073 = vector.broadcast %1072 : f32 to vector<16x16xf32>
    %1074 = arith.mulf %1073, %1071 : vector<16x16xf32>
    %1075 = arith.addf %1041, %1074 : vector<16x16xf32>
    %c67 = arith.constant 67 : index
    %1076 = memref.load %arg3[%c67] : memref<288xf32, #tpu.memory_space<smem>>
    %1077 = vector.broadcast %1076 : f32 to vector<16x16xf32>
    %1078 = arith.mulf %1077, %1071 : vector<16x16xf32>
    %1079 = arith.addf %1045, %1078 : vector<16x16xf32>
    %c103 = arith.constant 103 : index
    %1080 = memref.load %arg3[%c103] : memref<288xf32, #tpu.memory_space<smem>>
    %1081 = vector.broadcast %1080 : f32 to vector<16x16xf32>
    %1082 = arith.mulf %1081, %1071 : vector<16x16xf32>
    %1083 = arith.addf %1049, %1082 : vector<16x16xf32>
    %c139 = arith.constant 139 : index
    %1084 = memref.load %arg3[%c139] : memref<288xf32, #tpu.memory_space<smem>>
    %1085 = vector.broadcast %1084 : f32 to vector<16x16xf32>
    %1086 = arith.mulf %1085, %1071 : vector<16x16xf32>
    %1087 = arith.addf %1053, %1086 : vector<16x16xf32>
    %c175 = arith.constant 175 : index
    %1088 = memref.load %arg3[%c175] : memref<288xf32, #tpu.memory_space<smem>>
    %1089 = vector.broadcast %1088 : f32 to vector<16x16xf32>
    %1090 = arith.mulf %1089, %1071 : vector<16x16xf32>
    %1091 = arith.addf %1057, %1090 : vector<16x16xf32>
    %c211 = arith.constant 211 : index
    %1092 = memref.load %arg3[%c211] : memref<288xf32, #tpu.memory_space<smem>>
    %1093 = vector.broadcast %1092 : f32 to vector<16x16xf32>
    %1094 = arith.mulf %1093, %1071 : vector<16x16xf32>
    %1095 = arith.addf %1061, %1094 : vector<16x16xf32>
    %c247 = arith.constant 247 : index
    %1096 = memref.load %arg3[%c247] : memref<288xf32, #tpu.memory_space<smem>>
    %1097 = vector.broadcast %1096 : f32 to vector<16x16xf32>
    %1098 = arith.mulf %1097, %1071 : vector<16x16xf32>
    %1099 = arith.addf %1065, %1098 : vector<16x16xf32>
    %c283 = arith.constant 283 : index
    %1100 = memref.load %arg3[%c283] : memref<288xf32, #tpu.memory_space<smem>>
    %1101 = vector.broadcast %1100 : f32 to vector<16x16xf32>
    %1102 = arith.mulf %1101, %1071 : vector<16x16xf32>
    %1103 = arith.addf %1069, %1102 : vector<16x16xf32>
    %c3_121 = arith.constant 3 : index
    %c1_122 = arith.constant 1 : index
    %c2_123 = arith.constant 2 : index
    %1104 = vector.load %arg8[%c3_121, %c1_122, %c2_123] : memref<4x18x18xf32, #tpu.memory_space<vmem>>, vector<1x16x16xf32>
    %1105 = vector.shape_cast %1104 : vector<1x16x16xf32> to vector<16x16xf32>
    %c32 = arith.constant 32 : index
    %1106 = memref.load %arg3[%c32] : memref<288xf32, #tpu.memory_space<smem>>
    %1107 = vector.broadcast %1106 : f32 to vector<16x16xf32>
    %1108 = arith.mulf %1107, %1105 : vector<16x16xf32>
    %1109 = arith.addf %1075, %1108 : vector<16x16xf32>
    %c68 = arith.constant 68 : index
    %1110 = memref.load %arg3[%c68] : memref<288xf32, #tpu.memory_space<smem>>
    %1111 = vector.broadcast %1110 : f32 to vector<16x16xf32>
    %1112 = arith.mulf %1111, %1105 : vector<16x16xf32>
    %1113 = arith.addf %1079, %1112 : vector<16x16xf32>
    %c104 = arith.constant 104 : index
    %1114 = memref.load %arg3[%c104] : memref<288xf32, #tpu.memory_space<smem>>
    %1115 = vector.broadcast %1114 : f32 to vector<16x16xf32>
    %1116 = arith.mulf %1115, %1105 : vector<16x16xf32>
    %1117 = arith.addf %1083, %1116 : vector<16x16xf32>
    %c140 = arith.constant 140 : index
    %1118 = memref.load %arg3[%c140] : memref<288xf32, #tpu.memory_space<smem>>
    %1119 = vector.broadcast %1118 : f32 to vector<16x16xf32>
    %1120 = arith.mulf %1119, %1105 : vector<16x16xf32>
    %1121 = arith.addf %1087, %1120 : vector<16x16xf32>
    %c176 = arith.constant 176 : index
    %1122 = memref.load %arg3[%c176] : memref<288xf32, #tpu.memory_space<smem>>
    %1123 = vector.broadcast %1122 : f32 to vector<16x16xf32>
    %1124 = arith.mulf %1123, %1105 : vector<16x16xf32>
    %1125 = arith.addf %1091, %1124 : vector<16x16xf32>
    %c212 = arith.constant 212 : index
    %1126 = memref.load %arg3[%c212] : memref<288xf32, #tpu.memory_space<smem>>
    %1127 = vector.broadcast %1126 : f32 to vector<16x16xf32>
    %1128 = arith.mulf %1127, %1105 : vector<16x16xf32>
    %1129 = arith.addf %1095, %1128 : vector<16x16xf32>
    %c248 = arith.constant 248 : index
    %1130 = memref.load %arg3[%c248] : memref<288xf32, #tpu.memory_space<smem>>
    %1131 = vector.broadcast %1130 : f32 to vector<16x16xf32>
    %1132 = arith.mulf %1131, %1105 : vector<16x16xf32>
    %1133 = arith.addf %1099, %1132 : vector<16x16xf32>
    %c284 = arith.constant 284 : index
    %1134 = memref.load %arg3[%c284] : memref<288xf32, #tpu.memory_space<smem>>
    %1135 = vector.broadcast %1134 : f32 to vector<16x16xf32>
    %1136 = arith.mulf %1135, %1105 : vector<16x16xf32>
    %1137 = arith.addf %1103, %1136 : vector<16x16xf32>
    %c3_124 = arith.constant 3 : index
    %c2_125 = arith.constant 2 : index
    %c0_126 = arith.constant 0 : index
    %1138 = vector.load %arg8[%c3_124, %c2_125, %c0_126] : memref<4x18x18xf32, #tpu.memory_space<vmem>>, vector<1x16x16xf32>
    %1139 = vector.shape_cast %1138 : vector<1x16x16xf32> to vector<16x16xf32>
    %c33 = arith.constant 33 : index
    %1140 = memref.load %arg3[%c33] : memref<288xf32, #tpu.memory_space<smem>>
    %1141 = vector.broadcast %1140 : f32 to vector<16x16xf32>
    %1142 = arith.mulf %1141, %1139 : vector<16x16xf32>
    %1143 = arith.addf %1109, %1142 : vector<16x16xf32>
    %c69 = arith.constant 69 : index
    %1144 = memref.load %arg3[%c69] : memref<288xf32, #tpu.memory_space<smem>>
    %1145 = vector.broadcast %1144 : f32 to vector<16x16xf32>
    %1146 = arith.mulf %1145, %1139 : vector<16x16xf32>
    %1147 = arith.addf %1113, %1146 : vector<16x16xf32>
    %c105 = arith.constant 105 : index
    %1148 = memref.load %arg3[%c105] : memref<288xf32, #tpu.memory_space<smem>>
    %1149 = vector.broadcast %1148 : f32 to vector<16x16xf32>
    %1150 = arith.mulf %1149, %1139 : vector<16x16xf32>
    %1151 = arith.addf %1117, %1150 : vector<16x16xf32>
    %c141 = arith.constant 141 : index
    %1152 = memref.load %arg3[%c141] : memref<288xf32, #tpu.memory_space<smem>>
    %1153 = vector.broadcast %1152 : f32 to vector<16x16xf32>
    %1154 = arith.mulf %1153, %1139 : vector<16x16xf32>
    %1155 = arith.addf %1121, %1154 : vector<16x16xf32>
    %c177 = arith.constant 177 : index
    %1156 = memref.load %arg3[%c177] : memref<288xf32, #tpu.memory_space<smem>>
    %1157 = vector.broadcast %1156 : f32 to vector<16x16xf32>
    %1158 = arith.mulf %1157, %1139 : vector<16x16xf32>
    %1159 = arith.addf %1125, %1158 : vector<16x16xf32>
    %c213 = arith.constant 213 : index
    %1160 = memref.load %arg3[%c213] : memref<288xf32, #tpu.memory_space<smem>>
    %1161 = vector.broadcast %1160 : f32 to vector<16x16xf32>
    %1162 = arith.mulf %1161, %1139 : vector<16x16xf32>
    %1163 = arith.addf %1129, %1162 : vector<16x16xf32>
    %c249 = arith.constant 249 : index
    %1164 = memref.load %arg3[%c249] : memref<288xf32, #tpu.memory_space<smem>>
    %1165 = vector.broadcast %1164 : f32 to vector<16x16xf32>
    %1166 = arith.mulf %1165, %1139 : vector<16x16xf32>
    %1167 = arith.addf %1133, %1166 : vector<16x16xf32>
    %c285 = arith.constant 285 : index
    %1168 = memref.load %arg3[%c285] : memref<288xf32, #tpu.memory_space<smem>>
    %1169 = vector.broadcast %1168 : f32 to vector<16x16xf32>
    %1170 = arith.mulf %1169, %1139 : vector<16x16xf32>
    %1171 = arith.addf %1137, %1170 : vector<16x16xf32>
    %c3_127 = arith.constant 3 : index
    %c2_128 = arith.constant 2 : index
    %c1_129 = arith.constant 1 : index
    %1172 = vector.load %arg8[%c3_127, %c2_128, %c1_129] : memref<4x18x18xf32, #tpu.memory_space<vmem>>, vector<1x16x16xf32>
    %1173 = vector.shape_cast %1172 : vector<1x16x16xf32> to vector<16x16xf32>
    %c34 = arith.constant 34 : index
    %1174 = memref.load %arg3[%c34] : memref<288xf32, #tpu.memory_space<smem>>
    %1175 = vector.broadcast %1174 : f32 to vector<16x16xf32>
    %1176 = arith.mulf %1175, %1173 : vector<16x16xf32>
    %1177 = arith.addf %1143, %1176 : vector<16x16xf32>
    %c70 = arith.constant 70 : index
    %1178 = memref.load %arg3[%c70] : memref<288xf32, #tpu.memory_space<smem>>
    %1179 = vector.broadcast %1178 : f32 to vector<16x16xf32>
    %1180 = arith.mulf %1179, %1173 : vector<16x16xf32>
    %1181 = arith.addf %1147, %1180 : vector<16x16xf32>
    %c106 = arith.constant 106 : index
    %1182 = memref.load %arg3[%c106] : memref<288xf32, #tpu.memory_space<smem>>
    %1183 = vector.broadcast %1182 : f32 to vector<16x16xf32>
    %1184 = arith.mulf %1183, %1173 : vector<16x16xf32>
    %1185 = arith.addf %1151, %1184 : vector<16x16xf32>
    %c142 = arith.constant 142 : index
    %1186 = memref.load %arg3[%c142] : memref<288xf32, #tpu.memory_space<smem>>
    %1187 = vector.broadcast %1186 : f32 to vector<16x16xf32>
    %1188 = arith.mulf %1187, %1173 : vector<16x16xf32>
    %1189 = arith.addf %1155, %1188 : vector<16x16xf32>
    %c178 = arith.constant 178 : index
    %1190 = memref.load %arg3[%c178] : memref<288xf32, #tpu.memory_space<smem>>
    %1191 = vector.broadcast %1190 : f32 to vector<16x16xf32>
    %1192 = arith.mulf %1191, %1173 : vector<16x16xf32>
    %1193 = arith.addf %1159, %1192 : vector<16x16xf32>
    %c214 = arith.constant 214 : index
    %1194 = memref.load %arg3[%c214] : memref<288xf32, #tpu.memory_space<smem>>
    %1195 = vector.broadcast %1194 : f32 to vector<16x16xf32>
    %1196 = arith.mulf %1195, %1173 : vector<16x16xf32>
    %1197 = arith.addf %1163, %1196 : vector<16x16xf32>
    %c250 = arith.constant 250 : index
    %1198 = memref.load %arg3[%c250] : memref<288xf32, #tpu.memory_space<smem>>
    %1199 = vector.broadcast %1198 : f32 to vector<16x16xf32>
    %1200 = arith.mulf %1199, %1173 : vector<16x16xf32>
    %1201 = arith.addf %1167, %1200 : vector<16x16xf32>
    %c286 = arith.constant 286 : index
    %1202 = memref.load %arg3[%c286] : memref<288xf32, #tpu.memory_space<smem>>
    %1203 = vector.broadcast %1202 : f32 to vector<16x16xf32>
    %1204 = arith.mulf %1203, %1173 : vector<16x16xf32>
    %1205 = arith.addf %1171, %1204 : vector<16x16xf32>
    %c3_130 = arith.constant 3 : index
    %c2_131 = arith.constant 2 : index
    %c2_132 = arith.constant 2 : index
    %1206 = vector.load %arg8[%c3_130, %c2_131, %c2_132] : memref<4x18x18xf32, #tpu.memory_space<vmem>>, vector<1x16x16xf32>
    %1207 = vector.shape_cast %1206 : vector<1x16x16xf32> to vector<16x16xf32>
    %c35 = arith.constant 35 : index
    %1208 = memref.load %arg3[%c35] : memref<288xf32, #tpu.memory_space<smem>>
    %1209 = vector.broadcast %1208 : f32 to vector<16x16xf32>
    %1210 = arith.mulf %1209, %1207 : vector<16x16xf32>
    %1211 = arith.addf %1177, %1210 : vector<16x16xf32>
    %c71 = arith.constant 71 : index
    %1212 = memref.load %arg3[%c71] : memref<288xf32, #tpu.memory_space<smem>>
    %1213 = vector.broadcast %1212 : f32 to vector<16x16xf32>
    %1214 = arith.mulf %1213, %1207 : vector<16x16xf32>
    %1215 = arith.addf %1181, %1214 : vector<16x16xf32>
    %c107 = arith.constant 107 : index
    %1216 = memref.load %arg3[%c107] : memref<288xf32, #tpu.memory_space<smem>>
    %1217 = vector.broadcast %1216 : f32 to vector<16x16xf32>
    %1218 = arith.mulf %1217, %1207 : vector<16x16xf32>
    %1219 = arith.addf %1185, %1218 : vector<16x16xf32>
    %c143 = arith.constant 143 : index
    %1220 = memref.load %arg3[%c143] : memref<288xf32, #tpu.memory_space<smem>>
    %1221 = vector.broadcast %1220 : f32 to vector<16x16xf32>
    %1222 = arith.mulf %1221, %1207 : vector<16x16xf32>
    %1223 = arith.addf %1189, %1222 : vector<16x16xf32>
    %c179 = arith.constant 179 : index
    %1224 = memref.load %arg3[%c179] : memref<288xf32, #tpu.memory_space<smem>>
    %1225 = vector.broadcast %1224 : f32 to vector<16x16xf32>
    %1226 = arith.mulf %1225, %1207 : vector<16x16xf32>
    %1227 = arith.addf %1193, %1226 : vector<16x16xf32>
    %c215 = arith.constant 215 : index
    %1228 = memref.load %arg3[%c215] : memref<288xf32, #tpu.memory_space<smem>>
    %1229 = vector.broadcast %1228 : f32 to vector<16x16xf32>
    %1230 = arith.mulf %1229, %1207 : vector<16x16xf32>
    %1231 = arith.addf %1197, %1230 : vector<16x16xf32>
    %c251 = arith.constant 251 : index
    %1232 = memref.load %arg3[%c251] : memref<288xf32, #tpu.memory_space<smem>>
    %1233 = vector.broadcast %1232 : f32 to vector<16x16xf32>
    %1234 = arith.mulf %1233, %1207 : vector<16x16xf32>
    %1235 = arith.addf %1201, %1234 : vector<16x16xf32>
    %c287 = arith.constant 287 : index
    %1236 = memref.load %arg3[%c287] : memref<288xf32, #tpu.memory_space<smem>>
    %1237 = vector.broadcast %1236 : f32 to vector<16x16xf32>
    %1238 = arith.mulf %1237, %1207 : vector<16x16xf32>
    %1239 = arith.addf %1205, %1238 : vector<16x16xf32>
    %cst_133 = arith.constant 0.000000e+00 : f32
    %1240 = vector.broadcast %cst_133 : f32 to vector<16x16xf32>
    %c0_134 = arith.constant 0 : index
    %1241 = memref.load %arg6[%c0_134] : memref<1xf32, #tpu.memory_space<smem>>
    %1242 = vector.broadcast %1241 : f32 to vector<16x16xf32>
    %1243 = arith.addf %1240, %1242 : vector<16x16xf32>
    %c0_135 = arith.constant 0 : index
    %1244 = memref.load %arg4[%c0_135] : memref<8xf32, #tpu.memory_space<smem>>
    %1245 = vector.broadcast %1244 : f32 to vector<16x16xf32>
    %1246 = arith.addf %1211, %1245 : vector<16x16xf32>
    %cst_136 = arith.constant 0.000000e+00 : f32
    %1247 = vector.broadcast %cst_136 : f32 to vector<16x16xf32>
    %1248 = arith.maximumf %1246, %1247 : vector<16x16xf32>
    %c0_137 = arith.constant 0 : index
    %1249 = memref.load %arg5[%c0_137] : memref<8xf32, #tpu.memory_space<smem>>
    %1250 = vector.broadcast %1249 : f32 to vector<16x16xf32>
    %1251 = arith.mulf %1250, %1248 : vector<16x16xf32>
    %1252 = arith.addf %1243, %1251 : vector<16x16xf32>
    %c1_138 = arith.constant 1 : index
    %1253 = memref.load %arg4[%c1_138] : memref<8xf32, #tpu.memory_space<smem>>
    %1254 = vector.broadcast %1253 : f32 to vector<16x16xf32>
    %1255 = arith.addf %1215, %1254 : vector<16x16xf32>
    %cst_139 = arith.constant 0.000000e+00 : f32
    %1256 = vector.broadcast %cst_139 : f32 to vector<16x16xf32>
    %1257 = arith.maximumf %1255, %1256 : vector<16x16xf32>
    %c1_140 = arith.constant 1 : index
    %1258 = memref.load %arg5[%c1_140] : memref<8xf32, #tpu.memory_space<smem>>
    %1259 = vector.broadcast %1258 : f32 to vector<16x16xf32>
    %1260 = arith.mulf %1259, %1257 : vector<16x16xf32>
    %1261 = arith.addf %1252, %1260 : vector<16x16xf32>
    %c2_141 = arith.constant 2 : index
    %1262 = memref.load %arg4[%c2_141] : memref<8xf32, #tpu.memory_space<smem>>
    %1263 = vector.broadcast %1262 : f32 to vector<16x16xf32>
    %1264 = arith.addf %1219, %1263 : vector<16x16xf32>
    %cst_142 = arith.constant 0.000000e+00 : f32
    %1265 = vector.broadcast %cst_142 : f32 to vector<16x16xf32>
    %1266 = arith.maximumf %1264, %1265 : vector<16x16xf32>
    %c2_143 = arith.constant 2 : index
    %1267 = memref.load %arg5[%c2_143] : memref<8xf32, #tpu.memory_space<smem>>
    %1268 = vector.broadcast %1267 : f32 to vector<16x16xf32>
    %1269 = arith.mulf %1268, %1266 : vector<16x16xf32>
    %1270 = arith.addf %1261, %1269 : vector<16x16xf32>
    %c3_144 = arith.constant 3 : index
    %1271 = memref.load %arg4[%c3_144] : memref<8xf32, #tpu.memory_space<smem>>
    %1272 = vector.broadcast %1271 : f32 to vector<16x16xf32>
    %1273 = arith.addf %1223, %1272 : vector<16x16xf32>
    %cst_145 = arith.constant 0.000000e+00 : f32
    %1274 = vector.broadcast %cst_145 : f32 to vector<16x16xf32>
    %1275 = arith.maximumf %1273, %1274 : vector<16x16xf32>
    %c3_146 = arith.constant 3 : index
    %1276 = memref.load %arg5[%c3_146] : memref<8xf32, #tpu.memory_space<smem>>
    %1277 = vector.broadcast %1276 : f32 to vector<16x16xf32>
    %1278 = arith.mulf %1277, %1275 : vector<16x16xf32>
    %1279 = arith.addf %1270, %1278 : vector<16x16xf32>
    %c4_147 = arith.constant 4 : index
    %1280 = memref.load %arg4[%c4_147] : memref<8xf32, #tpu.memory_space<smem>>
    %1281 = vector.broadcast %1280 : f32 to vector<16x16xf32>
    %1282 = arith.addf %1227, %1281 : vector<16x16xf32>
    %cst_148 = arith.constant 0.000000e+00 : f32
    %1283 = vector.broadcast %cst_148 : f32 to vector<16x16xf32>
    %1284 = arith.maximumf %1282, %1283 : vector<16x16xf32>
    %c4_149 = arith.constant 4 : index
    %1285 = memref.load %arg5[%c4_149] : memref<8xf32, #tpu.memory_space<smem>>
    %1286 = vector.broadcast %1285 : f32 to vector<16x16xf32>
    %1287 = arith.mulf %1286, %1284 : vector<16x16xf32>
    %1288 = arith.addf %1279, %1287 : vector<16x16xf32>
    %c5_150 = arith.constant 5 : index
    %1289 = memref.load %arg4[%c5_150] : memref<8xf32, #tpu.memory_space<smem>>
    %1290 = vector.broadcast %1289 : f32 to vector<16x16xf32>
    %1291 = arith.addf %1231, %1290 : vector<16x16xf32>
    %cst_151 = arith.constant 0.000000e+00 : f32
    %1292 = vector.broadcast %cst_151 : f32 to vector<16x16xf32>
    %1293 = arith.maximumf %1291, %1292 : vector<16x16xf32>
    %c5_152 = arith.constant 5 : index
    %1294 = memref.load %arg5[%c5_152] : memref<8xf32, #tpu.memory_space<smem>>
    %1295 = vector.broadcast %1294 : f32 to vector<16x16xf32>
    %1296 = arith.mulf %1295, %1293 : vector<16x16xf32>
    %1297 = arith.addf %1288, %1296 : vector<16x16xf32>
    %c6_153 = arith.constant 6 : index
    %1298 = memref.load %arg4[%c6_153] : memref<8xf32, #tpu.memory_space<smem>>
    %1299 = vector.broadcast %1298 : f32 to vector<16x16xf32>
    %1300 = arith.addf %1235, %1299 : vector<16x16xf32>
    %cst_154 = arith.constant 0.000000e+00 : f32
    %1301 = vector.broadcast %cst_154 : f32 to vector<16x16xf32>
    %1302 = arith.maximumf %1300, %1301 : vector<16x16xf32>
    %c6_155 = arith.constant 6 : index
    %1303 = memref.load %arg5[%c6_155] : memref<8xf32, #tpu.memory_space<smem>>
    %1304 = vector.broadcast %1303 : f32 to vector<16x16xf32>
    %1305 = arith.mulf %1304, %1302 : vector<16x16xf32>
    %1306 = arith.addf %1297, %1305 : vector<16x16xf32>
    %c7_156 = arith.constant 7 : index
    %1307 = memref.load %arg4[%c7_156] : memref<8xf32, #tpu.memory_space<smem>>
    %1308 = vector.broadcast %1307 : f32 to vector<16x16xf32>
    %1309 = arith.addf %1239, %1308 : vector<16x16xf32>
    %cst_157 = arith.constant 0.000000e+00 : f32
    %1310 = vector.broadcast %cst_157 : f32 to vector<16x16xf32>
    %1311 = arith.maximumf %1309, %1310 : vector<16x16xf32>
    %c7_158 = arith.constant 7 : index
    %1312 = memref.load %arg5[%c7_158] : memref<8xf32, #tpu.memory_space<smem>>
    %1313 = vector.broadcast %1312 : f32 to vector<16x16xf32>
    %1314 = arith.mulf %1313, %1311 : vector<16x16xf32>
    %1315 = arith.addf %1306, %1314 : vector<16x16xf32>
    %1316 = arith.negf %1315 : vector<16x16xf32>
    %1317 = math.exp %1316 : vector<16x16xf32>
    %cst_159 = arith.constant 1.000000e+00 : f32
    %1318 = vector.broadcast %cst_159 : f32 to vector<16x16xf32>
    %1319 = arith.addf %1318, %1317 : vector<16x16xf32>
    %1320 = arith.divf %1318, %1319 : vector<16x16xf32>
    %c0_160 = arith.constant 0 : index
    %c0_161 = arith.constant 0 : index
    %c0_162 = arith.constant 0 : index
    %c0_163 = arith.constant 0 : index
    %1321 = vector.load %arg2[%c0_160, %c0_161, %c0_162, %c0_163] : memref<1x3x16x16xf32, #tpu.memory_space<vmem>>, vector<1x3x16x16xf32>
    %1322 = vector.shape_cast %1321 : vector<1x3x16x16xf32> to vector<3x16x16xf32>
    %1323 = vector.shape_cast %1320 : vector<16x16xf32> to vector<1x16x16xf32>
    %1324 = vector.broadcast %1323 : vector<1x16x16xf32> to vector<3x16x16xf32>
    %1325 = arith.mulf %1322, %1324 : vector<3x16x16xf32>
    %c0_164 = arith.constant 0 : index
    %c0_165 = arith.constant 0 : index
    %c0_166 = arith.constant 0 : index
    %c0_167 = arith.constant 0 : index
    %1326 = vector.load %arg7[%c0_164, %c0_165, %c0_166, %c0_167] : memref<1x3x16x16xf32, #tpu.memory_space<vmem>>, vector<1x3x16x16xf32>
    %1327 = vector.shape_cast %1326 : vector<1x3x16x16xf32> to vector<3x16x16xf32>
    %1328 = vector.shape_cast %1325 : vector<3x16x16xf32> to vector<1x3x16x16xf32>
    tpu.vector_store %arg7[%c0_164, %c0_165, %c0_166, %c0_167], %1328 {strides = array<i32>} : memref<1x3x16x16xf32, #tpu.memory_space<vmem>>, vector<1x3x16x16xf32>,
    return
  }
  func.func @transform_0(%arg0: i32) -> (i32, i32, i32, i32) {
    %c0_i32 = arith.constant 0 : i32
    %c0_i32_0 = arith.constant 0 : i32
    %c0_i32_1 = arith.constant 0 : i32
    %c0_i32_2 = arith.constant 0 : i32
    return %arg0, %c0_i32, %c0_i32_0, %c0_i32_1 : i32, i32, i32, i32
  }
  func.func @transform_1(%arg0: i32) -> (i32, i32, i32, i32) {
    %c0_i32 = arith.constant 0 : i32
    %c0_i32_0 = arith.constant 0 : i32
    %c0_i32_1 = arith.constant 0 : i32
    %c0_i32_2 = arith.constant 0 : i32
    return %arg0, %c0_i32, %c0_i32_0, %c0_i32_1 : i32, i32, i32, i32
  }
  func.func @transform_2(%arg0: i32) -> i32 {
    %c0_i32 = arith.constant 0 : i32
    %c0_i32_0 = arith.constant 0 : i32
    return %c0_i32 : i32
  }
  func.func @transform_3(%arg0: i32) -> i32 {
    %c0_i32 = arith.constant 0 : i32
    %c0_i32_0 = arith.constant 0 : i32
    return %c0_i32 : i32
  }
  func.func @transform_4(%arg0: i32) -> i32 {
    %c0_i32 = arith.constant 0 : i32
    %c0_i32_0 = arith.constant 0 : i32
    return %c0_i32 : i32
  }
  func.func @transform_5(%arg0: i32) -> i32 {
    %c0_i32 = arith.constant 0 : i32
    %c0_i32_0 = arith.constant 0 : i32
    return %c0_i32 : i32
  }
  func.func @transform_6(%arg0: i32) -> (i32, i32, i32, i32) {
    %c0_i32 = arith.constant 0 : i32
    %c0_i32_0 = arith.constant 0 : i32
    %c0_i32_1 = arith.constant 0 : i32
    %c0_i32_2 = arith.constant 0 : i32
    return %arg0, %c0_i32, %c0_i32_0, %c0_i32_1 : i32, i32, i32, i32
  }
}

</mosaic_0001>

<llo_original>
// kernel: tpu_custom_call.1
$region0: #{tpu_custom_call.1}
  #allocation0 [shape = 'u32[]', space=smem, size = 0x4, offset = 0x4, fixed_abs, tag = 'smem constant byte address 0x4 - core index']
  #allocation1 [shape = 'u32[144,128]{1,0:T(1,128)}', space=vmem, size = 0x12000, scoped, tag = 'internal scratch']
  #allocation2 [shape = 'f32[4,18,18]{2,1,0:T(8,128)}', space=vmem, size = 0xc000, scoped, tag = 'scratch operand']
  #allocation3 [shape = 'f32[1]{0:T(128)S(6)}', space=smem, size = 0x200, scoped, tag = 'scoped memory for tpu_custom_call.1']
  %s0 = inlined_call_operand.hbm [shape: f32[2,1,16,16], index: 0, kind: input, shape index: {}]
  %s1 = inlined_call_operand.hbm [shape: f32[2,3,16,16], index: 1, kind: input, shape index: {}]
  %s2 = inlined_call_operand.vmem [shape: f32[288], index: 2, kind: input, shape index: {}]
  %s3 = inlined_call_operand.vmem [shape: f32[8], index: 3, kind: input, shape index: {}]
  %s4 = inlined_call_operand.vmem [shape: f32[8], index: 4, kind: input, shape index: {}]
  %s5 = inlined_call_operand.<no memory space> [shape: f32[1], index: 5, kind: input, shape index: {}]
  %s6 = inlined_call_operand.hbm [shape: f32[2,3,16,16], index: 6, kind: output, shape index: {}]
  %s7 = sld [smem:[#allocation0]]
  $region77: #{tpu_custom_call.1} parent=0
    _
  %s9 = ssub.s32 1, %s7
  %s10 = scalar_select 0, %s9, %s7
  %11 = sst [smem:[#allocation3]] %s5
  $region1: #{tpu_custom_call.1} parent=0
    #allocation4 [shape = 'u8[16384]{0}', space=vmem, size = 0x4000, scoped, tag = 'input window, operand 0']
    #allocation5 [shape = 's32[2]{0}', space=sflag, size = 0x8, scoped, tag = 'scoped memory for tpu_custom_call.1']
    #allocation6 [shape = 's32[2]{0}', space=sflag, size = 0x8, scoped, tag = 'scoped memory for tpu_custom_call.1']
    #allocation7 [shape = 's32[2]{0}', space=sflag, size = 0x8, scoped, tag = 'scoped memory for tpu_custom_call.1']
    #allocation8 [shape = 'u8[49152]{0}', space=vmem, size = 0xc000, scoped, tag = 'input window, operand 1']
    #allocation9 [shape = 's32[2]{0}', space=sflag, size = 0x8, scoped, tag = 'scoped memory for tpu_custom_call.1']
    #allocation10 [shape = 'u8[1536]{0}', space=smem, size = 0x600, scoped, tag = 'input window, operand 2, single buffered']
    #allocation11 [shape = 'u8[512]{0}', space=smem, size = 0x200, scoped, tag = 'input window, operand 3, single buffered']
    #allocation12 [shape = 's32[1]{0}', space=sflag, size = 0x4, scoped, tag = 'scoped memory for tpu_custom_call.1']
    #allocation13 [shape = 'u8[512]{0}', space=smem, size = 0x200, scoped, tag = 'input window, operand 4, single buffered']
    #allocation14 [shape = 'u8[49152]{0}', space=vmem, size = 0xc000, scoped, tag = 'output window, operand 0']
    %12 = vsyncpa [#allocation5], 0
    %s13 = scalar_lea.sflag [#allocation5], 1
    %14 = vsyncpa %s13, 0
    %15 = vsyncpa [#allocation9], 0
    %s16 = scalar_lea.sflag [#allocation9], 1
    %17 = vsyncpa %s16, 0
    %18 = vsyncpa [#allocation7], 0
    %19 = vsyncpa [#allocation12], 0
    %20 = vsyncpa [#allocation6], 0
    %s21 = scalar_lea.sflag [#allocation6], 1
    %22 = vsyncpa %s21, 0
    loop: start=0, step=1, limit=4
    $region2: #{tpu_custom_call.1} parent=1 // loop_pre_header
      _
    $region3: #{tpu_custom_call.1} parent=1 // loop_header
      %s24 = sphi 0, %s28
      %p25 = scmp.ge.s32.totalorder %s24, 4
      %s34 = sphi 0, %s36
      %s37 = sphi 0, %s34
      %s38 = sphi 0, %s37
      %s54 = sphi 0, %s38
      %s60 = sphi 0, %s62
      %s63 = sphi 0, %s60
      %s64 = sphi 0, %s63
      %s80 = sphi 0, %s64
      %s84 = sphi 0, %s84
      %s86 = sphi 0, %s84
      %s87 = sphi 0, %s86
      %s101 = sphi 0, %s87
      %s105 = sphi 0, %s105
      %s107 = sphi 0, %s105
      %s108 = sphi 0, %s107
      %s122 = sphi 0, %s108
      %s126 = sphi 0, %s126
      %s128 = sphi 0, %s126
      %s129 = sphi 0, %s128
      %s143 = sphi 0, %s129
      %s147 = sphi 0, %s147
      %s149 = sphi 0, %s147
      %s150 = sphi 0, %s149
      %s164 = sphi 0, %s150
      %s170 = sphi 0, %s172
      %s173 = sphi 0, %s170
      %s174 = sphi 0, %s173
      %s190 = sphi 0, %s174
    $region4: #{tpu_custom_call.1} parent=1 // loop_header_branch
      %27 = sbr.rel (%p25) target = $region8
    $region5: #{tpu_custom_call.1} parent=1 // loop_body
      %s29 = ssub.s32 %s24, 1
      %s30 = ssub.s32 %s24, 2
      %s31 = sadd.s32 %s24, 1
      %s32 = ssub.s32 %s24, %s31
      %p33 = scmp.eq.s32.totalorder %s32, 0
      %s35 = sadd.s32 %s34, 1
      %s36 = scalar_select %p33, %s34, %s35
      %p39 = pneg %p33
      %p40 = scmp.eq.s32.totalorder %s24, 1
      %p41 = por %p39, %p40
      %p42 = scmp.ne.s32.totalorder %s34, %s37
      %p43 = scmp.eq.s32.totalorder %s24, 0
      %p44 = por %p42, %p43
      %p45 = scmp.ne.s32.totalorder %s34, %s37
      %p46 = scmp.eq.s32.totalorder %s29, 1
      %p47 = por %p45, %p46
      %p48 = scmp.ne.s32.totalorder %s37, %s38
      %p49 = scmp.eq.s32.totalorder %s29, 0
      %p50 = por %p48, %p49
      %p51 = scmp.ne.s32.totalorder %s37, %s38
      %p52 = scmp.eq.s32.totalorder %s30, 1
      %p53 = por %p51, %p52
      %p55 = scmp.ne.s32.totalorder %s38, %s54
      %p56 = scmp.eq.s32.totalorder %s30, 0
      %p57 = por %p55, %p56
      %s58 = ssub.s32 %s24, %s31
      %p59 = scmp.eq.s32.totalorder %s58, 0
      %s61 = sadd.s32 %s60, 1
      %s62 = scalar_select %p59, %s60, %s61
      %p65 = pneg %p59
      %p66 = scmp.eq.s32.totalorder %s24, 1
      %p67 = por %p65, %p66
      %p68 = scmp.ne.s32.totalorder %s60, %s63
      %p69 = scmp.eq.s32.totalorder %s24, 0
      %p70 = por %p68, %p69
      %p71 = scmp.ne.s32.totalorder %s60, %s63
      %p72 = scmp.eq.s32.totalorder %s29, 1
      %p73 = por %p71, %p72
      %p74 = scmp.ne.s32.totalorder %s63, %s64
      %p75 = scmp.eq.s32.totalorder %s29, 0
      %p76 = por %p74, %p75
      %p77 = scmp.ne.s32.totalorder %s63, %s64
      %p78 = scmp.eq.s32.totalorder %s30, 1
      %p79 = por %p77, %p78
      %p81 = scmp.ne.s32.totalorder %s64, %s80
      %p82 = scmp.eq.s32.totalorder %s30, 0
      %p83 = por %p81, %p82
      %s85 = sadd.s32 %s84, 1
      %p88 = scmp.eq.s32.totalorder %s24, 1
      %p89 = scmp.ne.s32.totalorder %s84, %s86
      %p90 = scmp.eq.s32.totalorder %s24, 0
      %p91 = por %p89, %p90
      %p92 = scmp.ne.s32.totalorder %s84, %s86
      %p93 = scmp.eq.s32.totalorder %s29, 1
      %p94 = por %p92, %p93
      %p95 = scmp.ne.s32.totalorder %s86, %s87
      %p96 = scmp.eq.s32.totalorder %s29, 0
      %p97 = por %p95, %p96
      %p98 = scmp.ne.s32.totalorder %s86, %s87
      %p99 = scmp.eq.s32.totalorder %s30, 1
      %p100 = por %p98, %p99
      %p102 = scmp.ne.s32.totalorder %s87, %s101
      %p103 = scmp.eq.s32.totalorder %s30, 0
      %p104 = por %p102, %p103
      %s106 = sadd.s32 %s105, 1
      %p109 = scmp.eq.s32.totalorder %s24, 1
      %p110 = scmp.ne.s32.totalorder %s105, %s107
      %p111 = scmp.eq.s32.totalorder %s24, 0
      %p112 = por %p110, %p111
      %p113 = scmp.ne.s32.totalorder %s105, %s107
      %p114 = scmp.eq.s32.totalorder %s29, 1
      %p115 = por %p113, %p114
      %p116 = scmp.ne.s32.totalorder %s107, %s108
      %p117 = scmp.eq.s32.totalorder %s29, 0
      %p118 = por %p116, %p117
      %p119 = scmp.ne.s32.totalorder %s107, %s108
      %p120 = scmp.eq.s32.totalorder %s30, 1
      %p121 = por %p119, %p120
      %p123 = scmp.ne.s32.totalorder %s108, %s122
      %p124 = scmp.eq.s32.totalorder %s30, 0
      %p125 = por %p123, %p124
      %s127 = sadd.s32 %s126, 1
      %p130 = scmp.eq.s32.totalorder %s24, 1
      %p131 = scmp.ne.s32.totalorder %s126, %s128
      %p132 = scmp.eq.s32.totalorder %s24, 0
      %p133 = por %p131, %p132
      %p134 = scmp.ne.s32.totalorder %s126, %s128
      %p135 = scmp.eq.s32.totalorder %s29, 1
      %p136 = por %p134, %p135
      %p137 = scmp.ne.s32.totalorder %s128, %s129
      %p138 = scmp.eq.s32.totalorder %s29, 0
      %p139 = por %p137, %p138
      %p140 = scmp.ne.s32.totalorder %s128, %s129
      %p141 = scmp.eq.s32.totalorder %s30, 1
      %p142 = por %p140, %p141
      %p144 = scmp.ne.s32.totalorder %s129, %s143
      %p145 = scmp.eq.s32.totalorder %s30, 0
      %p146 = por %p144, %p145
      %s148 = sadd.s32 %s147, 1
      %p151 = scmp.eq.s32.totalorder %s24, 1
      %p152 = scmp.ne.s32.totalorder %s147, %s149
      %p153 = scmp.eq.s32.totalorder %s24, 0
      %p154 = por %p152, %p153
      %p155 = scmp.ne.s32.totalorder %s147, %s149
      %p156 = scmp.eq.s32.totalorder %s29, 1
      %p157 = por %p155, %p156
      %p158 = scmp.ne.s32.totalorder %s149, %s150
      %p159 = scmp.eq.s32.totalorder %s29, 0
      %p160 = por %p158, %p159
      %p161 = scmp.ne.s32.totalorder %s149, %s150
      %p162 = scmp.eq.s32.totalorder %s30, 1
      %p163 = por %p161, %p162
      %p165 = scmp.ne.s32.totalorder %s150, %s164
      %p166 = scmp.eq.s32.totalorder %s30, 0
      %p167 = por %p165, %p166
      %s168 = ssub.s32 %s24, %s31
      %p169 = scmp.eq.s32.totalorder %s168, 0
      %s171 = sadd.s32 %s170, 1
      %s172 = scalar_select %p169, %s170, %s171
      %p175 = pneg %p169
      %p176 = scmp.eq.s32.totalorder %s24, 1
      %p177 = por %p175, %p176
      %p178 = scmp.ne.s32.totalorder %s170, %s173
      %p179 = scmp.eq.s32.totalorder %s24, 0
      %p180 = por %p178, %p179
      %p181 = scmp.ne.s32.totalorder %s170, %s173
      %p182 = scmp.eq.s32.totalorder %s29, 1
      %p183 = por %p181, %p182
      %p184 = scmp.ne.s32.totalorder %s173, %s174
      %p185 = scmp.eq.s32.totalorder %s29, 0
      %p186 = por %p184, %p185
      %p187 = scmp.ne.s32.totalorder %s173, %s174
      %p188 = scmp.eq.s32.totalorder %s30, 1
      %p189 = por %p187, %p188
      %p191 = scmp.ne.s32.totalorder %s174, %s190
      %p192 = scmp.eq.s32.totalorder %s30, 0
      %p193 = por %p191, %p192
      %p194 = scmp.le.s32.totalorder 1, %s24
      %p195 = scmp.lt.s32.totalorder %s24, 3
      %p196 = pnand %p194, %p195
      %p197 = pneg %p196
      // Predicated region
      $region9: #{tpu_custom_call.1} parent=5 // pred_check
        _
      $region10: #{tpu_custom_call.1} parent=5 // pred_check_branch
        %199 = sbr.rel (%p196) target = $region12
      $region11: #{tpu_custom_call.1} parent=5 // pred_region
        %s200 = ssub.s32 %s24, 1
        // Predicated region
        $region13: #{tpu_custom_call.1} parent=11 // pred_check
          %p201 = pneg %p97
        $region14: #{tpu_custom_call.1} parent=11 // pred_check_branch
          %203 = sbr.rel (%p201) target = $region16
        $region15: #{tpu_custom_call.1} parent=11 // pred_region
          %s205 = ssub.s32 48, 48
          %206 = vsyncadd [#allocation7], %s205
          %s208 = sshll.u32 %s2, 4
          %s209 = int_to_ptr.vmem [resolvable:$true] %s208
          %211 = dma.vmem_to_smem %s209, 48, [#allocation10], [#allocation7]
        $region16: #{tpu_custom_call.1} parent=11 // pred_fallthru
          _
        // Predicated region
        $region17: #{tpu_custom_call.1} parent=11 // pred_check
          %p212 = pneg %p118
        $region18: #{tpu_custom_call.1} parent=11 // pred_check_branch
          %214 = sbr.rel (%p212) target = $region20
        $region19: #{tpu_custom_call.1} parent=11 // pred_region
          %s216 = ssub.s32 16, 16
          %217 = vsyncadd [#allocation12], %s216
          %s219 = sshll.u32 %s3, 4
          %s220 = int_to_ptr.vmem [resolvable:$true] %s219
          %222 = dma.vmem_to_smem %s220, 16, [#allocation11], [#allocation12]
        $region20: #{tpu_custom_call.1} parent=11 // pred_fallthru
          _
        // Predicated region
        $region21: #{tpu_custom_call.1} parent=11 // pred_check
          %p223 = pneg %p139
        $region22: #{tpu_custom_call.1} parent=11 // pred_check_branch
          %225 = sbr.rel (%p223) target = $region24
        $region23: #{tpu_custom_call.1} parent=11 // pred_region
          %s227 = ssub.s32 16, 16
          %228 = vsyncadd [#allocation12], %s227
          %s230 = sshll.u32 %s4, 4
          %s231 = int_to_ptr.vmem [resolvable:$true] %s230
          %233 = dma.vmem_to_smem %s231, 16, [#allocation13], [#allocation12]
        $region24: #{tpu_custom_call.1} parent=11 // pred_fallthru
          _
        // Predicated region
        $region25: #{tpu_custom_call.1} parent=11 // pred_check
          %p234 = pneg %p160
        $region26: #{tpu_custom_call.1} parent=11 // pred_check_branch
          %236 = sbr.rel (%p234) target = $region28
        $region27: #{tpu_custom_call.1} parent=11 // pred_region
          _
        $region28: #{tpu_custom_call.1} parent=11 // pred_fallthru
          _
      $region12: #{tpu_custom_call.1} parent=5 // pred_fallthru
        _
      %p237 = scmp.lt.s32.totalorder %s24, 2
      // Predicated region
      $region29: #{tpu_custom_call.1} parent=5 // pred_check
        %p238 = pneg %p237
      $region30: #{tpu_custom_call.1} parent=5 // pred_check_branch
        %240 = sbr.rel (%p238) target = $region32
      $region31: #{tpu_custom_call.1} parent=5 // pred_region
        // Predicated region
        $region33: #{tpu_custom_call.1} parent=31 // pred_check
          %p241 = pneg %p44
        $region34: #{tpu_custom_call.1} parent=31 // pred_check_branch
          %243 = sbr.rel (%p241) target = $region36
        $region35: #{tpu_custom_call.1} parent=31 // pred_region
          %s244 = sand.u32 %s34, 1
          %s245 = scalar_lea.sflag [#allocation5], %s244
          %s246 = sand.u32 %s34, 1
          %s247 = smul.addr %s246, 16
          %s248 = scalar_lea.vmem [#allocation4], %s247
          %s250 = ssub.s32 256, 256
          %251 = vsyncadd %s245, %s250
          %s252 = smul.addr %s24, 2
          %s253 = smul.addr %s252, 128
          %s254 = scalar_lea.hbm %s0, %s253
          %s255 = sshll.u32 %s248, 4
          %s256 = int_to_ptr.vmem [resolvable:$true] %s255
          %261 = dma.hbm_to_vmem [thread:$0]  %s254, 256, %s256, %s245, 128, 128, 8
        $region36: #{tpu_custom_call.1} parent=31 // pred_fallthru
          _
        // Predicated region
        $region37: #{tpu_custom_call.1} parent=31 // pred_check
          %p262 = pneg %p70
        $region38: #{tpu_custom_call.1} parent=31 // pred_check_branch
          %264 = sbr.rel (%p262) target = $region40
        $region39: #{tpu_custom_call.1} parent=31 // pred_region
          %s265 = sand.u32 %s60, 1
          %s266 = scalar_lea.sflag [#allocation9], %s265
          %s267 = sand.u32 %s60, 1
          %s268 = smul.addr %s267, 48
          %s269 = scalar_lea.vmem [#allocation8], %s268
          %s271 = ssub.s32 768, 768
          %272 = vsyncadd %s266, %s271
          %s273 = smul.addr %s24, 6
          %s274 = smul.addr %s273, 128
          %s275 = scalar_lea.hbm %s1, %s274
          %s276 = sshll.u32 %s269, 4
          %s277 = int_to_ptr.vmem [resolvable:$true] %s276
          %282 = dma.hbm_to_vmem [thread:$0]  %s275, 768, %s277, %s266, 128, 128, 8
        $region40: #{tpu_custom_call.1} parent=31 // pred_fallthru
          _
      $region32: #{tpu_custom_call.1} parent=5 // pred_fallthru
        _
      %p283 = scmp.le.s32.totalorder 1, %s24
      %p284 = scmp.lt.s32.totalorder %s24, 3
      %p285 = pnand %p283, %p284
      %p286 = pneg %p285
      // Predicated region
      $region41: #{tpu_custom_call.1} parent=5 // pred_check
        _
      $region42: #{tpu_custom_call.1} parent=5 // pred_check_branch
        %288 = sbr.rel (%p285) target = $region44
      $region43: #{tpu_custom_call.1} parent=5 // pred_region
        %s289 = ssub.s32 %s24, 1
        %s290 = sand.u32 %s37, 1
        %s291 = scalar_lea.sflag [#allocation5], %s290
        %s292 = sand.u32 %s37, 1
        %s293 = smul.addr %s292, 16
        %s294 = scalar_lea.vmem [#allocation4], %s293
        // Predicated region
        $region45: #{tpu_custom_call.1} parent=43 // pred_check
          %p295 = pneg %p50
        $region46: #{tpu_custom_call.1} parent=43 // pred_check_branch
          %297 = sbr.rel (%p295) target = $region48
        $region47: #{tpu_custom_call.1} parent=43 // pred_region
          %298 = dma.done %s291, 256
        $region48: #{tpu_custom_call.1} parent=43 // pred_fallthru
          _
        %s299 = sand.u32 %s63, 1
        %s300 = scalar_lea.sflag [#allocation9], %s299
        %s301 = sand.u32 %s63, 1
        %s302 = smul.addr %s301, 48
        %s303 = scalar_lea.vmem [#allocation8], %s302
        // Predicated region
        $region49: #{tpu_custom_call.1} parent=43 // pred_check
          %p304 = pneg %p76
        $region50: #{tpu_custom_call.1} parent=43 // pred_check_branch
          %306 = sbr.rel (%p304) target = $region52
        $region51: #{tpu_custom_call.1} parent=43 // pred_region
          %307 = dma.done %s300, 768
        $region52: #{tpu_custom_call.1} parent=43 // pred_fallthru
          _
        // Predicated region
        $region53: #{tpu_custom_call.1} parent=43 // pred_check
          %p308 = pneg %p97
        $region54: #{tpu_custom_call.1} parent=43 // pred_check_branch
          %310 = sbr.rel (%p308) target = $region56
        $region55: #{tpu_custom_call.1} parent=43 // pred_region
          %311 = dma.done [#allocation7], 48
        $region56: #{tpu_custom_call.1} parent=43 // pred_fallthru
          _
        // Predicated region
        $region57: #{tpu_custom_call.1} parent=43 // pred_check
          %p312 = pneg %p118
        $region58: #{tpu_custom_call.1} parent=43 // pred_check_branch
          %314 = sbr.rel (%p312) target = $region60
        $region59: #{tpu_custom_call.1} parent=43 // pred_region
          %315 = dma.done [#allocation12], 16
        $region60: #{tpu_custom_call.1} parent=43 // pred_fallthru
          _
        // Predicated region
        $region61: #{tpu_custom_call.1} parent=43 // pred_check
          %p316 = pneg %p139
        $region62: #{tpu_custom_call.1} parent=43 // pred_check_branch
          %318 = sbr.rel (%p316) target = $region64
        $region63: #{tpu_custom_call.1} parent=43 // pred_region
          %319 = dma.done [#allocation12], 16
        $region64: #{tpu_custom_call.1} parent=43 // pred_fallthru
          _
        %320 = sfence
        %s321 = sand.u32 %s37, 1
        %s322 = scalar_lea.sflag [#allocation5], %s321
        %s323 = sand.u32 %s37, 1
        %s324 = smul.addr %s323, 16
        %s325 = scalar_lea.vmem [#allocation4], %s324
        %p326 = pneg %p50
        %p327 = pneg %p47
        %s328 = sand.u32 %s63, 1
        %s329 = scalar_lea.sflag [#allocation9], %s328
        %s330 = sand.u32 %s63, 1
        %s331 = smul.addr %s330, 48
        %s332 = scalar_lea.vmem [#allocation8], %s331
        %p333 = pneg %p76
        %p334 = pneg %p73
        %p335 = pneg %p97
        %p336 = pneg %p94
        %p337 = pneg %p118
        %p338 = pneg %p115
        %p339 = pneg %p139
        %p340 = pneg %p136
        %p341 = pneg %p160
        %p342 = pneg %p157
        %p343 = pneg %p186
        %p344 = pneg %p183
        %s345 = sand.u32 %s173, 1
        %s346 = scalar_lea.sflag [#allocation6], %s345
        %s347 = sand.u32 %s173, 1
        %s348 = smul.addr %s347, 48
        %s349 = scalar_lea.vmem [#allocation14], %s348
        %vm350 = vcmask 146432
        %351 = vst.msk [vmem:[#allocation2] sm:$0xff] %vm350, 0.0
        %352 = vst.msk [vmem:[#allocation2 + $0x8] sm:$0xff] %vm350, 0.0
        %vm353 = vcmask 140288
        %354 = vst.msk [vmem:[#allocation2 + $0x10] sm:$0x3] %vm353, 0.0
        %355 = vst.msk [vmem:[#allocation2 + $0x18] sm:$0xff] %vm350, 0.0
        %356 = vst.msk [vmem:[#allocation2 + $0x20] sm:$0xff] %vm350, 0.0
        %357 = vst.msk [vmem:[#allocation2 + $0x28] sm:$0x3] %vm353, 0.0
        %358 = vst.msk [vmem:[#allocation2 + $0x30] sm:$0xff] %vm350, 0.0
        %359 = vst.msk [vmem:[#allocation2 + $0x38] sm:$0xff] %vm350, 0.0
        %360 = vst.msk [vmem:[#allocation2 + $0x40] sm:$0x3] %vm353, 0.0
        %361 = vst.msk [vmem:[#allocation2 + $0x48] sm:$0xff] %vm350, 0.0
        %362 = vst.msk [vmem:[#allocation2 + $0x50] sm:$0xff] %vm350, 0.0
        %363 = vst.msk [vmem:[#allocation2 + $0x58] sm:$0x3] %vm353, 0.0
        %v364 = vld [vmem:[%s294] sm:$0xff]
        %v365 = vld [vmem:[%s294 + $0x8] sm:$0xff]
        %368 = vrot.lane.b32.xlu0 %v364, 1
        %v369 = vpop.permute.xlu0 %368
        %370 = vrot.lane.b32.xlu0 %v365, 1
        %v371 = vpop.permute.xlu0 %370
        %vm374 = vcmask 138248
        %375 = vst.msk [vmem:[#allocation2 + $0x1] sm:$0xff] %vm374, %v369
        %376 = vst.msk [vmem:[#allocation2 + $0x9] sm:$0xff] %vm374, %v371
        %v377 = vld [vmem:[%s303] sm:$0xff]
        %v378 = vld [vmem:[%s303 + $0x8] sm:$0xff]
        %v379 = vld [vmem:[%s303 + $0x10] sm:$0xff]
        %v380 = vld [vmem:[%s303 + $0x18] sm:$0xff]
        %v381 = vld [vmem:[%s303 + $0x20] sm:$0xff]
        %v382 = vld [vmem:[%s303 + $0x28] sm:$0xff]
        %389 = vrot.lane.b32.xlu0 %v377, 1
        %v390 = vpop.permute.xlu0 %389
        %391 = vrot.lane.b32.xlu0 %v378, 1
        %v392 = vpop.permute.xlu0 %391
        %393 = vrot.lane.b32.xlu0 %v379, 1
        %v394 = vpop.permute.xlu0 %393
        %395 = vrot.lane.b32.xlu0 %v380, 1
        %v396 = vpop.permute.xlu0 %395
        %397 = vrot.lane.b32.xlu0 %v381, 1
        %v398 = vpop.permute.xlu0 %397
        %399 = vrot.lane.b32.xlu0 %v382, 1
        %v400 = vpop.permute.xlu0 %399
        %s407 = scalar_lea.vmem [#allocation2], 24
        %408 = vst.msk [vmem:[%s407 + $0x1] sm:$0xff] %vm374, %v390
        %409 = vst.msk [vmem:[%s407 + $0x9] sm:$0xff] %vm374, %v392
        %410 = vst.msk [vmem:[%s407 + $0x19] sm:$0xff] %vm374, %v394
        %411 = vst.msk [vmem:[%s407 + $0x21] sm:$0xff] %vm374, %v396
        %412 = vst.msk [vmem:[%s407 + $0x31] sm:$0xff] %vm374, %v398
        %413 = vst.msk [vmem:[%s407 + $0x39] sm:$0xff] %vm374, %v400
        %v414 = vld [vmem:[#allocation2] sm:$0xff]
        %v415 = vld [vmem:[#allocation2 + $0x8] sm:$0xff]
        %s416 = sld [smem:[#allocation10]]
        %v417 = vstv %s416
        %v418 = vmul.f32 %v417, %v414
        %v419 = vmul.f32 %v417, %v415
        %v420 = vadd.f32 %v418, 0.0
        %v421 = vadd.f32 %v419, 0.0
        %s422 = sld [smem:[#allocation10 + $0x24]]
        %v423 = vstv %s422
        %v424 = vmul.f32 %v423, %v414
        %v425 = vmul.f32 %v423, %v415
        %v426 = vadd.f32 %v424, 0.0
        %v427 = vadd.f32 %v425, 0.0
        %s428 = sld [smem:[#allocation10 + $0x48]]
        %v429 = vstv %s428
        %v430 = vmul.f32 %v429, %v414
        %v431 = vmul.f32 %v429, %v415
        %v432 = vadd.f32 %v430, 0.0
        %v433 = vadd.f32 %v431, 0.0
        %s434 = sld [smem:[#allocation10 + $0x6c]]
        %v435 = vstv %s434
        %v436 = vmul.f32 %v435, %v414
        %v437 = vmul.f32 %v435, %v415
        %v438 = vadd.f32 %v436, 0.0
        %v439 = vadd.f32 %v437, 0.0
        %s440 = sld [smem:[#allocation10 + $0x90]]
        %v441 = vstv %s440
        %v442 = vmul.f32 %v441, %v414
        %v443 = vmul.f32 %v441, %v415
        %v444 = vadd.f32 %v442, 0.0
        %v445 = vadd.f32 %v443, 0.0
        %s446 = sld [smem:[#allocation10 + $0xb4]]
        %v447 = vstv %s446
        %v448 = vmul.f32 %v447, %v414
        %v449 = vmul.f32 %v447, %v415
        %v450 = vadd.f32 %v448, 0.0
        %v451 = vadd.f32 %v449, 0.0
        %s452 = sld [smem:[#allocation10 + $0xd8]]
        %v453 = vstv %s452
        %v454 = vmul.f32 %v453, %v414
        %v455 = vmul.f32 %v453, %v415
        %v456 = vadd.f32 %v454, 0.0
        %v457 = vadd.f32 %v455, 0.0
        %s458 = sld [smem:[#allocation10 + $0xfc]]
        %v459 = vstv %s458
        %v460 = vmul.f32 %v459, %v414
        %v461 = vmul.f32 %v459, %v415
        %v462 = vadd.f32 %v460, 0.0
        %v463 = vadd.f32 %v461, 0.0
        %s464 = sld [smem:[#allocation10 + $0x1]]
        %v465 = vstv %s464
        %v466 = vmul.f32 %v465, %v414
        %v467 = vmul.f32 %v465, %v415
        %470 = vrot.lane.b32.xlu0 %v466, 127
        %v471 = vpop.permute.xlu0 %470
        %472 = vrot.lane.b32.xlu0 %v467, 127
        %v473 = vpop.permute.xlu0 %472
        %v476 = vadd.f32 %v420, %v471
        %v477 = vadd.f32 %v421, %v473
        %s478 = sld [smem:[#allocation10 + $0x25]]
        %v479 = vstv %s478
        %v480 = vmul.f32 %v479, %v414
        %v481 = vmul.f32 %v479, %v415
        %484 = vrot.lane.b32.xlu0 %v480, 127
        %v485 = vpop.permute.xlu0 %484
        %486 = vrot.lane.b32.xlu0 %v481, 127
        %v487 = vpop.permute.xlu0 %486
        %v490 = vadd.f32 %v426, %v485
        %v491 = vadd.f32 %v427, %v487
        %s492 = sld [smem:[#allocation10 + $0x49]]
        %v493 = vstv %s492
        %v494 = vmul.f32 %v493, %v414
        %v495 = vmul.f32 %v493, %v415
        %498 = vrot.lane.b32.xlu0 %v494, 127
        %v499 = vpop.permute.xlu0 %498
        %500 = vrot.lane.b32.xlu0 %v495, 127
        %v501 = vpop.permute.xlu0 %500
        %v504 = vadd.f32 %v432, %v499
        %v505 = vadd.f32 %v433, %v501
        %s506 = sld [smem:[#allocation10 + $0x6d]]
        %v507 = vstv %s506
        %v508 = vmul.f32 %v507, %v414
        %v509 = vmul.f32 %v507, %v415
        %512 = vrot.lane.b32.xlu0 %v508, 127
        %v513 = vpop.permute.xlu0 %512
        %514 = vrot.lane.b32.xlu0 %v509, 127
        %v515 = vpop.permute.xlu0 %514
        %v518 = vadd.f32 %v438, %v513
        %v519 = vadd.f32 %v439, %v515
        %s520 = sld [smem:[#allocation10 + $0x91]]
        %v521 = vstv %s520
        %v522 = vmul.f32 %v521, %v414
        %v523 = vmul.f32 %v521, %v415
        %526 = vrot.lane.b32.xlu0 %v522, 127
        %v527 = vpop.permute.xlu0 %526
        %528 = vrot.lane.b32.xlu0 %v523, 127
        %v529 = vpop.permute.xlu0 %528
        %v532 = vadd.f32 %v444, %v527
        %v533 = vadd.f32 %v445, %v529
        %s534 = sld [smem:[#allocation10 + $0xb5]]
        %v535 = vstv %s534
        %v536 = vmul.f32 %v535, %v414
        %v537 = vmul.f32 %v535, %v415
        %540 = vrot.lane.b32.xlu0 %v536, 127
        %v541 = vpop.permute.xlu0 %540
        %542 = vrot.lane.b32.xlu0 %v537, 127
        %v543 = vpop.permute.xlu0 %542
        %v546 = vadd.f32 %v450, %v541
        %v547 = vadd.f32 %v451, %v543
        %s548 = sld [smem:[#allocation10 + $0xd9]]
        %v549 = vstv %s548
        %v550 = vmul.f32 %v549, %v414
        %v551 = vmul.f32 %v549, %v415
        %554 = vrot.lane.b32.xlu0 %v550, 127
        %v555 = vpop.permute.xlu0 %554
        %556 = vrot.lane.b32.xlu0 %v551, 127
        %v557 = vpop.permute.xlu0 %556
        %v560 = vadd.f32 %v456, %v555
        %v561 = vadd.f32 %v457, %v557
        %s562 = sld [smem:[#allocation10 + $0xfd]]
        %v563 = vstv %s562
        %v564 = vmul.f32 %v563, %v414
        %v565 = vmul.f32 %v563, %v415
        %568 = vrot.lane.b32.xlu0 %v564, 127
        %v569 = vpop.permute.xlu0 %568
        %570 = vrot.lane.b32.xlu0 %v565, 127
        %v571 = vpop.permute.xlu0 %570
        %v574 = vadd.f32 %v462, %v569
        %v575 = vadd.f32 %v463, %v571
        %s576 = sld [smem:[#allocation10 + $0x2]]
        %v577 = vstv %s576
        %v578 = vmul.f32 %v577, %v414
        %v579 = vmul.f32 %v577, %v415
        %582 = vrot.lane.b32.xlu0 %v578, 126
        %v583 = vpop.permute.xlu0 %582
        %584 = vrot.lane.b32.xlu0 %v579, 126
        %v585 = vpop.permute.xlu0 %584
        %v588 = vadd.f32 %v476, %v583
        %v589 = vadd.f32 %v477, %v585
        %s590 = sld [smem:[#allocation10 + $0x26]]
        %v591 = vstv %s590
        %v592 = vmul.f32 %v591, %v414
        %v593 = vmul.f32 %v591, %v415
        %596 = vrot.lane.b32.xlu0 %v592, 126
        %v597 = vpop.permute.xlu0 %596
        %598 = vrot.lane.b32.xlu0 %v593, 126
        %v599 = vpop.permute.xlu0 %598
        %v602 = vadd.f32 %v490, %v597
        %v603 = vadd.f32 %v491, %v599
        %s604 = sld [smem:[#allocation10 + $0x4a]]
        %v605 = vstv %s604
        %v606 = vmul.f32 %v605, %v414
        %v607 = vmul.f32 %v605, %v415
        %610 = vrot.lane.b32.xlu0 %v606, 126
        %v611 = vpop.permute.xlu0 %610
        %612 = vrot.lane.b32.xlu0 %v607, 126
        %v613 = vpop.permute.xlu0 %612
        %v616 = vadd.f32 %v504, %v611
        %v617 = vadd.f32 %v505, %v613
        %s618 = sld [smem:[#allocation10 + $0x6e]]
        %v619 = vstv %s618
        %v620 = vmul.f32 %v619, %v414
        %v621 = vmul.f32 %v619, %v415
        %624 = vrot.lane.b32.xlu0 %v620, 126
        %v625 = vpop.permute.xlu0 %624
        %626 = vrot.lane.b32.xlu0 %v621, 126
        %v627 = vpop.permute.xlu0 %626
        %v630 = vadd.f32 %v518, %v625
        %v631 = vadd.f32 %v519, %v627
        %s632 = sld [smem:[#allocation10 + $0x92]]
        %v633 = vstv %s632
        %v634 = vmul.f32 %v633, %v414
        %v635 = vmul.f32 %v633, %v415
        %638 = vrot.lane.b32.xlu0 %v634, 126
        %v639 = vpop.permute.xlu0 %638
        %640 = vrot.lane.b32.xlu0 %v635, 126
        %v641 = vpop.permute.xlu0 %640
        %v644 = vadd.f32 %v532, %v639
        %v645 = vadd.f32 %v533, %v641
        %s646 = sld [smem:[#allocation10 + $0xb6]]
        %v647 = vstv %s646
        %v648 = vmul.f32 %v647, %v414
        %v649 = vmul.f32 %v647, %v415
        %652 = vrot.lane.b32.xlu0 %v648, 126
        %v653 = vpop.permute.xlu0 %652
        %654 = vrot.lane.b32.xlu0 %v649, 126
        %v655 = vpop.permute.xlu0 %654
        %v658 = vadd.f32 %v546, %v653
        %v659 = vadd.f32 %v547, %v655
        %s660 = sld [smem:[#allocation10 + $0xda]]
        %v661 = vstv %s660
        %v662 = vmul.f32 %v661, %v414
        %v663 = vmul.f32 %v661, %v415
        %666 = vrot.lane.b32.xlu0 %v662, 126
        %v667 = vpop.permute.xlu0 %666
        %668 = vrot.lane.b32.xlu0 %v663, 126
        %v669 = vpop.permute.xlu0 %668
        %v672 = vadd.f32 %v560, %v667
        %v673 = vadd.f32 %v561, %v669
        %s674 = sld [smem:[#allocation10 + $0xfe]]
        %v675 = vstv %s674
        %v676 = vmul.f32 %v675, %v414
        %v677 = vmul.f32 %v675, %v415
        %680 = vrot.lane.b32.xlu0 %v676, 126
        %v681 = vpop.permute.xlu0 %680
        %682 = vrot.lane.b32.xlu0 %v677, 126
        %v683 = vpop.permute.xlu0 %682
        %v686 = vadd.f32 %v574, %v681
        %v687 = vadd.f32 %v575, %v683
        %v688 = vld [vmem:[#allocation2 + $0x1] sm:$0xff]
        %v689 = vld [vmem:[#allocation2 + $0x9] sm:$0xff]
        %s690 = sld [smem:[#allocation10 + $0x3]]
        %v691 = vstv %s690
        %v692 = vmul.f32 %v691, %v688
        %v693 = vmul.f32 %v691, %v689
        %v694 = vadd.f32 %v588, %v692
        %v695 = vadd.f32 %v589, %v693
        %s696 = sld [smem:[#allocation10 + $0x27]]
        %v697 = vstv %s696
        %v698 = vmul.f32 %v697, %v688
        %v699 = vmul.f32 %v697, %v689
        %v700 = vadd.f32 %v602, %v698
        %v701 = vadd.f32 %v603, %v699
        %s702 = sld [smem:[#allocation10 + $0x4b]]
        %v703 = vstv %s702
        %v704 = vmul.f32 %v703, %v688
        %v705 = vmul.f32 %v703, %v689
        %v706 = vadd.f32 %v616, %v704
        %v707 = vadd.f32 %v617, %v705
        %s708 = sld [smem:[#allocation10 + $0x6f]]
        %v709 = vstv %s708
        %v710 = vmul.f32 %v709, %v688
        %v711 = vmul.f32 %v709, %v689
        %v712 = vadd.f32 %v630, %v710
        %v713 = vadd.f32 %v631, %v711
        %s714 = sld [smem:[#allocation10 + $0x93]]
        %v715 = vstv %s714
        %v716 = vmul.f32 %v715, %v688
        %v717 = vmul.f32 %v715, %v689
        %v718 = vadd.f32 %v644, %v716
        %v719 = vadd.f32 %v645, %v717
        %s720 = sld [smem:[#allocation10 + $0xb7]]
        %v721 = vstv %s720
        %v722 = vmul.f32 %v721, %v688
        %v723 = vmul.f32 %v721, %v689
        %v724 = vadd.f32 %v658, %v722
        %v725 = vadd.f32 %v659, %v723
        %s726 = sld [smem:[#allocation10 + $0xdb]]
        %v727 = vstv %s726
        %v728 = vmul.f32 %v727, %v688
        %v729 = vmul.f32 %v727, %v689
        %v730 = vadd.f32 %v672, %v728
        %v731 = vadd.f32 %v673, %v729
        %s732 = sld [smem:[#allocation10 + $0xff]]
        %v733 = vstv %s732
        %v734 = vmul.f32 %v733, %v688
        %v735 = vmul.f32 %v733, %v689
        %v736 = vadd.f32 %v686, %v734
        %v737 = vadd.f32 %v687, %v735
        %s738 = sld [smem:[#allocation10 + $0x4]]
        %v739 = vstv %s738
        %v740 = vmul.f32 %v739, %v688
        %v741 = vmul.f32 %v739, %v689
        %744 = vrot.lane.b32.xlu0 %v740, 127
        %v745 = vpop.permute.xlu0 %744
        %746 = vrot.lane.b32.xlu0 %v741, 127
        %v747 = vpop.permute.xlu0 %746
        %v750 = vadd.f32 %v694, %v745
        %v751 = vadd.f32 %v695, %v747
        %s752 = sld [smem:[#allocation10 + $0x28]]
        %v753 = vstv %s752
        %v754 = vmul.f32 %v753, %v688
        %v755 = vmul.f32 %v753, %v689
        %758 = vrot.lane.b32.xlu0 %v754, 127
        %v759 = vpop.permute.xlu0 %758
        %760 = vrot.lane.b32.xlu0 %v755, 127
        %v761 = vpop.permute.xlu0 %760
        %v764 = vadd.f32 %v700, %v759
        %v765 = vadd.f32 %v701, %v761
        %s766 = sld [smem:[#allocation10 + $0x4c]]
        %v767 = vstv %s766
        %v768 = vmul.f32 %v767, %v688
        %v769 = vmul.f32 %v767, %v689
        %772 = vrot.lane.b32.xlu0 %v768, 127
        %v773 = vpop.permute.xlu0 %772
        %774 = vrot.lane.b32.xlu0 %v769, 127
        %v775 = vpop.permute.xlu0 %774
        %v778 = vadd.f32 %v706, %v773
        %v779 = vadd.f32 %v707, %v775
        %s780 = sld [smem:[#allocation10 + $0x70]]
        %v781 = vstv %s780
        %v782 = vmul.f32 %v781, %v688
        %v783 = vmul.f32 %v781, %v689
        %786 = vrot.lane.b32.xlu0 %v782, 127
        %v787 = vpop.permute.xlu0 %786
        %788 = vrot.lane.b32.xlu0 %v783, 127
        %v789 = vpop.permute.xlu0 %788
        %v792 = vadd.f32 %v712, %v787
        %v793 = vadd.f32 %v713, %v789
        %s794 = sld [smem:[#allocation10 + $0x94]]
        %v795 = vstv %s794
        %v796 = vmul.f32 %v795, %v688
        %v797 = vmul.f32 %v795, %v689
        %800 = vrot.lane.b32.xlu0 %v796, 127
        %v801 = vpop.permute.xlu0 %800
        %802 = vrot.lane.b32.xlu0 %v797, 127
        %v803 = vpop.permute.xlu0 %802
        %v806 = vadd.f32 %v718, %v801
        %v807 = vadd.f32 %v719, %v803
        %s808 = sld [smem:[#allocation10 + $0xb8]]
        %v809 = vstv %s808
        %v810 = vmul.f32 %v809, %v688
        %v811 = vmul.f32 %v809, %v689
        %814 = vrot.lane.b32.xlu0 %v810, 127
        %v815 = vpop.permute.xlu0 %814
        %816 = vrot.lane.b32.xlu0 %v811, 127
        %v817 = vpop.permute.xlu0 %816
        %v820 = vadd.f32 %v724, %v815
        %v821 = vadd.f32 %v725, %v817
        %s822 = sld [smem:[#allocation10 + $0xdc]]
        %v823 = vstv %s822
        %v824 = vmul.f32 %v823, %v688
        %v825 = vmul.f32 %v823, %v689
        %828 = vrot.lane.b32.xlu0 %v824, 127
        %v829 = vpop.permute.xlu0 %828
        %830 = vrot.lane.b32.xlu0 %v825, 127
        %v831 = vpop.permute.xlu0 %830
        %v834 = vadd.f32 %v730, %v829
        %v835 = vadd.f32 %v731, %v831
        %s836 = sld [smem:[#allocation10 + $0x100]]
        %v837 = vstv %s836
        %v838 = vmul.f32 %v837, %v688
        %v839 = vmul.f32 %v837, %v689
        %842 = vrot.lane.b32.xlu0 %v838, 127
        %v843 = vpop.permute.xlu0 %842
        %844 = vrot.lane.b32.xlu0 %v839, 127
        %v845 = vpop.permute.xlu0 %844
        %v848 = vadd.f32 %v736, %v843
        %v849 = vadd.f32 %v737, %v845
        %s850 = sld [smem:[#allocation10 + $0x5]]
        %v851 = vstv %s850
        %v852 = vmul.f32 %v851, %v688
        %v853 = vmul.f32 %v851, %v689
        %856 = vrot.lane.b32.xlu0 %v852, 126
        %v857 = vpop.permute.xlu0 %856
        %858 = vrot.lane.b32.xlu0 %v853, 126
        %v859 = vpop.permute.xlu0 %858
        %v862 = vadd.f32 %v750, %v857
        %v863 = vadd.f32 %v751, %v859
        %s864 = sld [smem:[#allocation10 + $0x29]]
        %v865 = vstv %s864
        %v866 = vmul.f32 %v865, %v688
        %v867 = vmul.f32 %v865, %v689
        %870 = vrot.lane.b32.xlu0 %v866, 126
        %v871 = vpop.permute.xlu0 %870
        %872 = vrot.lane.b32.xlu0 %v867, 126
        %v873 = vpop.permute.xlu0 %872
        %v876 = vadd.f32 %v764, %v871
        %v877 = vadd.f32 %v765, %v873
        %s878 = sld [smem:[#allocation10 + $0x4d]]
        %v879 = vstv %s878
        %v880 = vmul.f32 %v879, %v688
        %v881 = vmul.f32 %v879, %v689
        %884 = vrot.lane.b32.xlu0 %v880, 126
        %v885 = vpop.permute.xlu0 %884
        %886 = vrot.lane.b32.xlu0 %v881, 126
        %v887 = vpop.permute.xlu0 %886
        %v890 = vadd.f32 %v778, %v885
        %v891 = vadd.f32 %v779, %v887
        %s892 = sld [smem:[#allocation10 + $0x71]]
        %v893 = vstv %s892
        %v894 = vmul.f32 %v893, %v688
        %v895 = vmul.f32 %v893, %v689
        %898 = vrot.lane.b32.xlu0 %v894, 126
        %v899 = vpop.permute.xlu0 %898
        %900 = vrot.lane.b32.xlu0 %v895, 126
        %v901 = vpop.permute.xlu0 %900
        %v904 = vadd.f32 %v792, %v899
        %v905 = vadd.f32 %v793, %v901
        %s906 = sld [smem:[#allocation10 + $0x95]]
        %v907 = vstv %s906
        %v908 = vmul.f32 %v907, %v688
        %v909 = vmul.f32 %v907, %v689
        %912 = vrot.lane.b32.xlu0 %v908, 126
        %v913 = vpop.permute.xlu0 %912
        %914 = vrot.lane.b32.xlu0 %v909, 126
        %v915 = vpop.permute.xlu0 %914
        %v918 = vadd.f32 %v806, %v913
        %v919 = vadd.f32 %v807, %v915
        %s920 = sld [smem:[#allocation10 + $0xb9]]
        %v921 = vstv %s920
        %v922 = vmul.f32 %v921, %v688
        %v923 = vmul.f32 %v921, %v689
        %926 = vrot.lane.b32.xlu0 %v922, 126
        %v927 = vpop.permute.xlu0 %926
        %928 = vrot.lane.b32.xlu0 %v923, 126
        %v929 = vpop.permute.xlu0 %928
        %v932 = vadd.f32 %v820, %v927
        %v933 = vadd.f32 %v821, %v929
        %s934 = sld [smem:[#allocation10 + $0xdd]]
        %v935 = vstv %s934
        %v936 = vmul.f32 %v935, %v688
        %v937 = vmul.f32 %v935, %v689
        %940 = vrot.lane.b32.xlu0 %v936, 126
        %v941 = vpop.permute.xlu0 %940
        %942 = vrot.lane.b32.xlu0 %v937, 126
        %v943 = vpop.permute.xlu0 %942
        %v946 = vadd.f32 %v834, %v941
        %v947 = vadd.f32 %v835, %v943
        %s948 = sld [smem:[#allocation10 + $0x101]]
        %v949 = vstv %s948
        %v950 = vmul.f32 %v949, %v688
        %v951 = vmul.f32 %v949, %v689
        %954 = vrot.lane.b32.xlu0 %v950, 126
        %v955 = vpop.permute.xlu0 %954
        %956 = vrot.lane.b32.xlu0 %v951, 126
        %v957 = vpop.permute.xlu0 %956
        %v960 = vadd.f32 %v848, %v955
        %v961 = vadd.f32 %v849, %v957
        %v962 = vld [vmem:[#allocation2 + $0x2] sm:$0xff]
        %v963 = vld [vmem:[#allocation2 + $0xa] sm:$0xff]
        %s964 = sld [smem:[#allocation10 + $0x6]]
        %v965 = vstv %s964
        %v966 = vmul.f32 %v965, %v962
        %v967 = vmul.f32 %v965, %v963
        %v968 = vadd.f32 %v862, %v966
        %v969 = vadd.f32 %v863, %v967
        %s970 = sld [smem:[#allocation10 + $0x2a]]
        %v971 = vstv %s970
        %v972 = vmul.f32 %v971, %v962
        %v973 = vmul.f32 %v971, %v963
        %v974 = vadd.f32 %v876, %v972
        %v975 = vadd.f32 %v877, %v973
        %s976 = sld [smem:[#allocation10 + $0x4e]]
        %v977 = vstv %s976
        %v978 = vmul.f32 %v977, %v962
        %v979 = vmul.f32 %v977, %v963
        %v980 = vadd.f32 %v890, %v978
        %v981 = vadd.f32 %v891, %v979
        %s982 = sld [smem:[#allocation10 + $0x72]]
        %v983 = vstv %s982
        %v984 = vmul.f32 %v983, %v962
        %v985 = vmul.f32 %v983, %v963
        %v986 = vadd.f32 %v904, %v984
        %v987 = vadd.f32 %v905, %v985
        %s988 = sld [smem:[#allocation10 + $0x96]]
        %v989 = vstv %s988
        %v990 = vmul.f32 %v989, %v962
        %v991 = vmul.f32 %v989, %v963
        %v992 = vadd.f32 %v918, %v990
        %v993 = vadd.f32 %v919, %v991
        %s994 = sld [smem:[#allocation10 + $0xba]]
        %v995 = vstv %s994
        %v996 = vmul.f32 %v995, %v962
        %v997 = vmul.f32 %v995, %v963
        %v998 = vadd.f32 %v932, %v996
        %v999 = vadd.f32 %v933, %v997
        %s1000 = sld [smem:[#allocation10 + $0xde]]
        %v1001 = vstv %s1000
        %v1002 = vmul.f32 %v1001, %v962
        %v1003 = vmul.f32 %v1001, %v963
        %v1004 = vadd.f32 %v946, %v1002
        %v1005 = vadd.f32 %v947, %v1003
        %s1006 = sld [smem:[#allocation10 + $0x102]]
        %v1007 = vstv %s1006
        %v1008 = vmul.f32 %v1007, %v962
        %v1009 = vmul.f32 %v1007, %v963
        %v1010 = vadd.f32 %v960, %v1008
        %v1011 = vadd.f32 %v961, %v1009
        %s1012 = sld [smem:[#allocation10 + $0x7]]
        %v1013 = vstv %s1012
        %v1014 = vmul.f32 %v1013, %v962
        %v1015 = vmul.f32 %v1013, %v963
        %1018 = vrot.lane.b32.xlu0 %v1014, 127
        %v1019 = vpop.permute.xlu0 %1018
        %1020 = vrot.lane.b32.xlu0 %v1015, 127
        %v1021 = vpop.permute.xlu0 %1020
        %v1024 = vadd.f32 %v968, %v1019
        %v1025 = vadd.f32 %v969, %v1021
        %s1026 = sld [smem:[#allocation10 + $0x2b]]
        %v1027 = vstv %s1026
        %v1028 = vmul.f32 %v1027, %v962
        %v1029 = vmul.f32 %v1027, %v963
        %1032 = vrot.lane.b32.xlu0 %v1028, 127
        %v1033 = vpop.permute.xlu0 %1032
        %1034 = vrot.lane.b32.xlu0 %v1029, 127
        %v1035 = vpop.permute.xlu0 %1034
        %v1038 = vadd.f32 %v974, %v1033
        %v1039 = vadd.f32 %v975, %v1035
        %s1040 = sld [smem:[#allocation10 + $0x4f]]
        %v1041 = vstv %s1040
        %v1042 = vmul.f32 %v1041, %v962
        %v1043 = vmul.f32 %v1041, %v963
        %1046 = vrot.lane.b32.xlu0 %v1042, 127
        %v1047 = vpop.permute.xlu0 %1046
        %1048 = vrot.lane.b32.xlu0 %v1043, 127
        %v1049 = vpop.permute.xlu0 %1048
        %v1052 = vadd.f32 %v980, %v1047
        %v1053 = vadd.f32 %v981, %v1049
        %s1054 = sld [smem:[#allocation10 + $0x73]]
        %v1055 = vstv %s1054
        %v1056 = vmul.f32 %v1055, %v962
        %v1057 = vmul.f32 %v1055, %v963
        %1060 = vrot.lane.b32.xlu0 %v1056, 127
        %v1061 = vpop.permute.xlu0 %1060
        %1062 = vrot.lane.b32.xlu0 %v1057, 127
        %v1063 = vpop.permute.xlu0 %1062
        %v1066 = vadd.f32 %v986, %v1061
        %v1067 = vadd.f32 %v987, %v1063
        %s1068 = sld [smem:[#allocation10 + $0x97]]
        %v1069 = vstv %s1068
        %v1070 = vmul.f32 %v1069, %v962
        %v1071 = vmul.f32 %v1069, %v963
        %1074 = vrot.lane.b32.xlu0 %v1070, 127
        %v1075 = vpop.permute.xlu0 %1074
        %1076 = vrot.lane.b32.xlu0 %v1071, 127
        %v1077 = vpop.permute.xlu0 %1076
        %v1080 = vadd.f32 %v992, %v1075
        %v1081 = vadd.f32 %v993, %v1077
        %s1082 = sld [smem:[#allocation10 + $0xbb]]
        %v1083 = vstv %s1082
        %v1084 = vmul.f32 %v1083, %v962
        %v1085 = vmul.f32 %v1083, %v963
        %1088 = vrot.lane.b32.xlu0 %v1084, 127
        %v1089 = vpop.permute.xlu0 %1088
        %1090 = vrot.lane.b32.xlu0 %v1085, 127
        %v1091 = vpop.permute.xlu0 %1090
        %v1094 = vadd.f32 %v998, %v1089
        %v1095 = vadd.f32 %v999, %v1091
        %s1096 = sld [smem:[#allocation10 + $0xdf]]
        %v1097 = vstv %s1096
        %v1098 = vmul.f32 %v1097, %v962
        %v1099 = vmul.f32 %v1097, %v963
        %1102 = vrot.lane.b32.xlu0 %v1098, 127
        %v1103 = vpop.permute.xlu0 %1102
        %1104 = vrot.lane.b32.xlu0 %v1099, 127
        %v1105 = vpop.permute.xlu0 %1104
        %v1108 = vadd.f32 %v1004, %v1103
        %v1109 = vadd.f32 %v1005, %v1105
        %s1110 = sld [smem:[#allocation10 + $0x103]]
        %v1111 = vstv %s1110
        %v1112 = vmul.f32 %v1111, %v962
        %v1113 = vmul.f32 %v1111, %v963
        %1116 = vrot.lane.b32.xlu0 %v1112, 127
        %v1117 = vpop.permute.xlu0 %1116
        %1118 = vrot.lane.b32.xlu0 %v1113, 127
        %v1119 = vpop.permute.xlu0 %1118
        %v1122 = vadd.f32 %v1010, %v1117
        %v1123 = vadd.f32 %v1011, %v1119
        %s1124 = sld [smem:[#allocation10 + $0x8]]
        %v1125 = vstv %s1124
        %v1126 = vmul.f32 %v1125, %v962
        %v1127 = vmul.f32 %v1125, %v963
        %1130 = vrot.lane.b32.xlu0 %v1126, 126
        %v1131 = vpop.permute.xlu0 %1130
        %1132 = vrot.lane.b32.xlu0 %v1127, 126
        %v1133 = vpop.permute.xlu0 %1132
        %v1136 = vadd.f32 %v1024, %v1131
        %v1137 = vadd.f32 %v1025, %v1133
        %s1138 = sld [smem:[#allocation10 + $0x2c]]
        %v1139 = vstv %s1138
        %v1140 = vmul.f32 %v1139, %v962
        %v1141 = vmul.f32 %v1139, %v963
        %1144 = vrot.lane.b32.xlu0 %v1140, 126
        %v1145 = vpop.permute.xlu0 %1144
        %1146 = vrot.lane.b32.xlu0 %v1141, 126
        %v1147 = vpop.permute.xlu0 %1146
        %v1150 = vadd.f32 %v1038, %v1145
        %v1151 = vadd.f32 %v1039, %v1147
        %s1152 = sld [smem:[#allocation10 + $0x50]]
        %v1153 = vstv %s1152
        %v1154 = vmul.f32 %v1153, %v962
        %v1155 = vmul.f32 %v1153, %v963
        %1158 = vrot.lane.b32.xlu0 %v1154, 126
        %v1159 = vpop.permute.xlu0 %1158
        %1160 = vrot.lane.b32.xlu0 %v1155, 126
        %v1161 = vpop.permute.xlu0 %1160
        %v1164 = vadd.f32 %v1052, %v1159
        %v1165 = vadd.f32 %v1053, %v1161
        %s1166 = sld [smem:[#allocation10 + $0x74]]
        %v1167 = vstv %s1166
        %v1168 = vmul.f32 %v1167, %v962
        %v1169 = vmul.f32 %v1167, %v963
        %1172 = vrot.lane.b32.xlu0 %v1168, 126
        %v1173 = vpop.permute.xlu0 %1172
        %1174 = vrot.lane.b32.xlu0 %v1169, 126
        %v1175 = vpop.permute.xlu0 %1174
        %v1178 = vadd.f32 %v1066, %v1173
        %v1179 = vadd.f32 %v1067, %v1175
        %s1180 = sld [smem:[#allocation10 + $0x98]]
        %v1181 = vstv %s1180
        %v1182 = vmul.f32 %v1181, %v962
        %v1183 = vmul.f32 %v1181, %v963
        %1186 = vrot.lane.b32.xlu0 %v1182, 126
        %v1187 = vpop.permute.xlu0 %1186
        %1188 = vrot.lane.b32.xlu0 %v1183, 126
        %v1189 = vpop.permute.xlu0 %1188
        %v1192 = vadd.f32 %v1080, %v1187
        %v1193 = vadd.f32 %v1081, %v1189
        %s1194 = sld [smem:[#allocation10 + $0xbc]]
        %v1195 = vstv %s1194
        %v1196 = vmul.f32 %v1195, %v962
        %v1197 = vmul.f32 %v1195, %v963
        %1200 = vrot.lane.b32.xlu0 %v1196, 126
        %v1201 = vpop.permute.xlu0 %1200
        %1202 = vrot.lane.b32.xlu0 %v1197, 126
        %v1203 = vpop.permute.xlu0 %1202
        %v1206 = vadd.f32 %v1094, %v1201
        %v1207 = vadd.f32 %v1095, %v1203
        %s1208 = sld [smem:[#allocation10 + $0xe0]]
        %v1209 = vstv %s1208
        %v1210 = vmul.f32 %v1209, %v962
        %v1211 = vmul.f32 %v1209, %v963
        %1214 = vrot.lane.b32.xlu0 %v1210, 126
        %v1215 = vpop.permute.xlu0 %1214
        %1216 = vrot.lane.b32.xlu0 %v1211, 126
        %v1217 = vpop.permute.xlu0 %1216
        %v1220 = vadd.f32 %v1108, %v1215
        %v1221 = vadd.f32 %v1109, %v1217
        %s1222 = sld [smem:[#allocation10 + $0x104]]
        %v1223 = vstv %s1222
        %v1224 = vmul.f32 %v1223, %v962
        %v1225 = vmul.f32 %v1223, %v963
        %1228 = vrot.lane.b32.xlu0 %v1224, 126
        %v1229 = vpop.permute.xlu0 %1228
        %1230 = vrot.lane.b32.xlu0 %v1225, 126
        %v1231 = vpop.permute.xlu0 %1230
        %v1234 = vadd.f32 %v1122, %v1229
        %v1235 = vadd.f32 %v1123, %v1231
        %v1236 = vld [vmem:[%s407] sm:$0xff]
        %v1237 = vld [vmem:[%s407 + $0x8] sm:$0xff]
        %s1238 = sld [smem:[#allocation10 + $0x9]]
        %v1239 = vstv %s1238
        %v1240 = vmul.f32 %v1239, %v1236
        %v1241 = vmul.f32 %v1239, %v1237
        %v1242 = vadd.f32 %v1136, %v1240
        %v1243 = vadd.f32 %v1137, %v1241
        %s1244 = sld [smem:[#allocation10 + $0x2d]]
        %v1245 = vstv %s1244
        %v1246 = vmul.f32 %v1245, %v1236
        %v1247 = vmul.f32 %v1245, %v1237
        %v1248 = vadd.f32 %v1150, %v1246
        %v1249 = vadd.f32 %v1151, %v1247
        %s1250 = sld [smem:[#allocation10 + $0x51]]
        %v1251 = vstv %s1250
        %v1252 = vmul.f32 %v1251, %v1236
        %v1253 = vmul.f32 %v1251, %v1237
        %v1254 = vadd.f32 %v1164, %v1252
        %v1255 = vadd.f32 %v1165, %v1253
        %s1256 = sld [smem:[#allocation10 + $0x75]]
        %v1257 = vstv %s1256
        %v1258 = vmul.f32 %v1257, %v1236
        %v1259 = vmul.f32 %v1257, %v1237
        %v1260 = vadd.f32 %v1178, %v1258
        %v1261 = vadd.f32 %v1179, %v1259
        %s1262 = sld [smem:[#allocation10 + $0x99]]
        %v1263 = vstv %s1262
        %v1264 = vmul.f32 %v1263, %v1236
        %v1265 = vmul.f32 %v1263, %v1237
        %v1266 = vadd.f32 %v1192, %v1264
        %v1267 = vadd.f32 %v1193, %v1265
        %s1268 = sld [smem:[#allocation10 + $0xbd]]
        %v1269 = vstv %s1268
        %v1270 = vmul.f32 %v1269, %v1236
        %v1271 = vmul.f32 %v1269, %v1237
        %v1272 = vadd.f32 %v1206, %v1270
        %v1273 = vadd.f32 %v1207, %v1271
        %s1274 = sld [smem:[#allocation10 + $0xe1]]
        %v1275 = vstv %s1274
        %v1276 = vmul.f32 %v1275, %v1236
        %v1277 = vmul.f32 %v1275, %v1237
        %v1278 = vadd.f32 %v1220, %v1276
        %v1279 = vadd.f32 %v1221, %v1277
        %s1280 = sld [smem:[#allocation10 + $0x105]]
        %v1281 = vstv %s1280
        %v1282 = vmul.f32 %v1281, %v1236
        %v1283 = vmul.f32 %v1281, %v1237
        %v1284 = vadd.f32 %v1234, %v1282
        %v1285 = vadd.f32 %v1235, %v1283
        %s1286 = sld [smem:[#allocation10 + $0xa]]
        %v1287 = vstv %s1286
        %v1288 = vmul.f32 %v1287, %v1236
        %v1289 = vmul.f32 %v1287, %v1237
        %1292 = vrot.lane.b32.xlu0 %v1288, 127
        %v1293 = vpop.permute.xlu0 %1292
        %1294 = vrot.lane.b32.xlu0 %v1289, 127
        %v1295 = vpop.permute.xlu0 %1294
        %v1298 = vadd.f32 %v1242, %v1293
        %v1299 = vadd.f32 %v1243, %v1295
        %s1300 = sld [smem:[#allocation10 + $0x2e]]
        %v1301 = vstv %s1300
        %v1302 = vmul.f32 %v1301, %v1236
        %v1303 = vmul.f32 %v1301, %v1237
        %1306 = vrot.lane.b32.xlu0 %v1302, 127
        %v1307 = vpop.permute.xlu0 %1306
        %1308 = vrot.lane.b32.xlu0 %v1303, 127
        %v1309 = vpop.permute.xlu0 %1308
        %v1312 = vadd.f32 %v1248, %v1307
        %v1313 = vadd.f32 %v1249, %v1309
        %s1314 = sld [smem:[#allocation10 + $0x52]]
        %v1315 = vstv %s1314
        %v1316 = vmul.f32 %v1315, %v1236
        %v1317 = vmul.f32 %v1315, %v1237
        %1320 = vrot.lane.b32.xlu0 %v1316, 127
        %v1321 = vpop.permute.xlu0 %1320
        %1322 = vrot.lane.b32.xlu0 %v1317, 127
        %v1323 = vpop.permute.xlu0 %1322
        %v1326 = vadd.f32 %v1254, %v1321
        %v1327 = vadd.f32 %v1255, %v1323
        %s1328 = sld [smem:[#allocation10 + $0x76]]
        %v1329 = vstv %s1328
        %v1330 = vmul.f32 %v1329, %v1236
        %v1331 = vmul.f32 %v1329, %v1237
        %1334 = vrot.lane.b32.xlu0 %v1330, 127
        %v1335 = vpop.permute.xlu0 %1334
        %1336 = vrot.lane.b32.xlu0 %v1331, 127
        %v1337 = vpop.permute.xlu0 %1336
        %v1340 = vadd.f32 %v1260, %v1335
        %v1341 = vadd.f32 %v1261, %v1337
        %s1342 = sld [smem:[#allocation10 + $0x9a]]
        %v1343 = vstv %s1342
        %v1344 = vmul.f32 %v1343, %v1236
        %v1345 = vmul.f32 %v1343, %v1237
        %1348 = vrot.lane.b32.xlu0 %v1344, 127
        %v1349 = vpop.permute.xlu0 %1348
        %1350 = vrot.lane.b32.xlu0 %v1345, 127
        %v1351 = vpop.permute.xlu0 %1350
        %v1354 = vadd.f32 %v1266, %v1349
        %v1355 = vadd.f32 %v1267, %v1351
        %s1356 = sld [smem:[#allocation10 + $0xbe]]
        %v1357 = vstv %s1356
        %v1358 = vmul.f32 %v1357, %v1236
        %v1359 = vmul.f32 %v1357, %v1237
        %1362 = vrot.lane.b32.xlu0 %v1358, 127
        %v1363 = vpop.permute.xlu0 %1362
        %1364 = vrot.lane.b32.xlu0 %v1359, 127
        %v1365 = vpop.permute.xlu0 %1364
        %v1368 = vadd.f32 %v1272, %v1363
        %v1369 = vadd.f32 %v1273, %v1365
        %s1370 = sld [smem:[#allocation10 + $0xe2]]
        %v1371 = vstv %s1370
        %v1372 = vmul.f32 %v1371, %v1236
        %v1373 = vmul.f32 %v1371, %v1237
        %1376 = vrot.lane.b32.xlu0 %v1372, 127
        %v1377 = vpop.permute.xlu0 %1376
        %1378 = vrot.lane.b32.xlu0 %v1373, 127
        %v1379 = vpop.permute.xlu0 %1378
        %v1382 = vadd.f32 %v1278, %v1377
        %v1383 = vadd.f32 %v1279, %v1379
        %s1384 = sld [smem:[#allocation10 + $0x106]]
        %v1385 = vstv %s1384
        %v1386 = vmul.f32 %v1385, %v1236
        %v1387 = vmul.f32 %v1385, %v1237
        %1390 = vrot.lane.b32.xlu0 %v1386, 127
        %v1391 = vpop.permute.xlu0 %1390
        %1392 = vrot.lane.b32.xlu0 %v1387, 127
        %v1393 = vpop.permute.xlu0 %1392
        %v1396 = vadd.f32 %v1284, %v1391
        %v1397 = vadd.f32 %v1285, %v1393
        %s1398 = sld [smem:[#allocation10 + $0xb]]
        %v1399 = vstv %s1398
        %v1400 = vmul.f32 %v1399, %v1236
        %v1401 = vmul.f32 %v1399, %v1237
        %1404 = vrot.lane.b32.xlu0 %v1400, 126
        %v1405 = vpop.permute.xlu0 %1404
        %1406 = vrot.lane.b32.xlu0 %v1401, 126
        %v1407 = vpop.permute.xlu0 %1406
        %v1410 = vadd.f32 %v1298, %v1405
        %v1411 = vadd.f32 %v1299, %v1407
        %s1412 = sld [smem:[#allocation10 + $0x2f]]
        %v1413 = vstv %s1412
        %v1414 = vmul.f32 %v1413, %v1236
        %v1415 = vmul.f32 %v1413, %v1237
        %1418 = vrot.lane.b32.xlu0 %v1414, 126
        %v1419 = vpop.permute.xlu0 %1418
        %1420 = vrot.lane.b32.xlu0 %v1415, 126
        %v1421 = vpop.permute.xlu0 %1420
        %v1424 = vadd.f32 %v1312, %v1419
        %v1425 = vadd.f32 %v1313, %v1421
        %s1426 = sld [smem:[#allocation10 + $0x53]]
        %v1427 = vstv %s1426
        %v1428 = vmul.f32 %v1427, %v1236
        %v1429 = vmul.f32 %v1427, %v1237
        %1432 = vrot.lane.b32.xlu0 %v1428, 126
        %v1433 = vpop.permute.xlu0 %1432
        %1434 = vrot.lane.b32.xlu0 %v1429, 126
        %v1435 = vpop.permute.xlu0 %1434
        %v1438 = vadd.f32 %v1326, %v1433
        %v1439 = vadd.f32 %v1327, %v1435
        %s1440 = sld [smem:[#allocation10 + $0x77]]
        %v1441 = vstv %s1440
        %v1442 = vmul.f32 %v1441, %v1236
        %v1443 = vmul.f32 %v1441, %v1237
        %1446 = vrot.lane.b32.xlu0 %v1442, 126
        %v1447 = vpop.permute.xlu0 %1446
        %1448 = vrot.lane.b32.xlu0 %v1443, 126
        %v1449 = vpop.permute.xlu0 %1448
        %v1452 = vadd.f32 %v1340, %v1447
        %v1453 = vadd.f32 %v1341, %v1449
        %s1454 = sld [smem:[#allocation10 + $0x9b]]
        %v1455 = vstv %s1454
        %v1456 = vmul.f32 %v1455, %v1236
        %v1457 = vmul.f32 %v1455, %v1237
        %1460 = vrot.lane.b32.xlu0 %v1456, 126
        %v1461 = vpop.permute.xlu0 %1460
        %1462 = vrot.lane.b32.xlu0 %v1457, 126
        %v1463 = vpop.permute.xlu0 %1462
        %v1466 = vadd.f32 %v1354, %v1461
        %v1467 = vadd.f32 %v1355, %v1463
        %s1468 = sld [smem:[#allocation10 + $0xbf]]
        %v1469 = vstv %s1468
        %v1470 = vmul.f32 %v1469, %v1236
        %v1471 = vmul.f32 %v1469, %v1237
        %1474 = vrot.lane.b32.xlu0 %v1470, 126
        %v1475 = vpop.permute.xlu0 %1474
        %1476 = vrot.lane.b32.xlu0 %v1471, 126
        %v1477 = vpop.permute.xlu0 %1476
        %v1480 = vadd.f32 %v1368, %v1475
        %v1481 = vadd.f32 %v1369, %v1477
        %s1482 = sld [smem:[#allocation10 + $0xe3]]
        %v1483 = vstv %s1482
        %v1484 = vmul.f32 %v1483, %v1236
        %v1485 = vmul.f32 %v1483, %v1237
        %1488 = vrot.lane.b32.xlu0 %v1484, 126
        %v1489 = vpop.permute.xlu0 %1488
        %1490 = vrot.lane.b32.xlu0 %v1485, 126
        %v1491 = vpop.permute.xlu0 %1490
        %v1494 = vadd.f32 %v1382, %v1489
        %v1495 = vadd.f32 %v1383, %v1491
        %s1496 = sld [smem:[#allocation10 + $0x107]]
        %v1497 = vstv %s1496
        %v1498 = vmul.f32 %v1497, %v1236
        %v1499 = vmul.f32 %v1497, %v1237
        %1502 = vrot.lane.b32.xlu0 %v1498, 126
        %v1503 = vpop.permute.xlu0 %1502
        %1504 = vrot.lane.b32.xlu0 %v1499, 126
        %v1505 = vpop.permute.xlu0 %1504
        %v1508 = vadd.f32 %v1396, %v1503
        %v1509 = vadd.f32 %v1397, %v1505
        %v1510 = vld [vmem:[%s407 + $0x1] sm:$0xff]
        %v1511 = vld [vmem:[%s407 + $0x9] sm:$0xff]
        %s1512 = sld [smem:[#allocation10 + $0xc]]
        %v1513 = vstv %s1512
        %v1514 = vmul.f32 %v1513, %v1510
        %v1515 = vmul.f32 %v1513, %v1511
        %v1516 = vadd.f32 %v1410, %v1514
        %v1517 = vadd.f32 %v1411, %v1515
        %s1518 = sld [smem:[#allocation10 + $0x30]]
        %v1519 = vstv %s1518
        %v1520 = vmul.f32 %v1519, %v1510
        %v1521 = vmul.f32 %v1519, %v1511
        %v1522 = vadd.f32 %v1424, %v1520
        %v1523 = vadd.f32 %v1425, %v1521
        %s1524 = sld [smem:[#allocation10 + $0x54]]
        %v1525 = vstv %s1524
        %v1526 = vmul.f32 %v1525, %v1510
        %v1527 = vmul.f32 %v1525, %v1511
        %v1528 = vadd.f32 %v1438, %v1526
        %v1529 = vadd.f32 %v1439, %v1527
        %s1530 = sld [smem:[#allocation10 + $0x78]]
        %v1531 = vstv %s1530
        %v1532 = vmul.f32 %v1531, %v1510
        %v1533 = vmul.f32 %v1531, %v1511
        %v1534 = vadd.f32 %v1452, %v1532
        %v1535 = vadd.f32 %v1453, %v1533
        %s1536 = sld [smem:[#allocation10 + $0x9c]]
        %v1537 = vstv %s1536
        %v1538 = vmul.f32 %v1537, %v1510
        %v1539 = vmul.f32 %v1537, %v1511
        %v1540 = vadd.f32 %v1466, %v1538
        %v1541 = vadd.f32 %v1467, %v1539
        %s1542 = sld [smem:[#allocation10 + $0xc0]]
        %v1543 = vstv %s1542
        %v1544 = vmul.f32 %v1543, %v1510
        %v1545 = vmul.f32 %v1543, %v1511
        %v1546 = vadd.f32 %v1480, %v1544
        %v1547 = vadd.f32 %v1481, %v1545
        %s1548 = sld [smem:[#allocation10 + $0xe4]]
        %v1549 = vstv %s1548
        %v1550 = vmul.f32 %v1549, %v1510
        %v1551 = vmul.f32 %v1549, %v1511
        %v1552 = vadd.f32 %v1494, %v1550
        %v1553 = vadd.f32 %v1495, %v1551
        %s1554 = sld [smem:[#allocation10 + $0x108]]
        %v1555 = vstv %s1554
        %v1556 = vmul.f32 %v1555, %v1510
        %v1557 = vmul.f32 %v1555, %v1511
        %v1558 = vadd.f32 %v1508, %v1556
        %v1559 = vadd.f32 %v1509, %v1557
        %s1560 = sld [smem:[#allocation10 + $0xd]]
        %v1561 = vstv %s1560
        %v1562 = vmul.f32 %v1561, %v1510
        %v1563 = vmul.f32 %v1561, %v1511
        %1566 = vrot.lane.b32.xlu0 %v1562, 127
        %v1567 = vpop.permute.xlu0 %1566
        %1568 = vrot.lane.b32.xlu0 %v1563, 127
        %v1569 = vpop.permute.xlu0 %1568
        %v1572 = vadd.f32 %v1516, %v1567
        %v1573 = vadd.f32 %v1517, %v1569
        %s1574 = sld [smem:[#allocation10 + $0x31]]
        %v1575 = vstv %s1574
        %v1576 = vmul.f32 %v1575, %v1510
        %v1577 = vmul.f32 %v1575, %v1511
        %1580 = vrot.lane.b32.xlu0 %v1576, 127
        %v1581 = vpop.permute.xlu0 %1580
        %1582 = vrot.lane.b32.xlu0 %v1577, 127
        %v1583 = vpop.permute.xlu0 %1582
        %v1586 = vadd.f32 %v1522, %v1581
        %v1587 = vadd.f32 %v1523, %v1583
        %s1588 = sld [smem:[#allocation10 + $0x55]]
        %v1589 = vstv %s1588
        %v1590 = vmul.f32 %v1589, %v1510
        %v1591 = vmul.f32 %v1589, %v1511
        %1594 = vrot.lane.b32.xlu0 %v1590, 127
        %v1595 = vpop.permute.xlu0 %1594
        %1596 = vrot.lane.b32.xlu0 %v1591, 127
        %v1597 = vpop.permute.xlu0 %1596
        %v1600 = vadd.f32 %v1528, %v1595
        %v1601 = vadd.f32 %v1529, %v1597
        %s1602 = sld [smem:[#allocation10 + $0x79]]
        %v1603 = vstv %s1602
        %v1604 = vmul.f32 %v1603, %v1510
        %v1605 = vmul.f32 %v1603, %v1511
        %1608 = vrot.lane.b32.xlu0 %v1604, 127
        %v1609 = vpop.permute.xlu0 %1608
        %1610 = vrot.lane.b32.xlu0 %v1605, 127
        %v1611 = vpop.permute.xlu0 %1610
        %v1614 = vadd.f32 %v1534, %v1609
        %v1615 = vadd.f32 %v1535, %v1611
        %s1616 = sld [smem:[#allocation10 + $0x9d]]
        %v1617 = vstv %s1616
        %v1618 = vmul.f32 %v1617, %v1510
        %v1619 = vmul.f32 %v1617, %v1511
        %1622 = vrot.lane.b32.xlu0 %v1618, 127
        %v1623 = vpop.permute.xlu0 %1622
        %1624 = vrot.lane.b32.xlu0 %v1619, 127
        %v1625 = vpop.permute.xlu0 %1624
        %v1628 = vadd.f32 %v1540, %v1623
        %v1629 = vadd.f32 %v1541, %v1625
        %s1630 = sld [smem:[#allocation10 + $0xc1]]
        %v1631 = vstv %s1630
        %v1632 = vmul.f32 %v1631, %v1510
        %v1633 = vmul.f32 %v1631, %v1511
        %1636 = vrot.lane.b32.xlu0 %v1632, 127
        %v1637 = vpop.permute.xlu0 %1636
        %1638 = vrot.lane.b32.xlu0 %v1633, 127
        %v1639 = vpop.permute.xlu0 %1638
        %v1642 = vadd.f32 %v1546, %v1637
        %v1643 = vadd.f32 %v1547, %v1639
        %s1644 = sld [smem:[#allocation10 + $0xe5]]
        %v1645 = vstv %s1644
        %v1646 = vmul.f32 %v1645, %v1510
        %v1647 = vmul.f32 %v1645, %v1511
        %1650 = vrot.lane.b32.xlu0 %v1646, 127
        %v1651 = vpop.permute.xlu0 %1650
        %1652 = vrot.lane.b32.xlu0 %v1647, 127
        %v1653 = vpop.permute.xlu0 %1652
        %v1656 = vadd.f32 %v1552, %v1651
        %v1657 = vadd.f32 %v1553, %v1653
        %s1658 = sld [smem:[#allocation10 + $0x109]]
        %v1659 = vstv %s1658
        %v1660 = vmul.f32 %v1659, %v1510
        %v1661 = vmul.f32 %v1659, %v1511
        %1664 = vrot.lane.b32.xlu0 %v1660, 127
        %v1665 = vpop.permute.xlu0 %1664
        %1666 = vrot.lane.b32.xlu0 %v1661, 127
        %v1667 = vpop.permute.xlu0 %1666
        %v1670 = vadd.f32 %v1558, %v1665
        %v1671 = vadd.f32 %v1559, %v1667
        %s1672 = sld [smem:[#allocation10 + $0xe]]
        %v1673 = vstv %s1672
        %v1674 = vmul.f32 %v1673, %v1510
        %v1675 = vmul.f32 %v1673, %v1511
        %1678 = vrot.lane.b32.xlu0 %v1674, 126
        %v1679 = vpop.permute.xlu0 %1678
        %1680 = vrot.lane.b32.xlu0 %v1675, 126
        %v1681 = vpop.permute.xlu0 %1680
        %v1684 = vadd.f32 %v1572, %v1679
        %v1685 = vadd.f32 %v1573, %v1681
        %s1686 = sld [smem:[#allocation10 + $0x32]]
        %v1687 = vstv %s1686
        %v1688 = vmul.f32 %v1687, %v1510
        %v1689 = vmul.f32 %v1687, %v1511
        %1692 = vrot.lane.b32.xlu0 %v1688, 126
        %v1693 = vpop.permute.xlu0 %1692
        %1694 = vrot.lane.b32.xlu0 %v1689, 126
        %v1695 = vpop.permute.xlu0 %1694
        %v1698 = vadd.f32 %v1586, %v1693
        %v1699 = vadd.f32 %v1587, %v1695
        %s1700 = sld [smem:[#allocation10 + $0x56]]
        %v1701 = vstv %s1700
        %v1702 = vmul.f32 %v1701, %v1510
        %v1703 = vmul.f32 %v1701, %v1511
        %1706 = vrot.lane.b32.xlu0 %v1702, 126
        %v1707 = vpop.permute.xlu0 %1706
        %1708 = vrot.lane.b32.xlu0 %v1703, 126
        %v1709 = vpop.permute.xlu0 %1708
        %v1712 = vadd.f32 %v1600, %v1707
        %v1713 = vadd.f32 %v1601, %v1709
        %s1714 = sld [smem:[#allocation10 + $0x7a]]
        %v1715 = vstv %s1714
        %v1716 = vmul.f32 %v1715, %v1510
        %v1717 = vmul.f32 %v1715, %v1511
        %1720 = vrot.lane.b32.xlu0 %v1716, 126
        %v1721 = vpop.permute.xlu0 %1720
        %1722 = vrot.lane.b32.xlu0 %v1717, 126
        %v1723 = vpop.permute.xlu0 %1722
        %v1726 = vadd.f32 %v1614, %v1721
        %v1727 = vadd.f32 %v1615, %v1723
        %s1728 = sld [smem:[#allocation10 + $0x9e]]
        %v1729 = vstv %s1728
        %v1730 = vmul.f32 %v1729, %v1510
        %v1731 = vmul.f32 %v1729, %v1511
        %1734 = vrot.lane.b32.xlu0 %v1730, 126
        %v1735 = vpop.permute.xlu0 %1734
        %1736 = vrot.lane.b32.xlu0 %v1731, 126
        %v1737 = vpop.permute.xlu0 %1736
        %v1740 = vadd.f32 %v1628, %v1735
        %v1741 = vadd.f32 %v1629, %v1737
        %s1742 = sld [smem:[#allocation10 + $0xc2]]
        %v1743 = vstv %s1742
        %v1744 = vmul.f32 %v1743, %v1510
        %v1745 = vmul.f32 %v1743, %v1511
        %1748 = vrot.lane.b32.xlu0 %v1744, 126
        %v1749 = vpop.permute.xlu0 %1748
        %1750 = vrot.lane.b32.xlu0 %v1745, 126
        %v1751 = vpop.permute.xlu0 %1750
        %v1754 = vadd.f32 %v1642, %v1749
        %v1755 = vadd.f32 %v1643, %v1751
        %s1756 = sld [smem:[#allocation10 + $0xe6]]
        %v1757 = vstv %s1756
        %v1758 = vmul.f32 %v1757, %v1510
        %v1759 = vmul.f32 %v1757, %v1511
        %1762 = vrot.lane.b32.xlu0 %v1758, 126
        %v1763 = vpop.permute.xlu0 %1762
        %1764 = vrot.lane.b32.xlu0 %v1759, 126
        %v1765 = vpop.permute.xlu0 %1764
        %v1768 = vadd.f32 %v1656, %v1763
        %v1769 = vadd.f32 %v1657, %v1765
        %s1770 = sld [smem:[#allocation10 + $0x10a]]
        %v1771 = vstv %s1770
        %v1772 = vmul.f32 %v1771, %v1510
        %v1773 = vmul.f32 %v1771, %v1511
        %1776 = vrot.lane.b32.xlu0 %v1772, 126
        %v1777 = vpop.permute.xlu0 %1776
        %1778 = vrot.lane.b32.xlu0 %v1773, 126
        %v1779 = vpop.permute.xlu0 %1778
        %v1782 = vadd.f32 %v1670, %v1777
        %v1783 = vadd.f32 %v1671, %v1779
        %v1784 = vld [vmem:[%s407 + $0x2] sm:$0xff]
        %v1785 = vld [vmem:[%s407 + $0xa] sm:$0xff]
        %s1786 = sld [smem:[#allocation10 + $0xf]]
        %v1787 = vstv %s1786
        %v1788 = vmul.f32 %v1787, %v1784
        %v1789 = vmul.f32 %v1787, %v1785
        %v1790 = vadd.f32 %v1684, %v1788
        %v1791 = vadd.f32 %v1685, %v1789
        %s1792 = sld [smem:[#allocation10 + $0x33]]
        %v1793 = vstv %s1792
        %v1794 = vmul.f32 %v1793, %v1784
        %v1795 = vmul.f32 %v1793, %v1785
        %v1796 = vadd.f32 %v1698, %v1794
        %v1797 = vadd.f32 %v1699, %v1795
        %s1798 = sld [smem:[#allocation10 + $0x57]]
        %v1799 = vstv %s1798
        %v1800 = vmul.f32 %v1799, %v1784
        %v1801 = vmul.f32 %v1799, %v1785
        %v1802 = vadd.f32 %v1712, %v1800
        %v1803 = vadd.f32 %v1713, %v1801
        %s1804 = sld [smem:[#allocation10 + $0x7b]]
        %v1805 = vstv %s1804
        %v1806 = vmul.f32 %v1805, %v1784
        %v1807 = vmul.f32 %v1805, %v1785
        %v1808 = vadd.f32 %v1726, %v1806
        %v1809 = vadd.f32 %v1727, %v1807
        %s1810 = sld [smem:[#allocation10 + $0x9f]]
        %v1811 = vstv %s1810
        %v1812 = vmul.f32 %v1811, %v1784
        %v1813 = vmul.f32 %v1811, %v1785
        %v1814 = vadd.f32 %v1740, %v1812
        %v1815 = vadd.f32 %v1741, %v1813
        %s1816 = sld [smem:[#allocation10 + $0xc3]]
        %v1817 = vstv %s1816
        %v1818 = vmul.f32 %v1817, %v1784
        %v1819 = vmul.f32 %v1817, %v1785
        %v1820 = vadd.f32 %v1754, %v1818
        %v1821 = vadd.f32 %v1755, %v1819
        %s1822 = sld [smem:[#allocation10 + $0xe7]]
        %v1823 = vstv %s1822
        %v1824 = vmul.f32 %v1823, %v1784
        %v1825 = vmul.f32 %v1823, %v1785
        %v1826 = vadd.f32 %v1768, %v1824
        %v1827 = vadd.f32 %v1769, %v1825
        %s1828 = sld [smem:[#allocation10 + $0x10b]]
        %v1829 = vstv %s1828
        %v1830 = vmul.f32 %v1829, %v1784
        %v1831 = vmul.f32 %v1829, %v1785
        %v1832 = vadd.f32 %v1782, %v1830
        %v1833 = vadd.f32 %v1783, %v1831
        %s1834 = sld [smem:[#allocation10 + $0x10]]
        %v1835 = vstv %s1834
        %v1836 = vmul.f32 %v1835, %v1784
        %v1837 = vmul.f32 %v1835, %v1785
        %1840 = vrot.lane.b32.xlu0 %v1836, 127
        %v1841 = vpop.permute.xlu0 %1840
        %1842 = vrot.lane.b32.xlu0 %v1837, 127
        %v1843 = vpop.permute.xlu0 %1842
        %v1846 = vadd.f32 %v1790, %v1841
        %v1847 = vadd.f32 %v1791, %v1843
        %s1848 = sld [smem:[#allocation10 + $0x34]]
        %v1849 = vstv %s1848
        %v1850 = vmul.f32 %v1849, %v1784
        %v1851 = vmul.f32 %v1849, %v1785
        %1854 = vrot.lane.b32.xlu0 %v1850, 127
        %v1855 = vpop.permute.xlu0 %1854
        %1856 = vrot.lane.b32.xlu0 %v1851, 127
        %v1857 = vpop.permute.xlu0 %1856
        %v1860 = vadd.f32 %v1796, %v1855
        %v1861 = vadd.f32 %v1797, %v1857
        %s1862 = sld [smem:[#allocation10 + $0x58]]
        %v1863 = vstv %s1862
        %v1864 = vmul.f32 %v1863, %v1784
        %v1865 = vmul.f32 %v1863, %v1785
        %1868 = vrot.lane.b32.xlu0 %v1864, 127
        %v1869 = vpop.permute.xlu0 %1868
        %1870 = vrot.lane.b32.xlu0 %v1865, 127
        %v1871 = vpop.permute.xlu0 %1870
        %v1874 = vadd.f32 %v1802, %v1869
        %v1875 = vadd.f32 %v1803, %v1871
        %s1876 = sld [smem:[#allocation10 + $0x7c]]
        %v1877 = vstv %s1876
        %v1878 = vmul.f32 %v1877, %v1784
        %v1879 = vmul.f32 %v1877, %v1785
        %1882 = vrot.lane.b32.xlu0 %v1878, 127
        %v1883 = vpop.permute.xlu0 %1882
        %1884 = vrot.lane.b32.xlu0 %v1879, 127
        %v1885 = vpop.permute.xlu0 %1884
        %v1888 = vadd.f32 %v1808, %v1883
        %v1889 = vadd.f32 %v1809, %v1885
        %s1890 = sld [smem:[#allocation10 + $0xa0]]
        %v1891 = vstv %s1890
        %v1892 = vmul.f32 %v1891, %v1784
        %v1893 = vmul.f32 %v1891, %v1785
        %1896 = vrot.lane.b32.xlu0 %v1892, 127
        %v1897 = vpop.permute.xlu0 %1896
        %1898 = vrot.lane.b32.xlu0 %v1893, 127
        %v1899 = vpop.permute.xlu0 %1898
        %v1902 = vadd.f32 %v1814, %v1897
        %v1903 = vadd.f32 %v1815, %v1899
        %s1904 = sld [smem:[#allocation10 + $0xc4]]
        %v1905 = vstv %s1904
        %v1906 = vmul.f32 %v1905, %v1784
        %v1907 = vmul.f32 %v1905, %v1785
        %1910 = vrot.lane.b32.xlu0 %v1906, 127
        %v1911 = vpop.permute.xlu0 %1910
        %1912 = vrot.lane.b32.xlu0 %v1907, 127
        %v1913 = vpop.permute.xlu0 %1912
        %v1916 = vadd.f32 %v1820, %v1911
        %v1917 = vadd.f32 %v1821, %v1913
        %s1918 = sld [smem:[#allocation10 + $0xe8]]
        %v1919 = vstv %s1918
        %v1920 = vmul.f32 %v1919, %v1784
        %v1921 = vmul.f32 %v1919, %v1785
        %1924 = vrot.lane.b32.xlu0 %v1920, 127
        %v1925 = vpop.permute.xlu0 %1924
        %1926 = vrot.lane.b32.xlu0 %v1921, 127
        %v1927 = vpop.permute.xlu0 %1926
        %v1930 = vadd.f32 %v1826, %v1925
        %v1931 = vadd.f32 %v1827, %v1927
        %s1932 = sld [smem:[#allocation10 + $0x10c]]
        %v1933 = vstv %s1932
        %v1934 = vmul.f32 %v1933, %v1784
        %v1935 = vmul.f32 %v1933, %v1785
        %1938 = vrot.lane.b32.xlu0 %v1934, 127
        %v1939 = vpop.permute.xlu0 %1938
        %1940 = vrot.lane.b32.xlu0 %v1935, 127
        %v1941 = vpop.permute.xlu0 %1940
        %v1944 = vadd.f32 %v1832, %v1939
        %v1945 = vadd.f32 %v1833, %v1941
        %s1946 = sld [smem:[#allocation10 + $0x11]]
        %v1947 = vstv %s1946
        %v1948 = vmul.f32 %v1947, %v1784
        %v1949 = vmul.f32 %v1947, %v1785
        %1952 = vrot.lane.b32.xlu0 %v1948, 126
        %v1953 = vpop.permute.xlu0 %1952
        %1954 = vrot.lane.b32.xlu0 %v1949, 126
        %v1955 = vpop.permute.xlu0 %1954
        %v1958 = vadd.f32 %v1846, %v1953
        %v1959 = vadd.f32 %v1847, %v1955
        %s1960 = sld [smem:[#allocation10 + $0x35]]
        %v1961 = vstv %s1960
        %v1962 = vmul.f32 %v1961, %v1784
        %v1963 = vmul.f32 %v1961, %v1785
        %1966 = vrot.lane.b32.xlu0 %v1962, 126
        %v1967 = vpop.permute.xlu0 %1966
        %1968 = vrot.lane.b32.xlu0 %v1963, 126
        %v1969 = vpop.permute.xlu0 %1968
        %v1972 = vadd.f32 %v1860, %v1967
        %v1973 = vadd.f32 %v1861, %v1969
        %s1974 = sld [smem:[#allocation10 + $0x59]]
        %v1975 = vstv %s1974
        %v1976 = vmul.f32 %v1975, %v1784
        %v1977 = vmul.f32 %v1975, %v1785
        %1980 = vrot.lane.b32.xlu0 %v1976, 126
        %v1981 = vpop.permute.xlu0 %1980
        %1982 = vrot.lane.b32.xlu0 %v1977, 126
        %v1983 = vpop.permute.xlu0 %1982
        %v1986 = vadd.f32 %v1874, %v1981
        %v1987 = vadd.f32 %v1875, %v1983
        %s1988 = sld [smem:[#allocation10 + $0x7d]]
        %v1989 = vstv %s1988
        %v1990 = vmul.f32 %v1989, %v1784
        %v1991 = vmul.f32 %v1989, %v1785
        %1994 = vrot.lane.b32.xlu0 %v1990, 126
        %v1995 = vpop.permute.xlu0 %1994
        %1996 = vrot.lane.b32.xlu0 %v1991, 126
        %v1997 = vpop.permute.xlu0 %1996
        %v2000 = vadd.f32 %v1888, %v1995
        %v2001 = vadd.f32 %v1889, %v1997
        %s2002 = sld [smem:[#allocation10 + $0xa1]]
        %v2003 = vstv %s2002
        %v2004 = vmul.f32 %v2003, %v1784
        %v2005 = vmul.f32 %v2003, %v1785
        %2008 = vrot.lane.b32.xlu0 %v2004, 126
        %v2009 = vpop.permute.xlu0 %2008
        %2010 = vrot.lane.b32.xlu0 %v2005, 126
        %v2011 = vpop.permute.xlu0 %2010
        %v2014 = vadd.f32 %v1902, %v2009
        %v2015 = vadd.f32 %v1903, %v2011
        %s2016 = sld [smem:[#allocation10 + $0xc5]]
        %v2017 = vstv %s2016
        %v2018 = vmul.f32 %v2017, %v1784
        %v2019 = vmul.f32 %v2017, %v1785
        %2022 = vrot.lane.b32.xlu0 %v2018, 126
        %v2023 = vpop.permute.xlu0 %2022
        %2024 = vrot.lane.b32.xlu0 %v2019, 126
        %v2025 = vpop.permute.xlu0 %2024
        %v2028 = vadd.f32 %v1916, %v2023
        %v2029 = vadd.f32 %v1917, %v2025
        %s2030 = sld [smem:[#allocation10 + $0xe9]]
        %v2031 = vstv %s2030
        %v2032 = vmul.f32 %v2031, %v1784
        %v2033 = vmul.f32 %v2031, %v1785
        %2036 = vrot.lane.b32.xlu0 %v2032, 126
        %v2037 = vpop.permute.xlu0 %2036
        %2038 = vrot.lane.b32.xlu0 %v2033, 126
        %v2039 = vpop.permute.xlu0 %2038
        %v2042 = vadd.f32 %v1930, %v2037
        %v2043 = vadd.f32 %v1931, %v2039
        %s2044 = sld [smem:[#allocation10 + $0x10d]]
        %v2045 = vstv %s2044
        %v2046 = vmul.f32 %v2045, %v1784
        %v2047 = vmul.f32 %v2045, %v1785
        %2050 = vrot.lane.b32.xlu0 %v2046, 126
        %v2051 = vpop.permute.xlu0 %2050
        %2052 = vrot.lane.b32.xlu0 %v2047, 126
        %v2053 = vpop.permute.xlu0 %2052
        %v2056 = vadd.f32 %v1944, %v2051
        %v2057 = vadd.f32 %v1945, %v2053
        %s2058 = scalar_lea.vmem [#allocation2], 48
        %v2059 = vld [vmem:[%s2058] sm:$0xff]
        %v2060 = vld [vmem:[%s2058 + $0x8] sm:$0xff]
        %s2061 = sld [smem:[#allocation10 + $0x12]]
        %v2062 = vstv %s2061
        %v2063 = vmul.f32 %v2062, %v2059
        %v2064 = vmul.f32 %v2062, %v2060
        %v2065 = vadd.f32 %v1958, %v2063
        %v2066 = vadd.f32 %v1959, %v2064
        %s2067 = sld [smem:[#allocation10 + $0x36]]
        %v2068 = vstv %s2067
        %v2069 = vmul.f32 %v2068, %v2059
        %v2070 = vmul.f32 %v2068, %v2060
        %v2071 = vadd.f32 %v1972, %v2069
        %v2072 = vadd.f32 %v1973, %v2070
        %s2073 = sld [smem:[#allocation10 + $0x5a]]
        %v2074 = vstv %s2073
        %v2075 = vmul.f32 %v2074, %v2059
        %v2076 = vmul.f32 %v2074, %v2060
        %v2077 = vadd.f32 %v1986, %v2075
        %v2078 = vadd.f32 %v1987, %v2076
        %s2079 = sld [smem:[#allocation10 + $0x7e]]
        %v2080 = vstv %s2079
        %v2081 = vmul.f32 %v2080, %v2059
        %v2082 = vmul.f32 %v2080, %v2060
        %v2083 = vadd.f32 %v2000, %v2081
        %v2084 = vadd.f32 %v2001, %v2082
        %s2085 = sld [smem:[#allocation10 + $0xa2]]
        %v2086 = vstv %s2085
        %v2087 = vmul.f32 %v2086, %v2059
        %v2088 = vmul.f32 %v2086, %v2060
        %v2089 = vadd.f32 %v2014, %v2087
        %v2090 = vadd.f32 %v2015, %v2088
        %s2091 = sld [smem:[#allocation10 + $0xc6]]
        %v2092 = vstv %s2091
        %v2093 = vmul.f32 %v2092, %v2059
        %v2094 = vmul.f32 %v2092, %v2060
        %v2095 = vadd.f32 %v2028, %v2093
        %v2096 = vadd.f32 %v2029, %v2094
        %s2097 = sld [smem:[#allocation10 + $0xea]]
        %v2098 = vstv %s2097
        %v2099 = vmul.f32 %v2098, %v2059
        %v2100 = vmul.f32 %v2098, %v2060
        %v2101 = vadd.f32 %v2042, %v2099
        %v2102 = vadd.f32 %v2043, %v2100
        %s2103 = sld [smem:[#allocation10 + $0x10e]]
        %v2104 = vstv %s2103
        %v2105 = vmul.f32 %v2104, %v2059
        %v2106 = vmul.f32 %v2104, %v2060
        %v2107 = vadd.f32 %v2056, %v2105
        %v2108 = vadd.f32 %v2057, %v2106
        %s2109 = sld [smem:[#allocation10 + $0x13]]
        %v2110 = vstv %s2109
        %v2111 = vmul.f32 %v2110, %v2059
        %v2112 = vmul.f32 %v2110, %v2060
        %2115 = vrot.lane.b32.xlu0 %v2111, 127
        %v2116 = vpop.permute.xlu0 %2115
        %2117 = vrot.lane.b32.xlu0 %v2112, 127
        %v2118 = vpop.permute.xlu0 %2117
        %v2121 = vadd.f32 %v2065, %v2116
        %v2122 = vadd.f32 %v2066, %v2118
        %s2123 = sld [smem:[#allocation10 + $0x37]]
        %v2124 = vstv %s2123
        %v2125 = vmul.f32 %v2124, %v2059
        %v2126 = vmul.f32 %v2124, %v2060
        %2129 = vrot.lane.b32.xlu0 %v2125, 127
        %v2130 = vpop.permute.xlu0 %2129
        %2131 = vrot.lane.b32.xlu0 %v2126, 127
        %v2132 = vpop.permute.xlu0 %2131
        %v2135 = vadd.f32 %v2071, %v2130
        %v2136 = vadd.f32 %v2072, %v2132
        %s2137 = sld [smem:[#allocation10 + $0x5b]]
        %v2138 = vstv %s2137
        %v2139 = vmul.f32 %v2138, %v2059
        %v2140 = vmul.f32 %v2138, %v2060
        %2143 = vrot.lane.b32.xlu0 %v2139, 127
        %v2144 = vpop.permute.xlu0 %2143
        %2145 = vrot.lane.b32.xlu0 %v2140, 127
        %v2146 = vpop.permute.xlu0 %2145
        %v2149 = vadd.f32 %v2077, %v2144
        %v2150 = vadd.f32 %v2078, %v2146
        %s2151 = sld [smem:[#allocation10 + $0x7f]]
        %v2152 = vstv %s2151
        %v2153 = vmul.f32 %v2152, %v2059
        %v2154 = vmul.f32 %v2152, %v2060
        %2157 = vrot.lane.b32.xlu0 %v2153, 127
        %v2158 = vpop.permute.xlu0 %2157
        %2159 = vrot.lane.b32.xlu0 %v2154, 127
        %v2160 = vpop.permute.xlu0 %2159
        %v2163 = vadd.f32 %v2083, %v2158
        %v2164 = vadd.f32 %v2084, %v2160
        %s2165 = sld [smem:[#allocation10 + $0xa3]]
        %v2166 = vstv %s2165
        %v2167 = vmul.f32 %v2166, %v2059
        %v2168 = vmul.f32 %v2166, %v2060
        %2171 = vrot.lane.b32.xlu0 %v2167, 127
        %v2172 = vpop.permute.xlu0 %2171
        %2173 = vrot.lane.b32.xlu0 %v2168, 127
        %v2174 = vpop.permute.xlu0 %2173
        %v2177 = vadd.f32 %v2089, %v2172
        %v2178 = vadd.f32 %v2090, %v2174
        %s2179 = sld [smem:[#allocation10 + $0xc7]]
        %v2180 = vstv %s2179
        %v2181 = vmul.f32 %v2180, %v2059
        %v2182 = vmul.f32 %v2180, %v2060
        %2185 = vrot.lane.b32.xlu0 %v2181, 127
        %v2186 = vpop.permute.xlu0 %2185
        %2187 = vrot.lane.b32.xlu0 %v2182, 127
        %v2188 = vpop.permute.xlu0 %2187
        %v2191 = vadd.f32 %v2095, %v2186
        %v2192 = vadd.f32 %v2096, %v2188
        %s2193 = sld [smem:[#allocation10 + $0xeb]]
        %v2194 = vstv %s2193
        %v2195 = vmul.f32 %v2194, %v2059
        %v2196 = vmul.f32 %v2194, %v2060
        %2199 = vrot.lane.b32.xlu0 %v2195, 127
        %v2200 = vpop.permute.xlu0 %2199
        %2201 = vrot.lane.b32.xlu0 %v2196, 127
        %v2202 = vpop.permute.xlu0 %2201
        %v2205 = vadd.f32 %v2101, %v2200
        %v2206 = vadd.f32 %v2102, %v2202
        %s2207 = sld [smem:[#allocation10 + $0x10f]]
        %v2208 = vstv %s2207
        %v2209 = vmul.f32 %v2208, %v2059
        %v2210 = vmul.f32 %v2208, %v2060
        %2213 = vrot.lane.b32.xlu0 %v2209, 127
        %v2214 = vpop.permute.xlu0 %2213
        %2215 = vrot.lane.b32.xlu0 %v2210, 127
        %v2216 = vpop.permute.xlu0 %2215
        %v2219 = vadd.f32 %v2107, %v2214
        %v2220 = vadd.f32 %v2108, %v2216
        %s2221 = sld [smem:[#allocation10 + $0x14]]
        %v2222 = vstv %s2221
        %v2223 = vmul.f32 %v2222, %v2059
        %v2224 = vmul.f32 %v2222, %v2060
        %2227 = vrot.lane.b32.xlu0 %v2223, 126
        %v2228 = vpop.permute.xlu0 %2227
        %2229 = vrot.lane.b32.xlu0 %v2224, 126
        %v2230 = vpop.permute.xlu0 %2229
        %v2233 = vadd.f32 %v2121, %v2228
        %v2234 = vadd.f32 %v2122, %v2230
        %s2235 = sld [smem:[#allocation10 + $0x38]]
        %v2236 = vstv %s2235
        %v2237 = vmul.f32 %v2236, %v2059
        %v2238 = vmul.f32 %v2236, %v2060
        %2241 = vrot.lane.b32.xlu0 %v2237, 126
        %v2242 = vpop.permute.xlu0 %2241
        %2243 = vrot.lane.b32.xlu0 %v2238, 126
        %v2244 = vpop.permute.xlu0 %2243
        %v2247 = vadd.f32 %v2135, %v2242
        %v2248 = vadd.f32 %v2136, %v2244
        %s2249 = sld [smem:[#allocation10 + $0x5c]]
        %v2250 = vstv %s2249
        %v2251 = vmul.f32 %v2250, %v2059
        %v2252 = vmul.f32 %v2250, %v2060
        %2255 = vrot.lane.b32.xlu0 %v2251, 126
        %v2256 = vpop.permute.xlu0 %2255
        %2257 = vrot.lane.b32.xlu0 %v2252, 126
        %v2258 = vpop.permute.xlu0 %2257
        %v2261 = vadd.f32 %v2149, %v2256
        %v2262 = vadd.f32 %v2150, %v2258
        %s2263 = sld [smem:[#allocation10 + $0x80]]
        %v2264 = vstv %s2263
        %v2265 = vmul.f32 %v2264, %v2059
        %v2266 = vmul.f32 %v2264, %v2060
        %2269 = vrot.lane.b32.xlu0 %v2265, 126
        %v2270 = vpop.permute.xlu0 %2269
        %2271 = vrot.lane.b32.xlu0 %v2266, 126
        %v2272 = vpop.permute.xlu0 %2271
        %v2275 = vadd.f32 %v2163, %v2270
        %v2276 = vadd.f32 %v2164, %v2272
        %s2277 = sld [smem:[#allocation10 + $0xa4]]
        %v2278 = vstv %s2277
        %v2279 = vmul.f32 %v2278, %v2059
        %v2280 = vmul.f32 %v2278, %v2060
        %2283 = vrot.lane.b32.xlu0 %v2279, 126
        %v2284 = vpop.permute.xlu0 %2283
        %2285 = vrot.lane.b32.xlu0 %v2280, 126
        %v2286 = vpop.permute.xlu0 %2285
        %v2289 = vadd.f32 %v2177, %v2284
        %v2290 = vadd.f32 %v2178, %v2286
        %s2291 = sld [smem:[#allocation10 + $0xc8]]
        %v2292 = vstv %s2291
        %v2293 = vmul.f32 %v2292, %v2059
        %v2294 = vmul.f32 %v2292, %v2060
        %2297 = vrot.lane.b32.xlu0 %v2293, 126
        %v2298 = vpop.permute.xlu0 %2297
        %2299 = vrot.lane.b32.xlu0 %v2294, 126
        %v2300 = vpop.permute.xlu0 %2299
        %v2303 = vadd.f32 %v2191, %v2298
        %v2304 = vadd.f32 %v2192, %v2300
        %s2305 = sld [smem:[#allocation10 + $0xec]]
        %v2306 = vstv %s2305
        %v2307 = vmul.f32 %v2306, %v2059
        %v2308 = vmul.f32 %v2306, %v2060
        %2311 = vrot.lane.b32.xlu0 %v2307, 126
        %v2312 = vpop.permute.xlu0 %2311
        %2313 = vrot.lane.b32.xlu0 %v2308, 126
        %v2314 = vpop.permute.xlu0 %2313
        %v2317 = vadd.f32 %v2205, %v2312
        %v2318 = vadd.f32 %v2206, %v2314
        %s2319 = sld [smem:[#allocation10 + $0x110]]
        %v2320 = vstv %s2319
        %v2321 = vmul.f32 %v2320, %v2059
        %v2322 = vmul.f32 %v2320, %v2060
        %2325 = vrot.lane.b32.xlu0 %v2321, 126
        %v2326 = vpop.permute.xlu0 %2325
        %2327 = vrot.lane.b32.xlu0 %v2322, 126
        %v2328 = vpop.permute.xlu0 %2327
        %v2331 = vadd.f32 %v2219, %v2326
        %v2332 = vadd.f32 %v2220, %v2328
        %v2333 = vld [vmem:[%s2058 + $0x1] sm:$0xff]
        %v2334 = vld [vmem:[%s2058 + $0x9] sm:$0xff]
        %s2335 = sld [smem:[#allocation10 + $0x15]]
        %v2336 = vstv %s2335
        %v2337 = vmul.f32 %v2336, %v2333
        %v2338 = vmul.f32 %v2336, %v2334
        %v2339 = vadd.f32 %v2233, %v2337
        %v2340 = vadd.f32 %v2234, %v2338
        %s2341 = sld [smem:[#allocation10 + $0x39]]
        %v2342 = vstv %s2341
        %v2343 = vmul.f32 %v2342, %v2333
        %v2344 = vmul.f32 %v2342, %v2334
        %v2345 = vadd.f32 %v2247, %v2343
        %v2346 = vadd.f32 %v2248, %v2344
        %s2347 = sld [smem:[#allocation10 + $0x5d]]
        %v2348 = vstv %s2347
        %v2349 = vmul.f32 %v2348, %v2333
        %v2350 = vmul.f32 %v2348, %v2334
        %v2351 = vadd.f32 %v2261, %v2349
        %v2352 = vadd.f32 %v2262, %v2350
        %s2353 = sld [smem:[#allocation10 + $0x81]]
        %v2354 = vstv %s2353
        %v2355 = vmul.f32 %v2354, %v2333
        %v2356 = vmul.f32 %v2354, %v2334
        %v2357 = vadd.f32 %v2275, %v2355
        %v2358 = vadd.f32 %v2276, %v2356
        %s2359 = sld [smem:[#allocation10 + $0xa5]]
        %v2360 = vstv %s2359
        %v2361 = vmul.f32 %v2360, %v2333
        %v2362 = vmul.f32 %v2360, %v2334
        %v2363 = vadd.f32 %v2289, %v2361
        %v2364 = vadd.f32 %v2290, %v2362
        %s2365 = sld [smem:[#allocation10 + $0xc9]]
        %v2366 = vstv %s2365
        %v2367 = vmul.f32 %v2366, %v2333
        %v2368 = vmul.f32 %v2366, %v2334
        %v2369 = vadd.f32 %v2303, %v2367
        %v2370 = vadd.f32 %v2304, %v2368
        %s2371 = sld [smem:[#allocation10 + $0xed]]
        %v2372 = vstv %s2371
        %v2373 = vmul.f32 %v2372, %v2333
        %v2374 = vmul.f32 %v2372, %v2334
        %v2375 = vadd.f32 %v2317, %v2373
        %v2376 = vadd.f32 %v2318, %v2374
        %s2377 = sld [smem:[#allocation10 + $0x111]]
        %v2378 = vstv %s2377
        %v2379 = vmul.f32 %v2378, %v2333
        %v2380 = vmul.f32 %v2378, %v2334
        %v2381 = vadd.f32 %v2331, %v2379
        %v2382 = vadd.f32 %v2332, %v2380
        %s2383 = sld [smem:[#allocation10 + $0x16]]
        %v2384 = vstv %s2383
        %v2385 = vmul.f32 %v2384, %v2333
        %v2386 = vmul.f32 %v2384, %v2334
        %2389 = vrot.lane.b32.xlu0 %v2385, 127
        %v2390 = vpop.permute.xlu0 %2389
        %2391 = vrot.lane.b32.xlu0 %v2386, 127
        %v2392 = vpop.permute.xlu0 %2391
        %v2395 = vadd.f32 %v2339, %v2390
        %v2396 = vadd.f32 %v2340, %v2392
        %s2397 = sld [smem:[#allocation10 + $0x3a]]
        %v2398 = vstv %s2397
        %v2399 = vmul.f32 %v2398, %v2333
        %v2400 = vmul.f32 %v2398, %v2334
        %2403 = vrot.lane.b32.xlu0 %v2399, 127
        %v2404 = vpop.permute.xlu0 %2403
        %2405 = vrot.lane.b32.xlu0 %v2400, 127
        %v2406 = vpop.permute.xlu0 %2405
        %v2409 = vadd.f32 %v2345, %v2404
        %v2410 = vadd.f32 %v2346, %v2406
        %s2411 = sld [smem:[#allocation10 + $0x5e]]
        %v2412 = vstv %s2411
        %v2413 = vmul.f32 %v2412, %v2333
        %v2414 = vmul.f32 %v2412, %v2334
        %2417 = vrot.lane.b32.xlu0 %v2413, 127
        %v2418 = vpop.permute.xlu0 %2417
        %2419 = vrot.lane.b32.xlu0 %v2414, 127
        %v2420 = vpop.permute.xlu0 %2419
        %v2423 = vadd.f32 %v2351, %v2418
        %v2424 = vadd.f32 %v2352, %v2420
        %s2425 = sld [smem:[#allocation10 + $0x82]]
        %v2426 = vstv %s2425
        %v2427 = vmul.f32 %v2426, %v2333
        %v2428 = vmul.f32 %v2426, %v2334
        %2431 = vrot.lane.b32.xlu0 %v2427, 127
        %v2432 = vpop.permute.xlu0 %2431
        %2433 = vrot.lane.b32.xlu0 %v2428, 127
        %v2434 = vpop.permute.xlu0 %2433
        %v2437 = vadd.f32 %v2357, %v2432
        %v2438 = vadd.f32 %v2358, %v2434
        %s2439 = sld [smem:[#allocation10 + $0xa6]]
        %v2440 = vstv %s2439
        %v2441 = vmul.f32 %v2440, %v2333
        %v2442 = vmul.f32 %v2440, %v2334
        %2445 = vrot.lane.b32.xlu0 %v2441, 127
        %v2446 = vpop.permute.xlu0 %2445
        %2447 = vrot.lane.b32.xlu0 %v2442, 127
        %v2448 = vpop.permute.xlu0 %2447
        %v2451 = vadd.f32 %v2363, %v2446
        %v2452 = vadd.f32 %v2364, %v2448
        %s2453 = sld [smem:[#allocation10 + $0xca]]
        %v2454 = vstv %s2453
        %v2455 = vmul.f32 %v2454, %v2333
        %v2456 = vmul.f32 %v2454, %v2334
        %2459 = vrot.lane.b32.xlu0 %v2455, 127
        %v2460 = vpop.permute.xlu0 %2459
        %2461 = vrot.lane.b32.xlu0 %v2456, 127
        %v2462 = vpop.permute.xlu0 %2461
        %v2465 = vadd.f32 %v2369, %v2460
        %v2466 = vadd.f32 %v2370, %v2462
        %s2467 = sld [smem:[#allocation10 + $0xee]]
        %v2468 = vstv %s2467
        %v2469 = vmul.f32 %v2468, %v2333
        %v2470 = vmul.f32 %v2468, %v2334
        %2473 = vrot.lane.b32.xlu0 %v2469, 127
        %v2474 = vpop.permute.xlu0 %2473
        %2475 = vrot.lane.b32.xlu0 %v2470, 127
        %v2476 = vpop.permute.xlu0 %2475
        %v2479 = vadd.f32 %v2375, %v2474
        %v2480 = vadd.f32 %v2376, %v2476
        %s2481 = sld [smem:[#allocation10 + $0x112]]
        %v2482 = vstv %s2481
        %v2483 = vmul.f32 %v2482, %v2333
        %v2484 = vmul.f32 %v2482, %v2334
        %2487 = vrot.lane.b32.xlu0 %v2483, 127
        %v2488 = vpop.permute.xlu0 %2487
        %2489 = vrot.lane.b32.xlu0 %v2484, 127
        %v2490 = vpop.permute.xlu0 %2489
        %v2493 = vadd.f32 %v2381, %v2488
        %v2494 = vadd.f32 %v2382, %v2490
        %s2495 = sld [smem:[#allocation10 + $0x17]]
        %v2496 = vstv %s2495
        %v2497 = vmul.f32 %v2496, %v2333
        %v2498 = vmul.f32 %v2496, %v2334
        %2501 = vrot.lane.b32.xlu0 %v2497, 126
        %v2502 = vpop.permute.xlu0 %2501
        %2503 = vrot.lane.b32.xlu0 %v2498, 126
        %v2504 = vpop.permute.xlu0 %2503
        %v2507 = vadd.f32 %v2395, %v2502
        %v2508 = vadd.f32 %v2396, %v2504
        %s2509 = sld [smem:[#allocation10 + $0x3b]]
        %v2510 = vstv %s2509
        %v2511 = vmul.f32 %v2510, %v2333
        %v2512 = vmul.f32 %v2510, %v2334
        %2515 = vrot.lane.b32.xlu0 %v2511, 126
        %v2516 = vpop.permute.xlu0 %2515
        %2517 = vrot.lane.b32.xlu0 %v2512, 126
        %v2518 = vpop.permute.xlu0 %2517
        %v2521 = vadd.f32 %v2409, %v2516
        %v2522 = vadd.f32 %v2410, %v2518
        %s2523 = sld [smem:[#allocation10 + $0x5f]]
        %v2524 = vstv %s2523
        %v2525 = vmul.f32 %v2524, %v2333
        %v2526 = vmul.f32 %v2524, %v2334
        %2529 = vrot.lane.b32.xlu0 %v2525, 126
        %v2530 = vpop.permute.xlu0 %2529
        %2531 = vrot.lane.b32.xlu0 %v2526, 126
        %v2532 = vpop.permute.xlu0 %2531
        %v2535 = vadd.f32 %v2423, %v2530
        %v2536 = vadd.f32 %v2424, %v2532
        %s2537 = sld [smem:[#allocation10 + $0x83]]
        %v2538 = vstv %s2537
        %v2539 = vmul.f32 %v2538, %v2333
        %v2540 = vmul.f32 %v2538, %v2334
        %2543 = vrot.lane.b32.xlu0 %v2539, 126
        %v2544 = vpop.permute.xlu0 %2543
        %2545 = vrot.lane.b32.xlu0 %v2540, 126
        %v2546 = vpop.permute.xlu0 %2545
        %v2549 = vadd.f32 %v2437, %v2544
        %v2550 = vadd.f32 %v2438, %v2546
        %s2551 = sld [smem:[#allocation10 + $0xa7]]
        %v2552 = vstv %s2551
        %v2553 = vmul.f32 %v2552, %v2333
        %v2554 = vmul.f32 %v2552, %v2334
        %2557 = vrot.lane.b32.xlu0 %v2553, 126
        %v2558 = vpop.permute.xlu0 %2557
        %2559 = vrot.lane.b32.xlu0 %v2554, 126
        %v2560 = vpop.permute.xlu0 %2559
        %v2563 = vadd.f32 %v2451, %v2558
        %v2564 = vadd.f32 %v2452, %v2560
        %s2565 = sld [smem:[#allocation10 + $0xcb]]
        %v2566 = vstv %s2565
        %v2567 = vmul.f32 %v2566, %v2333
        %v2568 = vmul.f32 %v2566, %v2334
        %2571 = vrot.lane.b32.xlu0 %v2567, 126
        %v2572 = vpop.permute.xlu0 %2571
        %2573 = vrot.lane.b32.xlu0 %v2568, 126
        %v2574 = vpop.permute.xlu0 %2573
        %v2577 = vadd.f32 %v2465, %v2572
        %v2578 = vadd.f32 %v2466, %v2574
        %s2579 = sld [smem:[#allocation10 + $0xef]]
        %v2580 = vstv %s2579
        %v2581 = vmul.f32 %v2580, %v2333
        %v2582 = vmul.f32 %v2580, %v2334
        %2585 = vrot.lane.b32.xlu0 %v2581, 126
        %v2586 = vpop.permute.xlu0 %2585
        %2587 = vrot.lane.b32.xlu0 %v2582, 126
        %v2588 = vpop.permute.xlu0 %2587
        %v2591 = vadd.f32 %v2479, %v2586
        %v2592 = vadd.f32 %v2480, %v2588
        %s2593 = sld [smem:[#allocation10 + $0x113]]
        %v2594 = vstv %s2593
        %v2595 = vmul.f32 %v2594, %v2333
        %v2596 = vmul.f32 %v2594, %v2334
        %2599 = vrot.lane.b32.xlu0 %v2595, 126
        %v2600 = vpop.permute.xlu0 %2599
        %2601 = vrot.lane.b32.xlu0 %v2596, 126
        %v2602 = vpop.permute.xlu0 %2601
        %v2605 = vadd.f32 %v2493, %v2600
        %v2606 = vadd.f32 %v2494, %v2602
        %v2607 = vld [vmem:[%s2058 + $0x2] sm:$0xff]
        %v2608 = vld [vmem:[%s2058 + $0xa] sm:$0xff]
        %s2609 = sld [smem:[#allocation10 + $0x18]]
        %v2610 = vstv %s2609
        %v2611 = vmul.f32 %v2610, %v2607
        %v2612 = vmul.f32 %v2610, %v2608
        %v2613 = vadd.f32 %v2507, %v2611
        %v2614 = vadd.f32 %v2508, %v2612
        %s2615 = sld [smem:[#allocation10 + $0x3c]]
        %v2616 = vstv %s2615
        %v2617 = vmul.f32 %v2616, %v2607
        %v2618 = vmul.f32 %v2616, %v2608
        %v2619 = vadd.f32 %v2521, %v2617
        %v2620 = vadd.f32 %v2522, %v2618
        %s2621 = sld [smem:[#allocation10 + $0x60]]
        %v2622 = vstv %s2621
        %v2623 = vmul.f32 %v2622, %v2607
        %v2624 = vmul.f32 %v2622, %v2608
        %v2625 = vadd.f32 %v2535, %v2623
        %v2626 = vadd.f32 %v2536, %v2624
        %s2627 = sld [smem:[#allocation10 + $0x84]]
        %v2628 = vstv %s2627
        %v2629 = vmul.f32 %v2628, %v2607
        %v2630 = vmul.f32 %v2628, %v2608
        %v2631 = vadd.f32 %v2549, %v2629
        %v2632 = vadd.f32 %v2550, %v2630
        %s2633 = sld [smem:[#allocation10 + $0xa8]]
        %v2634 = vstv %s2633
        %v2635 = vmul.f32 %v2634, %v2607
        %v2636 = vmul.f32 %v2634, %v2608
        %v2637 = vadd.f32 %v2563, %v2635
        %v2638 = vadd.f32 %v2564, %v2636
        %s2639 = sld [smem:[#allocation10 + $0xcc]]
        %v2640 = vstv %s2639
        %v2641 = vmul.f32 %v2640, %v2607
        %v2642 = vmul.f32 %v2640, %v2608
        %v2643 = vadd.f32 %v2577, %v2641
        %v2644 = vadd.f32 %v2578, %v2642
        %s2645 = sld [smem:[#allocation10 + $0xf0]]
        %v2646 = vstv %s2645
        %v2647 = vmul.f32 %v2646, %v2607
        %v2648 = vmul.f32 %v2646, %v2608
        %v2649 = vadd.f32 %v2591, %v2647
        %v2650 = vadd.f32 %v2592, %v2648
        %s2651 = sld [smem:[#allocation10 + $0x114]]
        %v2652 = vstv %s2651
        %v2653 = vmul.f32 %v2652, %v2607
        %v2654 = vmul.f32 %v2652, %v2608
        %v2655 = vadd.f32 %v2605, %v2653
        %v2656 = vadd.f32 %v2606, %v2654
        %s2657 = sld [smem:[#allocation10 + $0x19]]
        %v2658 = vstv %s2657
        %v2659 = vmul.f32 %v2658, %v2607
        %v2660 = vmul.f32 %v2658, %v2608
        %2663 = vrot.lane.b32.xlu0 %v2659, 127
        %v2664 = vpop.permute.xlu0 %2663
        %2665 = vrot.lane.b32.xlu0 %v2660, 127
        %v2666 = vpop.permute.xlu0 %2665
        %v2669 = vadd.f32 %v2613, %v2664
        %v2670 = vadd.f32 %v2614, %v2666
        %s2671 = sld [smem:[#allocation10 + $0x3d]]
        %v2672 = vstv %s2671
        %v2673 = vmul.f32 %v2672, %v2607
        %v2674 = vmul.f32 %v2672, %v2608
        %2677 = vrot.lane.b32.xlu0 %v2673, 127
        %v2678 = vpop.permute.xlu0 %2677
        %2679 = vrot.lane.b32.xlu0 %v2674, 127
        %v2680 = vpop.permute.xlu0 %2679
        %v2683 = vadd.f32 %v2619, %v2678
        %v2684 = vadd.f32 %v2620, %v2680
        %s2685 = sld [smem:[#allocation10 + $0x61]]
        %v2686 = vstv %s2685
        %v2687 = vmul.f32 %v2686, %v2607
        %v2688 = vmul.f32 %v2686, %v2608
        %2691 = vrot.lane.b32.xlu0 %v2687, 127
        %v2692 = vpop.permute.xlu0 %2691
        %2693 = vrot.lane.b32.xlu0 %v2688, 127
        %v2694 = vpop.permute.xlu0 %2693
        %v2697 = vadd.f32 %v2625, %v2692
        %v2698 = vadd.f32 %v2626, %v2694
        %s2699 = sld [smem:[#allocation10 + $0x85]]
        %v2700 = vstv %s2699
        %v2701 = vmul.f32 %v2700, %v2607
        %v2702 = vmul.f32 %v2700, %v2608
        %2705 = vrot.lane.b32.xlu0 %v2701, 127
        %v2706 = vpop.permute.xlu0 %2705
        %2707 = vrot.lane.b32.xlu0 %v2702, 127
        %v2708 = vpop.permute.xlu0 %2707
        %v2711 = vadd.f32 %v2631, %v2706
        %v2712 = vadd.f32 %v2632, %v2708
        %s2713 = sld [smem:[#allocation10 + $0xa9]]
        %v2714 = vstv %s2713
        %v2715 = vmul.f32 %v2714, %v2607
        %v2716 = vmul.f32 %v2714, %v2608
        %2719 = vrot.lane.b32.xlu0 %v2715, 127
        %v2720 = vpop.permute.xlu0 %2719
        %2721 = vrot.lane.b32.xlu0 %v2716, 127
        %v2722 = vpop.permute.xlu0 %2721
        %v2725 = vadd.f32 %v2637, %v2720
        %v2726 = vadd.f32 %v2638, %v2722
        %s2727 = sld [smem:[#allocation10 + $0xcd]]
        %v2728 = vstv %s2727
        %v2729 = vmul.f32 %v2728, %v2607
        %v2730 = vmul.f32 %v2728, %v2608
        %2733 = vrot.lane.b32.xlu0 %v2729, 127
        %v2734 = vpop.permute.xlu0 %2733
        %2735 = vrot.lane.b32.xlu0 %v2730, 127
        %v2736 = vpop.permute.xlu0 %2735
        %v2739 = vadd.f32 %v2643, %v2734
        %v2740 = vadd.f32 %v2644, %v2736
        %s2741 = sld [smem:[#allocation10 + $0xf1]]
        %v2742 = vstv %s2741
        %v2743 = vmul.f32 %v2742, %v2607
        %v2744 = vmul.f32 %v2742, %v2608
        %2747 = vrot.lane.b32.xlu0 %v2743, 127
        %v2748 = vpop.permute.xlu0 %2747
        %2749 = vrot.lane.b32.xlu0 %v2744, 127
        %v2750 = vpop.permute.xlu0 %2749
        %v2753 = vadd.f32 %v2649, %v2748
        %v2754 = vadd.f32 %v2650, %v2750
        %s2755 = sld [smem:[#allocation10 + $0x115]]
        %v2756 = vstv %s2755
        %v2757 = vmul.f32 %v2756, %v2607
        %v2758 = vmul.f32 %v2756, %v2608
        %2761 = vrot.lane.b32.xlu0 %v2757, 127
        %v2762 = vpop.permute.xlu0 %2761
        %2763 = vrot.lane.b32.xlu0 %v2758, 127
        %v2764 = vpop.permute.xlu0 %2763
        %v2767 = vadd.f32 %v2655, %v2762
        %v2768 = vadd.f32 %v2656, %v2764
        %s2769 = sld [smem:[#allocation10 + $0x1a]]
        %v2770 = vstv %s2769
        %v2771 = vmul.f32 %v2770, %v2607
        %v2772 = vmul.f32 %v2770, %v2608
        %2775 = vrot.lane.b32.xlu0 %v2771, 126
        %v2776 = vpop.permute.xlu0 %2775
        %2777 = vrot.lane.b32.xlu0 %v2772, 126
        %v2778 = vpop.permute.xlu0 %2777
        %v2781 = vadd.f32 %v2669, %v2776
        %v2782 = vadd.f32 %v2670, %v2778
        %s2783 = sld [smem:[#allocation10 + $0x3e]]
        %v2784 = vstv %s2783
        %v2785 = vmul.f32 %v2784, %v2607
        %v2786 = vmul.f32 %v2784, %v2608
        %2789 = vrot.lane.b32.xlu0 %v2785, 126
        %v2790 = vpop.permute.xlu0 %2789
        %2791 = vrot.lane.b32.xlu0 %v2786, 126
        %v2792 = vpop.permute.xlu0 %2791
        %v2795 = vadd.f32 %v2683, %v2790
        %v2796 = vadd.f32 %v2684, %v2792
        %s2797 = sld [smem:[#allocation10 + $0x62]]
        %v2798 = vstv %s2797
        %v2799 = vmul.f32 %v2798, %v2607
        %v2800 = vmul.f32 %v2798, %v2608
        %2803 = vrot.lane.b32.xlu0 %v2799, 126
        %v2804 = vpop.permute.xlu0 %2803
        %2805 = vrot.lane.b32.xlu0 %v2800, 126
        %v2806 = vpop.permute.xlu0 %2805
        %v2809 = vadd.f32 %v2697, %v2804
        %v2810 = vadd.f32 %v2698, %v2806
        %s2811 = sld [smem:[#allocation10 + $0x86]]
        %v2812 = vstv %s2811
        %v2813 = vmul.f32 %v2812, %v2607
        %v2814 = vmul.f32 %v2812, %v2608
        %2817 = vrot.lane.b32.xlu0 %v2813, 126
        %v2818 = vpop.permute.xlu0 %2817
        %2819 = vrot.lane.b32.xlu0 %v2814, 126
        %v2820 = vpop.permute.xlu0 %2819
        %v2823 = vadd.f32 %v2711, %v2818
        %v2824 = vadd.f32 %v2712, %v2820
        %s2825 = sld [smem:[#allocation10 + $0xaa]]
        %v2826 = vstv %s2825
        %v2827 = vmul.f32 %v2826, %v2607
        %v2828 = vmul.f32 %v2826, %v2608
        %2831 = vrot.lane.b32.xlu0 %v2827, 126
        %v2832 = vpop.permute.xlu0 %2831
        %2833 = vrot.lane.b32.xlu0 %v2828, 126
        %v2834 = vpop.permute.xlu0 %2833
        %v2837 = vadd.f32 %v2725, %v2832
        %v2838 = vadd.f32 %v2726, %v2834
        %s2839 = sld [smem:[#allocation10 + $0xce]]
        %v2840 = vstv %s2839
        %v2841 = vmul.f32 %v2840, %v2607
        %v2842 = vmul.f32 %v2840, %v2608
        %2845 = vrot.lane.b32.xlu0 %v2841, 126
        %v2846 = vpop.permute.xlu0 %2845
        %2847 = vrot.lane.b32.xlu0 %v2842, 126
        %v2848 = vpop.permute.xlu0 %2847
        %v2851 = vadd.f32 %v2739, %v2846
        %v2852 = vadd.f32 %v2740, %v2848
        %s2853 = sld [smem:[#allocation10 + $0xf2]]
        %v2854 = vstv %s2853
        %v2855 = vmul.f32 %v2854, %v2607
        %v2856 = vmul.f32 %v2854, %v2608
        %2859 = vrot.lane.b32.xlu0 %v2855, 126
        %v2860 = vpop.permute.xlu0 %2859
        %2861 = vrot.lane.b32.xlu0 %v2856, 126
        %v2862 = vpop.permute.xlu0 %2861
        %v2865 = vadd.f32 %v2753, %v2860
        %v2866 = vadd.f32 %v2754, %v2862
        %s2867 = sld [smem:[#allocation10 + $0x116]]
        %v2868 = vstv %s2867
        %v2869 = vmul.f32 %v2868, %v2607
        %v2870 = vmul.f32 %v2868, %v2608
        %2873 = vrot.lane.b32.xlu0 %v2869, 126
        %v2874 = vpop.permute.xlu0 %2873
        %2875 = vrot.lane.b32.xlu0 %v2870, 126
        %v2876 = vpop.permute.xlu0 %2875
        %v2879 = vadd.f32 %v2767, %v2874
        %v2880 = vadd.f32 %v2768, %v2876
        %s2881 = scalar_lea.vmem [#allocation2], 72
        %v2882 = vld [vmem:[%s2881] sm:$0xff]
        %v2883 = vld [vmem:[%s2881 + $0x8] sm:$0xff]
        %s2884 = sld [smem:[#allocation10 + $0x1b]]
        %v2885 = vstv %s2884
        %v2886 = vmul.f32 %v2885, %v2882
        %v2887 = vmul.f32 %v2885, %v2883
        %v2888 = vadd.f32 %v2781, %v2886
        %v2889 = vadd.f32 %v2782, %v2887
        %s2890 = sld [smem:[#allocation10 + $0x3f]]
        %v2891 = vstv %s2890
        %v2892 = vmul.f32 %v2891, %v2882
        %v2893 = vmul.f32 %v2891, %v2883
        %v2894 = vadd.f32 %v2795, %v2892
        %v2895 = vadd.f32 %v2796, %v2893
        %s2896 = sld [smem:[#allocation10 + $0x63]]
        %v2897 = vstv %s2896
        %v2898 = vmul.f32 %v2897, %v2882
        %v2899 = vmul.f32 %v2897, %v2883
        %v2900 = vadd.f32 %v2809, %v2898
        %v2901 = vadd.f32 %v2810, %v2899
        %s2902 = sld [smem:[#allocation10 + $0x87]]
        %v2903 = vstv %s2902
        %v2904 = vmul.f32 %v2903, %v2882
        %v2905 = vmul.f32 %v2903, %v2883
        %v2906 = vadd.f32 %v2823, %v2904
        %v2907 = vadd.f32 %v2824, %v2905
        %s2908 = sld [smem:[#allocation10 + $0xab]]
        %v2909 = vstv %s2908
        %v2910 = vmul.f32 %v2909, %v2882
        %v2911 = vmul.f32 %v2909, %v2883
        %v2912 = vadd.f32 %v2837, %v2910
        %v2913 = vadd.f32 %v2838, %v2911
        %s2914 = sld [smem:[#allocation10 + $0xcf]]
        %v2915 = vstv %s2914
        %v2916 = vmul.f32 %v2915, %v2882
        %v2917 = vmul.f32 %v2915, %v2883
        %v2918 = vadd.f32 %v2851, %v2916
        %v2919 = vadd.f32 %v2852, %v2917
        %s2920 = sld [smem:[#allocation10 + $0xf3]]
        %v2921 = vstv %s2920
        %v2922 = vmul.f32 %v2921, %v2882
        %v2923 = vmul.f32 %v2921, %v2883
        %v2924 = vadd.f32 %v2865, %v2922
        %v2925 = vadd.f32 %v2866, %v2923
        %s2926 = sld [smem:[#allocation10 + $0x117]]
        %v2927 = vstv %s2926
        %v2928 = vmul.f32 %v2927, %v2882
        %v2929 = vmul.f32 %v2927, %v2883
        %v2930 = vadd.f32 %v2879, %v2928
        %v2931 = vadd.f32 %v2880, %v2929
        %s2932 = sld [smem:[#allocation10 + $0x1c]]
        %v2933 = vstv %s2932
        %v2934 = vmul.f32 %v2933, %v2882
        %v2935 = vmul.f32 %v2933, %v2883
        %2938 = vrot.lane.b32.xlu0 %v2934, 127
        %v2939 = vpop.permute.xlu0 %2938
        %2940 = vrot.lane.b32.xlu0 %v2935, 127
        %v2941 = vpop.permute.xlu0 %2940
        %v2944 = vadd.f32 %v2888, %v2939
        %v2945 = vadd.f32 %v2889, %v2941
        %s2946 = sld [smem:[#allocation10 + $0x40]]
        %v2947 = vstv %s2946
        %v2948 = vmul.f32 %v2947, %v2882
        %v2949 = vmul.f32 %v2947, %v2883
        %2952 = vrot.lane.b32.xlu0 %v2948, 127
        %v2953 = vpop.permute.xlu0 %2952
        %2954 = vrot.lane.b32.xlu0 %v2949, 127
        %v2955 = vpop.permute.xlu0 %2954
        %v2958 = vadd.f32 %v2894, %v2953
        %v2959 = vadd.f32 %v2895, %v2955
        %s2960 = sld [smem:[#allocation10 + $0x64]]
        %v2961 = vstv %s2960
        %v2962 = vmul.f32 %v2961, %v2882
        %v2963 = vmul.f32 %v2961, %v2883
        %2966 = vrot.lane.b32.xlu0 %v2962, 127
        %v2967 = vpop.permute.xlu0 %2966
        %2968 = vrot.lane.b32.xlu0 %v2963, 127
        %v2969 = vpop.permute.xlu0 %2968
        %v2972 = vadd.f32 %v2900, %v2967
        %v2973 = vadd.f32 %v2901, %v2969
        %s2974 = sld [smem:[#allocation10 + $0x88]]
        %v2975 = vstv %s2974
        %v2976 = vmul.f32 %v2975, %v2882
        %v2977 = vmul.f32 %v2975, %v2883
        %2980 = vrot.lane.b32.xlu0 %v2976, 127
        %v2981 = vpop.permute.xlu0 %2980
        %2982 = vrot.lane.b32.xlu0 %v2977, 127
        %v2983 = vpop.permute.xlu0 %2982
        %v2986 = vadd.f32 %v2906, %v2981
        %v2987 = vadd.f32 %v2907, %v2983
        %s2988 = sld [smem:[#allocation10 + $0xac]]
        %v2989 = vstv %s2988
        %v2990 = vmul.f32 %v2989, %v2882
        %v2991 = vmul.f32 %v2989, %v2883
        %2994 = vrot.lane.b32.xlu0 %v2990, 127
        %v2995 = vpop.permute.xlu0 %2994
        %2996 = vrot.lane.b32.xlu0 %v2991, 127
        %v2997 = vpop.permute.xlu0 %2996
        %v3000 = vadd.f32 %v2912, %v2995
        %v3001 = vadd.f32 %v2913, %v2997
        %s3002 = sld [smem:[#allocation10 + $0xd0]]
        %v3003 = vstv %s3002
        %v3004 = vmul.f32 %v3003, %v2882
        %v3005 = vmul.f32 %v3003, %v2883
        %3008 = vrot.lane.b32.xlu0 %v3004, 127
        %v3009 = vpop.permute.xlu0 %3008
        %3010 = vrot.lane.b32.xlu0 %v3005, 127
        %v3011 = vpop.permute.xlu0 %3010
        %v3014 = vadd.f32 %v2918, %v3009
        %v3015 = vadd.f32 %v2919, %v3011
        %s3016 = sld [smem:[#allocation10 + $0xf4]]
        %v3017 = vstv %s3016
        %v3018 = vmul.f32 %v3017, %v2882
        %v3019 = vmul.f32 %v3017, %v2883
        %3022 = vrot.lane.b32.xlu0 %v3018, 127
        %v3023 = vpop.permute.xlu0 %3022
        %3024 = vrot.lane.b32.xlu0 %v3019, 127
        %v3025 = vpop.permute.xlu0 %3024
        %v3028 = vadd.f32 %v2924, %v3023
        %v3029 = vadd.f32 %v2925, %v3025
        %s3030 = sld [smem:[#allocation10 + $0x118]]
        %v3031 = vstv %s3030
        %v3032 = vmul.f32 %v3031, %v2882
        %v3033 = vmul.f32 %v3031, %v2883
        %3036 = vrot.lane.b32.xlu0 %v3032, 127
        %v3037 = vpop.permute.xlu0 %3036
        %3038 = vrot.lane.b32.xlu0 %v3033, 127
        %v3039 = vpop.permute.xlu0 %3038
        %v3042 = vadd.f32 %v2930, %v3037
        %v3043 = vadd.f32 %v2931, %v3039
        %s3044 = sld [smem:[#allocation10 + $0x1d]]
        %v3045 = vstv %s3044
        %v3046 = vmul.f32 %v3045, %v2882
        %v3047 = vmul.f32 %v3045, %v2883
        %3050 = vrot.lane.b32.xlu0 %v3046, 126
        %v3051 = vpop.permute.xlu0 %3050
        %3052 = vrot.lane.b32.xlu0 %v3047, 126
        %v3053 = vpop.permute.xlu0 %3052
        %v3056 = vadd.f32 %v2944, %v3051
        %v3057 = vadd.f32 %v2945, %v3053
        %s3058 = sld [smem:[#allocation10 + $0x41]]
        %v3059 = vstv %s3058
        %v3060 = vmul.f32 %v3059, %v2882
        %v3061 = vmul.f32 %v3059, %v2883
        %3064 = vrot.lane.b32.xlu0 %v3060, 126
        %v3065 = vpop.permute.xlu0 %3064
        %3066 = vrot.lane.b32.xlu0 %v3061, 126
        %v3067 = vpop.permute.xlu0 %3066
        %v3070 = vadd.f32 %v2958, %v3065
        %v3071 = vadd.f32 %v2959, %v3067
        %s3072 = sld [smem:[#allocation10 + $0x65]]
        %v3073 = vstv %s3072
        %v3074 = vmul.f32 %v3073, %v2882
        %v3075 = vmul.f32 %v3073, %v2883
        %3078 = vrot.lane.b32.xlu0 %v3074, 126
        %v3079 = vpop.permute.xlu0 %3078
        %3080 = vrot.lane.b32.xlu0 %v3075, 126
        %v3081 = vpop.permute.xlu0 %3080
        %v3084 = vadd.f32 %v2972, %v3079
        %v3085 = vadd.f32 %v2973, %v3081
        %s3086 = sld [smem:[#allocation10 + $0x89]]
        %v3087 = vstv %s3086
        %v3088 = vmul.f32 %v3087, %v2882
        %v3089 = vmul.f32 %v3087, %v2883
        %3092 = vrot.lane.b32.xlu0 %v3088, 126
        %v3093 = vpop.permute.xlu0 %3092
        %3094 = vrot.lane.b32.xlu0 %v3089, 126
        %v3095 = vpop.permute.xlu0 %3094
        %v3098 = vadd.f32 %v2986, %v3093
        %v3099 = vadd.f32 %v2987, %v3095
        %s3100 = sld [smem:[#allocation10 + $0xad]]
        %v3101 = vstv %s3100
        %v3102 = vmul.f32 %v3101, %v2882
        %v3103 = vmul.f32 %v3101, %v2883
        %3106 = vrot.lane.b32.xlu0 %v3102, 126
        %v3107 = vpop.permute.xlu0 %3106
        %3108 = vrot.lane.b32.xlu0 %v3103, 126
        %v3109 = vpop.permute.xlu0 %3108
        %v3112 = vadd.f32 %v3000, %v3107
        %v3113 = vadd.f32 %v3001, %v3109
        %s3114 = sld [smem:[#allocation10 + $0xd1]]
        %v3115 = vstv %s3114
        %v3116 = vmul.f32 %v3115, %v2882
        %v3117 = vmul.f32 %v3115, %v2883
        %3120 = vrot.lane.b32.xlu0 %v3116, 126
        %v3121 = vpop.permute.xlu0 %3120
        %3122 = vrot.lane.b32.xlu0 %v3117, 126
        %v3123 = vpop.permute.xlu0 %3122
        %v3126 = vadd.f32 %v3014, %v3121
        %v3127 = vadd.f32 %v3015, %v3123
        %s3128 = sld [smem:[#allocation10 + $0xf5]]
        %v3129 = vstv %s3128
        %v3130 = vmul.f32 %v3129, %v2882
        %v3131 = vmul.f32 %v3129, %v2883
        %3134 = vrot.lane.b32.xlu0 %v3130, 126
        %v3135 = vpop.permute.xlu0 %3134
        %3136 = vrot.lane.b32.xlu0 %v3131, 126
        %v3137 = vpop.permute.xlu0 %3136
        %v3140 = vadd.f32 %v3028, %v3135
        %v3141 = vadd.f32 %v3029, %v3137
        %s3142 = sld [smem:[#allocation10 + $0x119]]
        %v3143 = vstv %s3142
        %v3144 = vmul.f32 %v3143, %v2882
        %v3145 = vmul.f32 %v3143, %v2883
        %3148 = vrot.lane.b32.xlu0 %v3144, 126
        %v3149 = vpop.permute.xlu0 %3148
        %3150 = vrot.lane.b32.xlu0 %v3145, 126
        %v3151 = vpop.permute.xlu0 %3150
        %v3154 = vadd.f32 %v3042, %v3149
        %v3155 = vadd.f32 %v3043, %v3151
        %v3156 = vld [vmem:[%s2881 + $0x1] sm:$0xff]
        %v3157 = vld [vmem:[%s2881 + $0x9] sm:$0xff]
        %s3158 = sld [smem:[#allocation10 + $0x1e]]
        %v3159 = vstv %s3158
        %v3160 = vmul.f32 %v3159, %v3156
        %v3161 = vmul.f32 %v3159, %v3157
        %v3162 = vadd.f32 %v3056, %v3160
        %v3163 = vadd.f32 %v3057, %v3161
        %s3164 = sld [smem:[#allocation10 + $0x42]]
        %v3165 = vstv %s3164
        %v3166 = vmul.f32 %v3165, %v3156
        %v3167 = vmul.f32 %v3165, %v3157
        %v3168 = vadd.f32 %v3070, %v3166
        %v3169 = vadd.f32 %v3071, %v3167
        %s3170 = sld [smem:[#allocation10 + $0x66]]
        %v3171 = vstv %s3170
        %v3172 = vmul.f32 %v3171, %v3156
        %v3173 = vmul.f32 %v3171, %v3157
        %v3174 = vadd.f32 %v3084, %v3172
        %v3175 = vadd.f32 %v3085, %v3173
        %s3176 = sld [smem:[#allocation10 + $0x8a]]
        %v3177 = vstv %s3176
        %v3178 = vmul.f32 %v3177, %v3156
        %v3179 = vmul.f32 %v3177, %v3157
        %v3180 = vadd.f32 %v3098, %v3178
        %v3181 = vadd.f32 %v3099, %v3179
        %s3182 = sld [smem:[#allocation10 + $0xae]]
        %v3183 = vstv %s3182
        %v3184 = vmul.f32 %v3183, %v3156
        %v3185 = vmul.f32 %v3183, %v3157
        %v3186 = vadd.f32 %v3112, %v3184
        %v3187 = vadd.f32 %v3113, %v3185
        %s3188 = sld [smem:[#allocation10 + $0xd2]]
        %v3189 = vstv %s3188
        %v3190 = vmul.f32 %v3189, %v3156
        %v3191 = vmul.f32 %v3189, %v3157
        %v3192 = vadd.f32 %v3126, %v3190
        %v3193 = vadd.f32 %v3127, %v3191
        %s3194 = sld [smem:[#allocation10 + $0xf6]]
        %v3195 = vstv %s3194
        %v3196 = vmul.f32 %v3195, %v3156
        %v3197 = vmul.f32 %v3195, %v3157
        %v3198 = vadd.f32 %v3140, %v3196
        %v3199 = vadd.f32 %v3141, %v3197
        %s3200 = sld [smem:[#allocation10 + $0x11a]]
        %v3201 = vstv %s3200
        %v3202 = vmul.f32 %v3201, %v3156
        %v3203 = vmul.f32 %v3201, %v3157
        %v3204 = vadd.f32 %v3154, %v3202
        %v3205 = vadd.f32 %v3155, %v3203
        %s3206 = sld [smem:[#allocation10 + $0x1f]]
        %v3207 = vstv %s3206
        %v3208 = vmul.f32 %v3207, %v3156
        %v3209 = vmul.f32 %v3207, %v3157
        %3212 = vrot.lane.b32.xlu0 %v3208, 127
        %v3213 = vpop.permute.xlu0 %3212
        %3214 = vrot.lane.b32.xlu0 %v3209, 127
        %v3215 = vpop.permute.xlu0 %3214
        %v3218 = vadd.f32 %v3162, %v3213
        %v3219 = vadd.f32 %v3163, %v3215
        %s3220 = sld [smem:[#allocation10 + $0x43]]
        %v3221 = vstv %s3220
        %v3222 = vmul.f32 %v3221, %v3156
        %v3223 = vmul.f32 %v3221, %v3157
        %3226 = vrot.lane.b32.xlu0 %v3222, 127
        %v3227 = vpop.permute.xlu0 %3226
        %3228 = vrot.lane.b32.xlu0 %v3223, 127
        %v3229 = vpop.permute.xlu0 %3228
        %v3232 = vadd.f32 %v3168, %v3227
        %v3233 = vadd.f32 %v3169, %v3229
        %s3234 = sld [smem:[#allocation10 + $0x67]]
        %v3235 = vstv %s3234
        %v3236 = vmul.f32 %v3235, %v3156
        %v3237 = vmul.f32 %v3235, %v3157
        %3240 = vrot.lane.b32.xlu0 %v3236, 127
        %v3241 = vpop.permute.xlu0 %3240
        %3242 = vrot.lane.b32.xlu0 %v3237, 127
        %v3243 = vpop.permute.xlu0 %3242
        %v3246 = vadd.f32 %v3174, %v3241
        %v3247 = vadd.f32 %v3175, %v3243
        %s3248 = sld [smem:[#allocation10 + $0x8b]]
        %v3249 = vstv %s3248
        %v3250 = vmul.f32 %v3249, %v3156
        %v3251 = vmul.f32 %v3249, %v3157
        %3254 = vrot.lane.b32.xlu0 %v3250, 127
        %v3255 = vpop.permute.xlu0 %3254
        %3256 = vrot.lane.b32.xlu0 %v3251, 127
        %v3257 = vpop.permute.xlu0 %3256
        %v3260 = vadd.f32 %v3180, %v3255
        %v3261 = vadd.f32 %v3181, %v3257
        %s3262 = sld [smem:[#allocation10 + $0xaf]]
        %v3263 = vstv %s3262
        %v3264 = vmul.f32 %v3263, %v3156
        %v3265 = vmul.f32 %v3263, %v3157
        %3268 = vrot.lane.b32.xlu0 %v3264, 127
        %v3269 = vpop.permute.xlu0 %3268
        %3270 = vrot.lane.b32.xlu0 %v3265, 127
        %v3271 = vpop.permute.xlu0 %3270
        %v3274 = vadd.f32 %v3186, %v3269
        %v3275 = vadd.f32 %v3187, %v3271
        %s3276 = sld [smem:[#allocation10 + $0xd3]]
        %v3277 = vstv %s3276
        %v3278 = vmul.f32 %v3277, %v3156
        %v3279 = vmul.f32 %v3277, %v3157
        %3282 = vrot.lane.b32.xlu0 %v3278, 127
        %v3283 = vpop.permute.xlu0 %3282
        %3284 = vrot.lane.b32.xlu0 %v3279, 127
        %v3285 = vpop.permute.xlu0 %3284
        %v3288 = vadd.f32 %v3192, %v3283
        %v3289 = vadd.f32 %v3193, %v3285
        %s3290 = sld [smem:[#allocation10 + $0xf7]]
        %v3291 = vstv %s3290
        %v3292 = vmul.f32 %v3291, %v3156
        %v3293 = vmul.f32 %v3291, %v3157
        %3296 = vrot.lane.b32.xlu0 %v3292, 127
        %v3297 = vpop.permute.xlu0 %3296
        %3298 = vrot.lane.b32.xlu0 %v3293, 127
        %v3299 = vpop.permute.xlu0 %3298
        %v3302 = vadd.f32 %v3198, %v3297
        %v3303 = vadd.f32 %v3199, %v3299
        %s3304 = sld [smem:[#allocation10 + $0x11b]]
        %v3305 = vstv %s3304
        %v3306 = vmul.f32 %v3305, %v3156
        %v3307 = vmul.f32 %v3305, %v3157
        %3310 = vrot.lane.b32.xlu0 %v3306, 127
        %v3311 = vpop.permute.xlu0 %3310
        %3312 = vrot.lane.b32.xlu0 %v3307, 127
        %v3313 = vpop.permute.xlu0 %3312
        %v3316 = vadd.f32 %v3204, %v3311
        %v3317 = vadd.f32 %v3205, %v3313
        %s3318 = sld [smem:[#allocation10 + $0x20]]
        %v3319 = vstv %s3318
        %v3320 = vmul.f32 %v3319, %v3156
        %v3321 = vmul.f32 %v3319, %v3157
        %3324 = vrot.lane.b32.xlu0 %v3320, 126
        %v3325 = vpop.permute.xlu0 %3324
        %3326 = vrot.lane.b32.xlu0 %v3321, 126
        %v3327 = vpop.permute.xlu0 %3326
        %v3330 = vadd.f32 %v3218, %v3325
        %v3331 = vadd.f32 %v3219, %v3327
        %s3332 = sld [smem:[#allocation10 + $0x44]]
        %v3333 = vstv %s3332
        %v3334 = vmul.f32 %v3333, %v3156
        %v3335 = vmul.f32 %v3333, %v3157
        %3338 = vrot.lane.b32.xlu0 %v3334, 126
        %v3339 = vpop.permute.xlu0 %3338
        %3340 = vrot.lane.b32.xlu0 %v3335, 126
        %v3341 = vpop.permute.xlu0 %3340
        %v3344 = vadd.f32 %v3232, %v3339
        %v3345 = vadd.f32 %v3233, %v3341
        %s3346 = sld [smem:[#allocation10 + $0x68]]
        %v3347 = vstv %s3346
        %v3348 = vmul.f32 %v3347, %v3156
        %v3349 = vmul.f32 %v3347, %v3157
        %3352 = vrot.lane.b32.xlu0 %v3348, 126
        %v3353 = vpop.permute.xlu0 %3352
        %3354 = vrot.lane.b32.xlu0 %v3349, 126
        %v3355 = vpop.permute.xlu0 %3354
        %v3358 = vadd.f32 %v3246, %v3353
        %v3359 = vadd.f32 %v3247, %v3355
        %s3360 = sld [smem:[#allocation10 + $0x8c]]
        %v3361 = vstv %s3360
        %v3362 = vmul.f32 %v3361, %v3156
        %v3363 = vmul.f32 %v3361, %v3157
        %3366 = vrot.lane.b32.xlu0 %v3362, 126
        %v3367 = vpop.permute.xlu0 %3366
        %3368 = vrot.lane.b32.xlu0 %v3363, 126
        %v3369 = vpop.permute.xlu0 %3368
        %v3372 = vadd.f32 %v3260, %v3367
        %v3373 = vadd.f32 %v3261, %v3369
        %s3374 = sld [smem:[#allocation10 + $0xb0]]
        %v3375 = vstv %s3374
        %v3376 = vmul.f32 %v3375, %v3156
        %v3377 = vmul.f32 %v3375, %v3157
        %3380 = vrot.lane.b32.xlu0 %v3376, 126
        %v3381 = vpop.permute.xlu0 %3380
        %3382 = vrot.lane.b32.xlu0 %v3377, 126
        %v3383 = vpop.permute.xlu0 %3382
        %v3386 = vadd.f32 %v3274, %v3381
        %v3387 = vadd.f32 %v3275, %v3383
        %s3388 = sld [smem:[#allocation10 + $0xd4]]
        %v3389 = vstv %s3388
        %v3390 = vmul.f32 %v3389, %v3156
        %v3391 = vmul.f32 %v3389, %v3157
        %3394 = vrot.lane.b32.xlu0 %v3390, 126
        %v3395 = vpop.permute.xlu0 %3394
        %3396 = vrot.lane.b32.xlu0 %v3391, 126
        %v3397 = vpop.permute.xlu0 %3396
        %v3400 = vadd.f32 %v3288, %v3395
        %v3401 = vadd.f32 %v3289, %v3397
        %s3402 = sld [smem:[#allocation10 + $0xf8]]
        %v3403 = vstv %s3402
        %v3404 = vmul.f32 %v3403, %v3156
        %v3405 = vmul.f32 %v3403, %v3157
        %3408 = vrot.lane.b32.xlu0 %v3404, 126
        %v3409 = vpop.permute.xlu0 %3408
        %3410 = vrot.lane.b32.xlu0 %v3405, 126
        %v3411 = vpop.permute.xlu0 %3410
        %v3414 = vadd.f32 %v3302, %v3409
        %v3415 = vadd.f32 %v3303, %v3411
        %s3416 = sld [smem:[#allocation10 + $0x11c]]
        %v3417 = vstv %s3416
        %v3418 = vmul.f32 %v3417, %v3156
        %v3419 = vmul.f32 %v3417, %v3157
        %3422 = vrot.lane.b32.xlu0 %v3418, 126
        %v3423 = vpop.permute.xlu0 %3422
        %3424 = vrot.lane.b32.xlu0 %v3419, 126
        %v3425 = vpop.permute.xlu0 %3424
        %v3428 = vadd.f32 %v3316, %v3423
        %v3429 = vadd.f32 %v3317, %v3425
        %v3430 = vld [vmem:[%s2881 + $0x2] sm:$0xff]
        %v3431 = vld [vmem:[%s2881 + $0xa] sm:$0xff]
        %s3432 = sld [smem:[#allocation10 + $0x21]]
        %v3433 = vstv %s3432
        %v3434 = vmul.f32 %v3433, %v3430
        %v3435 = vmul.f32 %v3433, %v3431
        %v3436 = vadd.f32 %v3330, %v3434
        %v3437 = vadd.f32 %v3331, %v3435
        %s3438 = sld [smem:[#allocation10 + $0x45]]
        %v3439 = vstv %s3438
        %v3440 = vmul.f32 %v3439, %v3430
        %v3441 = vmul.f32 %v3439, %v3431
        %v3442 = vadd.f32 %v3344, %v3440
        %v3443 = vadd.f32 %v3345, %v3441
        %s3444 = sld [smem:[#allocation10 + $0x69]]
        %v3445 = vstv %s3444
        %v3446 = vmul.f32 %v3445, %v3430
        %v3447 = vmul.f32 %v3445, %v3431
        %v3448 = vadd.f32 %v3358, %v3446
        %v3449 = vadd.f32 %v3359, %v3447
        %s3450 = sld [smem:[#allocation10 + $0x8d]]
        %v3451 = vstv %s3450
        %v3452 = vmul.f32 %v3451, %v3430
        %v3453 = vmul.f32 %v3451, %v3431
        %v3454 = vadd.f32 %v3372, %v3452
        %v3455 = vadd.f32 %v3373, %v3453
        %s3456 = sld [smem:[#allocation10 + $0xb1]]
        %v3457 = vstv %s3456
        %v3458 = vmul.f32 %v3457, %v3430
        %v3459 = vmul.f32 %v3457, %v3431
        %v3460 = vadd.f32 %v3386, %v3458
        %v3461 = vadd.f32 %v3387, %v3459
        %s3462 = sld [smem:[#allocation10 + $0xd5]]
        %v3463 = vstv %s3462
        %v3464 = vmul.f32 %v3463, %v3430
        %v3465 = vmul.f32 %v3463, %v3431
        %v3466 = vadd.f32 %v3400, %v3464
        %v3467 = vadd.f32 %v3401, %v3465
        %s3468 = sld [smem:[#allocation10 + $0xf9]]
        %v3469 = vstv %s3468
        %v3470 = vmul.f32 %v3469, %v3430
        %v3471 = vmul.f32 %v3469, %v3431
        %v3472 = vadd.f32 %v3414, %v3470
        %v3473 = vadd.f32 %v3415, %v3471
        %s3474 = sld [smem:[#allocation10 + $0x11d]]
        %v3475 = vstv %s3474
        %v3476 = vmul.f32 %v3475, %v3430
        %v3477 = vmul.f32 %v3475, %v3431
        %v3478 = vadd.f32 %v3428, %v3476
        %v3479 = vadd.f32 %v3429, %v3477
        %s3480 = sld [smem:[#allocation10 + $0x22]]
        %v3481 = vstv %s3480
        %v3482 = vmul.f32 %v3481, %v3430
        %v3483 = vmul.f32 %v3481, %v3431
        %3486 = vrot.lane.b32.xlu0 %v3482, 127
        %v3487 = vpop.permute.xlu0 %3486
        %3488 = vrot.lane.b32.xlu0 %v3483, 127
        %v3489 = vpop.permute.xlu0 %3488
        %v3492 = vadd.f32 %v3436, %v3487
        %v3493 = vadd.f32 %v3437, %v3489
        %s3494 = sld [smem:[#allocation10 + $0x46]]
        %v3495 = vstv %s3494
        %v3496 = vmul.f32 %v3495, %v3430
        %v3497 = vmul.f32 %v3495, %v3431
        %3500 = vrot.lane.b32.xlu0 %v3496, 127
        %v3501 = vpop.permute.xlu0 %3500
        %3502 = vrot.lane.b32.xlu0 %v3497, 127
        %v3503 = vpop.permute.xlu0 %3502
        %v3506 = vadd.f32 %v3442, %v3501
        %v3507 = vadd.f32 %v3443, %v3503
        %s3508 = sld [smem:[#allocation10 + $0x6a]]
        %v3509 = vstv %s3508
        %v3510 = vmul.f32 %v3509, %v3430
        %v3511 = vmul.f32 %v3509, %v3431
        %3514 = vrot.lane.b32.xlu0 %v3510, 127
        %v3515 = vpop.permute.xlu0 %3514
        %3516 = vrot.lane.b32.xlu0 %v3511, 127
        %v3517 = vpop.permute.xlu0 %3516
        %v3520 = vadd.f32 %v3448, %v3515
        %v3521 = vadd.f32 %v3449, %v3517
        %s3522 = sld [smem:[#allocation10 + $0x8e]]
        %v3523 = vstv %s3522
        %v3524 = vmul.f32 %v3523, %v3430
        %v3525 = vmul.f32 %v3523, %v3431
        %3528 = vrot.lane.b32.xlu0 %v3524, 127
        %v3529 = vpop.permute.xlu0 %3528
        %3530 = vrot.lane.b32.xlu0 %v3525, 127
        %v3531 = vpop.permute.xlu0 %3530
        %v3534 = vadd.f32 %v3454, %v3529
        %v3535 = vadd.f32 %v3455, %v3531
        %s3536 = sld [smem:[#allocation10 + $0xb2]]
        %v3537 = vstv %s3536
        %v3538 = vmul.f32 %v3537, %v3430
        %v3539 = vmul.f32 %v3537, %v3431
        %3542 = vrot.lane.b32.xlu0 %v3538, 127
        %v3543 = vpop.permute.xlu0 %3542
        %3544 = vrot.lane.b32.xlu0 %v3539, 127
        %v3545 = vpop.permute.xlu0 %3544
        %v3548 = vadd.f32 %v3460, %v3543
        %v3549 = vadd.f32 %v3461, %v3545
        %s3550 = sld [smem:[#allocation10 + $0xd6]]
        %v3551 = vstv %s3550
        %v3552 = vmul.f32 %v3551, %v3430
        %v3553 = vmul.f32 %v3551, %v3431
        %3556 = vrot.lane.b32.xlu0 %v3552, 127
        %v3557 = vpop.permute.xlu0 %3556
        %3558 = vrot.lane.b32.xlu0 %v3553, 127
        %v3559 = vpop.permute.xlu0 %3558
        %v3562 = vadd.f32 %v3466, %v3557
        %v3563 = vadd.f32 %v3467, %v3559
        %s3564 = sld [smem:[#allocation10 + $0xfa]]
        %v3565 = vstv %s3564
        %v3566 = vmul.f32 %v3565, %v3430
        %v3567 = vmul.f32 %v3565, %v3431
        %3570 = vrot.lane.b32.xlu0 %v3566, 127
        %v3571 = vpop.permute.xlu0 %3570
        %3572 = vrot.lane.b32.xlu0 %v3567, 127
        %v3573 = vpop.permute.xlu0 %3572
        %v3576 = vadd.f32 %v3472, %v3571
        %v3577 = vadd.f32 %v3473, %v3573
        %s3578 = sld [smem:[#allocation10 + $0x11e]]
        %v3579 = vstv %s3578
        %v3580 = vmul.f32 %v3579, %v3430
        %v3581 = vmul.f32 %v3579, %v3431
        %3584 = vrot.lane.b32.xlu0 %v3580, 127
        %v3585 = vpop.permute.xlu0 %3584
        %3586 = vrot.lane.b32.xlu0 %v3581, 127
        %v3587 = vpop.permute.xlu0 %3586
        %v3590 = vadd.f32 %v3478, %v3585
        %v3591 = vadd.f32 %v3479, %v3587
        %s3592 = sld [smem:[#allocation10 + $0x23]]
        %v3593 = vstv %s3592
        %v3594 = vmul.f32 %v3593, %v3430
        %v3595 = vmul.f32 %v3593, %v3431
        %3598 = vrot.lane.b32.xlu0 %v3594, 126
        %v3599 = vpop.permute.xlu0 %3598
        %3600 = vrot.lane.b32.xlu0 %v3595, 126
        %v3601 = vpop.permute.xlu0 %3600
        %v3604 = vadd.f32 %v3492, %v3599
        %v3605 = vadd.f32 %v3493, %v3601
        %s3606 = sld [smem:[#allocation10 + $0x47]]
        %v3607 = vstv %s3606
        %v3608 = vmul.f32 %v3607, %v3430
        %v3609 = vmul.f32 %v3607, %v3431
        %3612 = vrot.lane.b32.xlu0 %v3608, 126
        %v3613 = vpop.permute.xlu0 %3612
        %3614 = vrot.lane.b32.xlu0 %v3609, 126
        %v3615 = vpop.permute.xlu0 %3614
        %v3618 = vadd.f32 %v3506, %v3613
        %v3619 = vadd.f32 %v3507, %v3615
        %s3620 = sld [smem:[#allocation10 + $0x6b]]
        %v3621 = vstv %s3620
        %v3622 = vmul.f32 %v3621, %v3430
        %v3623 = vmul.f32 %v3621, %v3431
        %3626 = vrot.lane.b32.xlu0 %v3622, 126
        %v3627 = vpop.permute.xlu0 %3626
        %3628 = vrot.lane.b32.xlu0 %v3623, 126
        %v3629 = vpop.permute.xlu0 %3628
        %v3632 = vadd.f32 %v3520, %v3627
        %v3633 = vadd.f32 %v3521, %v3629
        %s3634 = sld [smem:[#allocation10 + $0x8f]]
        %v3635 = vstv %s3634
        %v3636 = vmul.f32 %v3635, %v3430
        %v3637 = vmul.f32 %v3635, %v3431
        %3640 = vrot.lane.b32.xlu0 %v3636, 126
        %v3641 = vpop.permute.xlu0 %3640
        %3642 = vrot.lane.b32.xlu0 %v3637, 126
        %v3643 = vpop.permute.xlu0 %3642
        %v3646 = vadd.f32 %v3534, %v3641
        %v3647 = vadd.f32 %v3535, %v3643
        %s3648 = sld [smem:[#allocation10 + $0xb3]]
        %v3649 = vstv %s3648
        %v3650 = vmul.f32 %v3649, %v3430
        %v3651 = vmul.f32 %v3649, %v3431
        %3654 = vrot.lane.b32.xlu0 %v3650, 126
        %v3655 = vpop.permute.xlu0 %3654
        %3656 = vrot.lane.b32.xlu0 %v3651, 126
        %v3657 = vpop.permute.xlu0 %3656
        %v3660 = vadd.f32 %v3548, %v3655
        %v3661 = vadd.f32 %v3549, %v3657
        %s3662 = sld [smem:[#allocation10 + $0xd7]]
        %v3663 = vstv %s3662
        %v3664 = vmul.f32 %v3663, %v3430
        %v3665 = vmul.f32 %v3663, %v3431
        %3668 = vrot.lane.b32.xlu0 %v3664, 126
        %v3669 = vpop.permute.xlu0 %3668
        %3670 = vrot.lane.b32.xlu0 %v3665, 126
        %v3671 = vpop.permute.xlu0 %3670
        %v3674 = vadd.f32 %v3562, %v3669
        %v3675 = vadd.f32 %v3563, %v3671
        %s3676 = sld [smem:[#allocation10 + $0xfb]]
        %v3677 = vstv %s3676
        %v3678 = vmul.f32 %v3677, %v3430
        %v3679 = vmul.f32 %v3677, %v3431
        %3682 = vrot.lane.b32.xlu0 %v3678, 126
        %v3683 = vpop.permute.xlu0 %3682
        %3684 = vrot.lane.b32.xlu0 %v3679, 126
        %v3685 = vpop.permute.xlu0 %3684
        %v3688 = vadd.f32 %v3576, %v3683
        %v3689 = vadd.f32 %v3577, %v3685
        %s3690 = sld [smem:[#allocation10 + $0x11f]]
        %v3691 = vstv %s3690
        %v3692 = vmul.f32 %v3691, %v3430
        %v3693 = vmul.f32 %v3691, %v3431
        %3696 = vrot.lane.b32.xlu0 %v3692, 126
        %v3697 = vpop.permute.xlu0 %3696
        %3698 = vrot.lane.b32.xlu0 %v3693, 126
        %v3699 = vpop.permute.xlu0 %3698
        %v3702 = vadd.f32 %v3590, %v3697
        %v3703 = vadd.f32 %v3591, %v3699
        %s3704 = sld [smem:[#allocation3]]
        %v3705 = vstv %s3704
        %v3706 = vadd.f32 %v3705, 0.0
        %s3707 = sld [smem:[#allocation11]]
        %v3708 = vstv %s3707
        %v3709 = vadd.f32 %v3604, %v3708
        %v3710 = vadd.f32 %v3605, %v3708
        %v3711 = vmax.f32 %v3709, 0.0
        %v3712 = vmax.f32 %v3710, 0.0
        %s3713 = sld [smem:[#allocation13]]
        %v3714 = vstv %s3713
        %v3715 = vmul.f32 %v3714, %v3711
        %v3716 = vmul.f32 %v3714, %v3712
        %v3717 = vadd.f32 %v3706, %v3715
        %v3718 = vadd.f32 %v3706, %v3716
        %s3719 = sld [smem:[#allocation11 + $0x1]]
        %v3720 = vstv %s3719
        %v3721 = vadd.f32 %v3618, %v3720
        %v3722 = vadd.f32 %v3619, %v3720
        %v3723 = vmax.f32 %v3721, 0.0
        %v3724 = vmax.f32 %v3722, 0.0
        %s3725 = sld [smem:[#allocation13 + $0x1]]
        %v3726 = vstv %s3725
        %v3727 = vmul.f32 %v3726, %v3723
        %v3728 = vmul.f32 %v3726, %v3724
        %v3729 = vadd.f32 %v3717, %v3727
        %v3730 = vadd.f32 %v3718, %v3728
        %s3731 = sld [smem:[#allocation11 + $0x2]]
        %v3732 = vstv %s3731
        %v3733 = vadd.f32 %v3632, %v3732
        %v3734 = vadd.f32 %v3633, %v3732
        %v3735 = vmax.f32 %v3733, 0.0
        %v3736 = vmax.f32 %v3734, 0.0
        %s3737 = sld [smem:[#allocation13 + $0x2]]
        %v3738 = vstv %s3737
        %v3739 = vmul.f32 %v3738, %v3735
        %v3740 = vmul.f32 %v3738, %v3736
        %v3741 = vadd.f32 %v3729, %v3739
        %v3742 = vadd.f32 %v3730, %v3740
        %s3743 = sld [smem:[#allocation11 + $0x3]]
        %v3744 = vstv %s3743
        %v3745 = vadd.f32 %v3646, %v3744
        %v3746 = vadd.f32 %v3647, %v3744
        %v3747 = vmax.f32 %v3745, 0.0
        %v3748 = vmax.f32 %v3746, 0.0
        %s3749 = sld [smem:[#allocation13 + $0x3]]
        %v3750 = vstv %s3749
        %v3751 = vmul.f32 %v3750, %v3747
        %v3752 = vmul.f32 %v3750, %v3748
        %v3753 = vadd.f32 %v3741, %v3751
        %v3754 = vadd.f32 %v3742, %v3752
        %s3755 = sld [smem:[#allocation11 + $0x4]]
        %v3756 = vstv %s3755
        %v3757 = vadd.f32 %v3660, %v3756
        %v3758 = vadd.f32 %v3661, %v3756
        %v3759 = vmax.f32 %v3757, 0.0
        %v3760 = vmax.f32 %v3758, 0.0
        %s3761 = sld [smem:[#allocation13 + $0x4]]
        %v3762 = vstv %s3761
        %v3763 = vmul.f32 %v3762, %v3759
        %v3764 = vmul.f32 %v3762, %v3760
        %v3765 = vadd.f32 %v3753, %v3763
        %v3766 = vadd.f32 %v3754, %v3764
        %s3767 = sld [smem:[#allocation11 + $0x5]]
        %v3768 = vstv %s3767
        %v3769 = vadd.f32 %v3674, %v3768
        %v3770 = vadd.f32 %v3675, %v3768
        %v3771 = vmax.f32 %v3769, 0.0
        %v3772 = vmax.f32 %v3770, 0.0
        %s3773 = sld [smem:[#allocation13 + $0x5]]
        %v3774 = vstv %s3773
        %v3775 = vmul.f32 %v3774, %v3771
        %v3776 = vmul.f32 %v3774, %v3772
        %v3777 = vadd.f32 %v3765, %v3775
        %v3778 = vadd.f32 %v3766, %v3776
        %s3779 = sld [smem:[#allocation11 + $0x6]]
        %v3780 = vstv %s3779
        %v3781 = vadd.f32 %v3688, %v3780
        %v3782 = vadd.f32 %v3689, %v3780
        %v3783 = vmax.f32 %v3781, 0.0
        %v3784 = vmax.f32 %v3782, 0.0
        %s3785 = sld [smem:[#allocation13 + $0x6]]
        %v3786 = vstv %s3785
        %v3787 = vmul.f32 %v3786, %v3783
        %v3788 = vmul.f32 %v3786, %v3784
        %v3789 = vadd.f32 %v3777, %v3787
        %v3790 = vadd.f32 %v3778, %v3788
        %s3791 = sld [smem:[#allocation11 + $0x7]]
        %v3792 = vstv %s3791
        %v3793 = vadd.f32 %v3702, %v3792
        %v3794 = vadd.f32 %v3703, %v3792
        %v3795 = vmax.f32 %v3793, 0.0
        %v3796 = vmax.f32 %v3794, 0.0
        %s3797 = sld [smem:[#allocation13 + $0x7]]
        %v3798 = vstv %s3797
        %v3799 = vmul.f32 %v3798, %v3795
        %v3800 = vmul.f32 %v3798, %v3796
        %v3801 = vadd.f32 %v3789, %v3799
        %v3802 = vadd.f32 %v3790, %v3800
        %v3803 = vxor.u32 %v3801, 2147483648
        %v3804 = vxor.u32 %v3802, 2147483648
        %v3805 = vmul.f32 %v3803, 1.442695
        %v3806 = vpow.pop %v3805
        %v3807 = vmul.f32 %v3804, 1.442695
        %v3808 = vpow.pop %v3807
        %v3809 = vadd.f32 %v3806, 1.0
        %v3810 = vadd.f32 %v3808, 1.0
        %v3811 = vrcp.pop %v3809
        %v3812 = vmul.f32 1.0, %v3811
        %v3813 = vrcp.pop %v3810
        %v3814 = vmul.f32 1.0, %v3813
        %v3815 = vld [vmem:[%s303] sm:$0xff]
        %v3816 = vld [vmem:[%s303 + $0x8] sm:$0xff]
        %v3817 = vld [vmem:[%s303 + $0x10] sm:$0xff]
        %v3818 = vld [vmem:[%s303 + $0x18] sm:$0xff]
        %v3819 = vld [vmem:[%s303 + $0x20] sm:$0xff]
        %v3820 = vld [vmem:[%s303 + $0x28] sm:$0xff]
        %v3821 = vmul.f32 %v3815, %v3812
        %v3822 = vmul.f32 %v3816, %v3814
        %v3823 = vmul.f32 %v3817, %v3812
        %v3824 = vmul.f32 %v3818, %v3814
        %v3825 = vmul.f32 %v3819, %v3812
        %v3826 = vmul.f32 %v3820, %v3814
        %vm3827 = vcmask 130048
        %3828 = vst.msk [vmem:[%s349] sm:$0xff] %vm3827, %v3821
        %3829 = vst.msk [vmem:[%s349 + $0x8] sm:$0xff] %vm3827, %v3822
        %3830 = vst.msk [vmem:[%s349 + $0x10] sm:$0xff] %vm3827, %v3823
        %3831 = vst.msk [vmem:[%s349 + $0x18] sm:$0xff] %vm3827, %v3824
        %3832 = vst.msk [vmem:[%s349 + $0x20] sm:$0xff] %vm3827, %v3825
        %3833 = vst.msk [vmem:[%s349 + $0x28] sm:$0xff] %vm3827, %v3826
        %s3834 = sand.u32 %s173, 1
        %s3835 = scalar_lea.sflag [#allocation6], %s3834
        %s3836 = sand.u32 %s173, 1
        %s3837 = smul.addr %s3836, 48
        %s3838 = scalar_lea.vmem [#allocation14], %s3837
        // Predicated region
        $region65: #{tpu_custom_call.1} parent=43 // pred_check
          %p3839 = pneg %p183
        $region66: #{tpu_custom_call.1} parent=43 // pred_check_branch
          %3841 = sbr.rel (%p3839) target = $region68
        $region67: #{tpu_custom_call.1} parent=43 // pred_region
          %s3843 = ssub.s32 768, 768
          %3844 = vsyncadd %s3835, %s3843
          %s3845 = smul.addr %s29, 6
          %s3846 = smul.addr %s3845, 128
          %s3847 = scalar_lea.hbm %s6, %s3846
          %s3848 = sshll.u32 %s3838, 4
          %s3849 = int_to_ptr.vmem [resolvable:$true] %s3848
          %3854 = dma.vmem_to_hbm [thread:$0]  %s3849, 768, %s3847, %s3835, 128, 128, 8
        $region68: #{tpu_custom_call.1} parent=43 // pred_fallthru
          _
      $region44: #{tpu_custom_call.1} parent=5 // pred_fallthru
        _
      %p3855 = scmp.le.s32.totalorder 2, %s24
      // Predicated region
      $region69: #{tpu_custom_call.1} parent=5 // pred_check
        %p3856 = pneg %p3855
      $region70: #{tpu_custom_call.1} parent=5 // pred_check_branch
        %3858 = sbr.rel (%p3856) target = $region72
      $region71: #{tpu_custom_call.1} parent=5 // pred_region
        %s3859 = ssub.s32 %s24, 2
        // Predicated region
        $region73: #{tpu_custom_call.1} parent=71 // pred_check
          %p3860 = pneg %p189
        $region74: #{tpu_custom_call.1} parent=71 // pred_check_branch
          %3862 = sbr.rel (%p3860) target = $region76
        $region75: #{tpu_custom_call.1} parent=71 // pred_region
          %s3863 = sand.u32 %s174, 1
          %s3864 = scalar_lea.sflag [#allocation6], %s3863
          %s3865 = sand.u32 %s174, 1
          %s3866 = smul.addr %s3865, 48
          %s3867 = scalar_lea.vmem [#allocation14], %s3866
          %3868 = dma.done %s3864, 768
        $region76: #{tpu_custom_call.1} parent=71 // pred_fallthru
          _
      $region72: #{tpu_custom_call.1} parent=5 // pred_fallthru
        _
    $region6: #{tpu_custom_call.1} parent=1 // loop_footer
      %s28 = sadd.s32 1, %s24
    $region7: #{tpu_custom_call.1} parent=1 // loop_footer_branch
      %23 = sbr.rel target = $region3
    $region8: #{tpu_custom_call.1} parent=1 // loop_exit
      _
    %3869 = vsyncpa [#allocation5], 1
    %s3870 = scalar_lea.sflag [#allocation5], 1
    %3871 = vsyncpa %s3870, 1
    %3872 = vsyncpa [#allocation9], 1
    %s3873 = scalar_lea.sflag [#allocation9], 1
    %3874 = vsyncpa %s3873, 1
    %3875 = vsyncpa [#allocation6], 1
    %s3876 = scalar_lea.sflag [#allocation6], 1
    %3877 = vsyncpa %s3876, 1
    %3878 = vsyncpa [#allocation7], 1
    %s3879 = scalar_lea.sflag [#allocation7], 1
    %3880 = vsyncpa %s3879, 1
    %3881 = vsyncpa [#allocation12], 1

</llo_original>
